<compile_context>
chip_gen: v7x
topology: tpu7x:2x2x1
jax: 0.10.0
libtpu: 0.0.40
codegen_flags: <defaults>
</compile_context>

<pallas_src>
import math

import jax
import jax.numpy as jnp
import numpy as np
from jax.experimental import pallas as pl
from jax.experimental.pallas import tpu as pltpu

NUM_POS_FEATS = 128
TEMPERATURE = 10000.0
SCALE = 2.0 * math.pi
N_COORDS = 4
D_SINE = N_COORDS * NUM_POS_FEATS  # 512

# ---------------------------------------------------------------------------
# Host-side constants, passed to the kernel as a (2, 128) operand
#   row 0: scale / dim_t                       (per 128-lane coordinate block)
#   row 1: phase (0 on even lanes -> sin, pi/2 on odd lanes -> cos)
# ---------------------------------------------------------------------------
_J = np.arange(NUM_POS_FEATS, dtype=np.float64)
_DIM_T = TEMPERATURE ** (2.0 * np.floor(_J / 2.0) / NUM_POS_FEATS)
_COEF = (SCALE / _DIM_T).astype(np.float32).reshape(1, NUM_POS_FEATS)
_PHASE = np.where((_J.astype(np.int64) % 2) == 1,
                  np.float32(math.pi / 2.0),
                  np.float32(0.0)).astype(np.float32).reshape(1, NUM_POS_FEATS)
_CONSTS = np.concatenate([_COEF, _PHASE], axis=0)  # (2, 128) f32


# ---------------------------------------------------------------------------
# Pallas kernel: sine positional embedding + 2-layer ref_point_head MLP
# ---------------------------------------------------------------------------
def _reid_head_kernel(rp_ref, consts_ref, w1_ref, b12_ref, w2_ref, qpos_ref):
    # rp_ref    : (TN, 4) f32, columns already reordered to [y, x, w, h]
    #             (exchange_xy) and pre-scaled by level-0 valid_ratios.
    # consts_ref: (2, 128) f32 -> row 0 = scale/dim_t, row 1 = sin/cos phase.
    # w1/w2     : bf16 weights, resident across the grid (index_map (0, 0)).
    # b12_ref   : (2, d) f32 -> row 0 = b1, row 1 = b2.
    rp = rp_ref[...]                   # (TN, 4)
    coef = consts_ref[0:1, :]          # (1, 128)
    phase = consts_ref[1:2, :]         # (1, 128)

    # arg[:, c*128 + j] = coord_c * scale / dim_t[j]; embed = sin(arg + phase).
    # Each 128-lane chunk is cast to bf16 so the (TN, 512) intermediate is
    # half-width and feeds the MXU with no extra full-width cast pass.
    embed = jnp.concatenate(
        [jnp.sin(rp[:, c:c + 1] * coef + phase).astype(jnp.bfloat16)
         for c in range(N_COORDS)],
        axis=-1)                       # (TN, 512) bf16
    # TODO(synk): if the Mosaic dump shows the lane concat materialising an
    # extra VMEM copy, write the 128-lane chunks into a (TN, 512) bf16 VMEM
    # scratch instead and matmul from the scratch.

    b1 = b12_ref[0:1, :]               # (1, d) f32
    b2 = b12_ref[1:2, :]               # (1, d) f32

    h = jnp.dot(embed, w1_ref[...], preferred_element_type=jnp.float32) + b1
    h = jnp.maximum(h, 0.0)            # ReLU on hidden layer only (f32)
    out = jnp.dot(h.astype(jnp.bfloat16), w2_ref[...],
                  preferred_element_type=jnp.float32) + b2
    qpos_ref[...] = out.astype(qpos_ref.dtype)


def _round_up(x, m):
    return (x + m - 1) // m * m


def ref_point_head_pallas(rp_sw, w1_bf16, b1, w2_bf16, b2, *, tn=1024):
    """rp_sw: (N,4) [y,x,w,h] level-0 scaled refs -> query_pos (N, d_out) bf16."""
    N = rp_sw.shape[0]
    d_hid = w1_bf16.shape[1]
    d_out = w2_bf16.shape[1]
    assert w1_bf16.shape[0] == D_SINE
    assert b1.shape == b2.shape == (1, d_hid) and d_hid == d_out

    # Row tile: big enough to amortise the per-grid-step overhead, multiple of
    # the bf16 sublane tile (16); split into >= 2 grid steps when N allows so
    # both v7x TensorCores get work on the "parallel" row axis.
    SUB = 16
    n_t = _round_up(max(N, 1), SUB)
    TN = min(tn, n_t)
    if n_t >= 2 * SUB:
        TN = min(TN, _round_up((n_t + 1) // 2, SUB))
    N_pad = _round_up(N, TN)
    if N_pad != N:
        rp_sw = jnp.pad(rp_sw, ((0, N_pad - N), (0, 0)))
    grid = (N_pad // TN,)

    consts = jnp.asarray(_CONSTS)                                    # (2, 128)
    b12 = jnp.concatenate([b1, b2], axis=0).astype(jnp.float32)      # (2, d)

    cost = pl.CostEstimate(
        flops=2 * N_pad * (D_SINE * d_hid + d_hid * d_out),
        transcendentals=N_pad * D_SINE,
        bytes_accessed=(N_pad * 4 * 4                                # rp
                        + 2 * NUM_POS_FEATS * 4                      # consts
                        + D_SINE * d_hid * 2 + d_hid * d_out * 2     # bf16 W
                        + 2 * d_hid * 4                              # biases
                        + N_pad * d_out * 2))                        # bf16 out

    out = pl.pallas_call(
        _reid_head_kernel,
        out_shape=jax.ShapeDtypeStruct((N_pad, d_out), jnp.bfloat16),
        grid=grid,
        in_specs=[
            pl.BlockSpec((TN, 4), lambda i: (i, 0)),               # rp (pipelined)
            pl.BlockSpec((2, NUM_POS_FEATS), lambda i: (0, 0)),    # coef/phase
            pl.BlockSpec((D_SINE, d_hid), lambda i: (0, 0)),       # W1 (resident)
            pl.BlockSpec((2, d_hid), lambda i: (0, 0)),            # b1/b2
            pl.BlockSpec((d_hid, d_out), lambda i: (0, 0)),        # W2 (resident)
        ],
        out_specs=pl.BlockSpec((TN, d_out), lambda i: (i, 0)),
        compiler_params=pltpu.CompilerParams(
            dimension_semantics=("parallel",)),
        cost_estimate=cost,
    )(rp_sw, consts, w1_bf16, b12, w2_bf16)
    return out[:N]


# ---------------------------------------------------------------------------
# Parameter construction (deterministic, in-script)
# ---------------------------------------------------------------------------
def init_ref_point_head_params(key, embed_dim):
    k1, k2, k3, k4 = jax.random.split(key, 4)
    d_in = 2 * embed_dim
    w1 = jax.random.normal(k1, (d_in, embed_dim), jnp.float32) / math.sqrt(d_in)
    b1 = 0.01 * jax.random.normal(k2, (1, embed_dim), jnp.float32)
    w2 = jax.random.normal(k3, (embed_dim, embed_dim), jnp.float32) / math.sqrt(embed_dim)
    b2 = 0.01 * jax.random.normal(k4, (1, embed_dim), jnp.float32)
    return {"w1": w1, "b1": b1, "w2": w2, "b2": b2}


# ---------------------------------------------------------------------------
# DeformableReidHead.forward
# ---------------------------------------------------------------------------
def deformable_reid_head_forward(tgt, reference_points, src, src_spatial_shapes,
                                 src_level_start_index, src_valid_ratios,
                                 params, num_layers):
    assert reference_points.shape[-1] == 4, \
        "reference_points.shape[-1] should be 4"
    B, Q, _ = reference_points.shape
    embed_dim = tgt.shape[-1]
    assert 2 * embed_dim == D_SINE, "ref_point_head expects 2*embed_dim == 512"

    # reference_points_input = ref[:, :, None] * cat([vr, vr], -1)[:, None]
    vr4 = jnp.concatenate([src_valid_ratios, src_valid_ratios], axis=-1)  # (B,L,4)
    reference_points_input = (
        reference_points[:, :, None, :] * vr4[:, None, :, :])            # (B,Q,L,4)

    # get_sine_pos_embed uses level-0 refs; exchange_xy=True -> order [y,x,w,h]
    rp0 = reference_points_input[:, :, 0, :]                     # (B,Q,4) [x,y,w,h]
    rp_sw = rp0[..., jnp.array([1, 0, 2, 3])].reshape(B * Q, 4)  # (N,4)  [y,x,w,h]
    rp_sw = rp_sw.astype(jnp.float32)

    # bf16 weights for the MXU; biases stay f32.
    w1 = params["w1"].astype(jnp.bfloat16)
    w2 = params["w2"].astype(jnp.bfloat16)

    # Hoisted out of the layer loop: reference points (and hence query_pos)
    # are loop-invariant while the decoder layer is identity.
    qpos_bf16 = ref_point_head_pallas(rp_sw, w1, params["b1"], w2, params["b2"])
    # Kernel writes back bf16 (halves HBM writeback); cast once to keep the
    # module's float32 interface.
    query_pos = qpos_bf16.astype(jnp.float32).reshape(B, Q, embed_dim)

    output = tgt.astype(jnp.float32)  # custom_fwd(cast_inputs=float32)
    for _lid in range(num_layers):
        # TODO(synk): decoder_layer(output, query_pos, reference_points_input,
        #   src, src_spatial_shapes, src_level_start_index, ...) is an
        #   externally injected module (not defined in the reference) ->
        #   identity here. If a real layer refines reference points per layer,
        #   move the ref_point_head_pallas call back inside this loop.
        output = output
    return output, query_pos


# ---------------------------------------------------------------------------
# Pure-JAX f32 reference (mirrors the PyTorch module) for validation
# ---------------------------------------------------------------------------
def get_sine_pos_embed_ref(pos_tensor, num_pos_feats=NUM_POS_FEATS,
                           temperature=TEMPERATURE, exchange_xy=True):
    scale = 2.0 * math.pi
    dim_t = jnp.arange(num_pos_feats, dtype=jnp.float32)
    dim_t = temperature ** (2.0 * jnp.floor(dim_t / 2.0) / num_pos_feats)

    def sine_func(x):                              # x: (..., 1)
        sin_x = x * scale / dim_t                  # (..., num_pos_feats)
        out = jnp.stack([jnp.sin(sin_x[..., 0::2]),
                         jnp.cos(sin_x[..., 1::2])], axis=-1)
        return out.reshape(out.shape[:-2] + (num_pos_feats,))

    pos_res = [sine_func(pos_tensor[..., i:i + 1])
               for i in range(pos_tensor.shape[-1])]
    if exchange_xy:
        pos_res[0], pos_res[1] = pos_res[1], pos_res[0]
    return jnp.concatenate(pos_res, axis=-1)


# ---------------------------------------------------------------------------
if __name__ == "__main__":
    key = jax.random.PRNGKey(0)
    k_tgt, k_ref, k_src, k_vr, k_par = jax.random.split(key, 5)

    # embed_dim must be 256 so that 2*embed_dim == 4*num_pos_feats (=512),
    # as required by ref_point_head's input dimension in the original module.
    embed_dim = 256
    num_layers = 2
    B, Q, L = 2, 40, 4   # N = 80 rows -> TN = 48, N_pad = 96, grid = (2,)

    spatial_shapes = jnp.array([[8, 8], [4, 4], [2, 2], [1, 1]], dtype=jnp.int32)
    S = int(np.sum(np.array(spatial_shapes)[:, 0] * np.array(spatial_shapes)[:, 1]))
    level_start_index = jnp.concatenate(
        [jnp.zeros((1,), jnp.int32),
         jnp.cumsum(spatial_shapes[:, 0] * spatial_shapes[:, 1])[:-1].astype(jnp.int32)])

    tgt = jax.random.normal(k_tgt, (B, Q, embed_dim), jnp.float32)
    reference_points = jax.random.uniform(k_ref, (B, Q, 4), jnp.float32)
    src = jax.random.normal(k_src, (B, S, embed_dim), jnp.float32)
    src_valid_ratios = jax.random.uniform(
        k_vr, (B, L, 2), jnp.float32, minval=0.5, maxval=1.0)

    params = init_ref_point_head_params(k_par, embed_dim)

    output, query_pos = deformable_reid_head_forward(
        tgt, reference_points, src, spatial_shapes, level_start_index,
        src_valid_ratios, params, num_layers)

    jax.block_until_ready(output)
    jax.block_until_ready(query_pos)
    assert output.shape == (B, Q, embed_dim)
    assert query_pos.shape == (B, Q, embed_dim)

    # Correctness check against a pure-JAX f32 reference of the module's math
    # (bf16 MXU/weights/output -> generous tolerance).
    vr4 = jnp.concatenate([src_valid_ratios, src_valid_ratios], axis=-1)
    rp_in = reference_points[:, :, None, :] * vr4[:, None, :, :]
    sine = get_sine_pos_embed_ref(rp_in[:, :, 0, :])                  # (B,Q,512)
    h_ref = jnp.maximum(sine @ params["w1"] + params["b1"][0], 0.0)
    qpos_ref = h_ref @ params["w2"] + params["b2"][0]
    np.testing.assert_allclose(np.asarray(query_pos), np.asarray(qpos_ref),
                               rtol=5e-2, atol=5e-2)

    print("KERNEL_OK")
</pallas_src>

<mosaic_0001>
module attributes {stable_mosaic.version = 11 : i64} {
  func.func @_reid_head_kernel(%arg0: i32, %arg1: memref<48x4xf32, #tpu.memory_space<vmem>>, %arg2: memref<2x128xf32, #tpu.memory_space<vmem>>, %arg3: memref<512x256xbf16, #tpu.memory_space<vmem>>, %arg4: memref<2x256xf32, #tpu.memory_space<vmem>>, %arg5: memref<256x256xbf16, #tpu.memory_space<vmem>>, %arg6: memref<48x256xbf16, #tpu.memory_space<vmem>>) attributes {dimension_semantics = [#tpu.dimension_semantics<parallel>], iteration_bounds = array<i64: 2>, scalar_prefetch = 0 : i64, scratch_operands = 0 : i64, tpu.core_type = #tpu.core_type<tc>, window_params = [{transform_indices = @transform_0, window_bounds = array<i64: 48, 4>}, {pipeline_mode = #tpu.pipeline_mode<synchronous>, transform_indices = @transform_1, window_bounds = array<i64: 2, 128>}, {pipeline_mode = #tpu.pipeline_mode<synchronous>, transform_indices = @transform_2, window_bounds = array<i64: 512, 256>}, {pipeline_mode = #tpu.pipeline_mode<synchronous>, transform_indices = @transform_3, window_bounds = array<i64: 2, 256>}, {pipeline_mode = #tpu.pipeline_mode<synchronous>, transform_indices = @transform_4, window_bounds = array<i64: 256, 256>}, {transform_indices = @transform_5, window_bounds = array<i64: 48, 256>}]} {
    %c0 = arith.constant 0 : index
    %c0_0 = arith.constant 0 : index
    %0 = vector.load %arg1[%c0, %c0_0] : memref<48x4xf32, #tpu.memory_space<vmem>>, vector<48x4xf32>
    %c0_1 = arith.constant 0 : index
    %c0_2 = arith.constant 0 : index
    %1 = vector.load %arg2[%c0_1, %c0_2] : memref<2x128xf32, #tpu.memory_space<vmem>>, vector<1x128xf32>
    %c1 = arith.constant 1 : index
    %c0_3 = arith.constant 0 : index
    %2 = vector.load %arg2[%c1, %c0_3] : memref<2x128xf32, #tpu.memory_space<vmem>>, vector<1x128xf32>
    %3 = vector.extract_strided_slice %0 {offsets = [0, 0], sizes = [48, 1], strides = [1, 1]} : vector<48x4xf32> to vector<48x1xf32>
    %4 = vector.broadcast %3 : vector<48x1xf32> to vector<48x128xf32>
    %5 = vector.broadcast %1 : vector<1x128xf32> to vector<48x128xf32>
    %6 = arith.mulf %4, %5 : vector<48x128xf32>
    %7 = vector.broadcast %2 : vector<1x128xf32> to vector<48x128xf32>
    %8 = arith.addf %6, %7 : vector<48x128xf32>
    %9 = math.sin %8 : vector<48x128xf32>
    %10 = arith.truncf %9 : vector<48x128xf32> to vector<48x128xbf16>
    %11 = vector.extract_strided_slice %0 {offsets = [0, 1], sizes = [48, 1], strides = [1, 1]} : vector<48x4xf32> to vector<48x1xf32>
    %12 = vector.broadcast %11 : vector<48x1xf32> to vector<48x128xf32>
    %13 = vector.broadcast %1 : vector<1x128xf32> to vector<48x128xf32>
    %14 = arith.mulf %12, %13 : vector<48x128xf32>
    %15 = vector.broadcast %2 : vector<1x128xf32> to vector<48x128xf32>
    %16 = arith.addf %14, %15 : vector<48x128xf32>
    %17 = math.sin %16 : vector<48x128xf32>
    %18 = arith.truncf %17 : vector<48x128xf32> to vector<48x128xbf16>
    %19 = vector.extract_strided_slice %0 {offsets = [0, 2], sizes = [48, 1], strides = [1, 1]} : vector<48x4xf32> to vector<48x1xf32>
    %20 = vector.broadcast %19 : vector<48x1xf32> to vector<48x128xf32>
    %21 = vector.broadcast %1 : vector<1x128xf32> to vector<48x128xf32>
    %22 = arith.mulf %20, %21 : vector<48x128xf32>
    %23 = vector.broadcast %2 : vector<1x128xf32> to vector<48x128xf32>
    %24 = arith.addf %22, %23 : vector<48x128xf32>
    %25 = math.sin %24 : vector<48x128xf32>
    %26 = arith.truncf %25 : vector<48x128xf32> to vector<48x128xbf16>
    %27 = vector.extract_strided_slice %0 {offsets = [0, 3], sizes = [48, 1], strides = [1, 1]} : vector<48x4xf32> to vector<48x1xf32>
    %28 = vector.broadcast %27 : vector<48x1xf32> to vector<48x128xf32>
    %29 = vector.broadcast %1 : vector<1x128xf32> to vector<48x128xf32>
    %30 = arith.mulf %28, %29 : vector<48x128xf32>
    %31 = vector.broadcast %2 : vector<1x128xf32> to vector<48x128xf32>
    %32 = arith.addf %30, %31 : vector<48x128xf32>
    %33 = math.sin %32 : vector<48x128xf32>
    %34 = arith.truncf %33 : vector<48x128xf32> to vector<48x128xbf16>
    %35 = tpu.concatenate %10, %18, %26, %34 in 1 : vector<48x128xbf16>, vector<48x128xbf16>, vector<48x128xbf16>, vector<48x128xbf16> -> vector<48x512xbf16>
    %c0_4 = arith.constant 0 : index
    %c0_5 = arith.constant 0 : index
    %36 = vector.load %arg4[%c0_4, %c0_5] : memref<2x256xf32, #tpu.memory_space<vmem>>, vector<1x256xf32>
    %c1_6 = arith.constant 1 : index
    %c0_7 = arith.constant 0 : index
    %37 = vector.load %arg4[%c1_6, %c0_7] : memref<2x256xf32, #tpu.memory_space<vmem>>, vector<1x256xf32>
    %c0_8 = arith.constant 0 : index
    %c0_9 = arith.constant 0 : index
    %38 = vector.load %arg3[%c0_8, %c0_9] : memref<512x256xbf16, #tpu.memory_space<vmem>>, vector<512x256xbf16>
    %cst = arith.constant dense<0.000000e+00> : vector<48x256xf32>
    %39 = tpu.matmul %35, %38, %cst {dimension_numbers = #tpu.dot_dimension_numbers<[1], [0], [0], [1], [0, 0, 1, 1], [], []>} : vector<48x512xbf16>, vector<512x256xbf16>, vector<48x256xf32> -> vector<48x256xf32>
    %40 = vector.broadcast %36 : vector<1x256xf32> to vector<48x256xf32>
    %41 = arith.addf %39, %40 : vector<48x256xf32>
    %cst_10 = arith.constant 0.000000e+00 : f32
    %42 = vector.broadcast %cst_10 : f32 to vector<48x256xf32>
    %43 = arith.maximumf %41, %42 : vector<48x256xf32>
    %44 = arith.truncf %43 : vector<48x256xf32> to vector<48x256xbf16>
    %c0_11 = arith.constant 0 : index
    %c0_12 = arith.constant 0 : index
    %45 = vector.load %arg5[%c0_11, %c0_12] : memref<256x256xbf16, #tpu.memory_space<vmem>>, vector<256x256xbf16>
    %cst_13 = arith.constant dense<0.000000e+00> : vector<48x256xf32>
    %46 = tpu.matmul %44, %45, %cst_13 {dimension_numbers = #tpu.dot_dimension_numbers<[1], [0], [0], [1], [0, 0, 1, 1], [], []>} : vector<48x256xbf16>, vector<256x256xbf16>, vector<48x256xf32> -> vector<48x256xf32>
    %47 = vector.broadcast %37 : vector<1x256xf32> to vector<48x256xf32>
    %48 = arith.addf %46, %47 : vector<48x256xf32>
    %49 = arith.truncf %48 : vector<48x256xf32> to vector<48x256xbf16>
    %c0_14 = arith.constant 0 : index
    %c0_15 = arith.constant 0 : index
    %50 = vector.load %arg6[%c0_14, %c0_15] : memref<48x256xbf16, #tpu.memory_space<vmem>>, vector<48x256xbf16>
    tpu.vector_store %arg6[%c0_14, %c0_15], %49 {strides = array<i32>} : memref<48x256xbf16, #tpu.memory_space<vmem>>, vector<48x256xbf16>,
    return
  }
  func.func @transform_0(%arg0: i32) -> (i32, i32) {
    %c0_i32 = arith.constant 0 : i32
    %c0_i32_0 = arith.constant 0 : i32
    return %arg0, %c0_i32 : i32, i32
  }
  func.func @transform_1(%arg0: i32) -> (i32, i32) {
    %c0_i32 = arith.constant 0 : i32
    %c0_i32_0 = arith.constant 0 : i32
    %c0_i32_1 = arith.constant 0 : i32
    return %c0_i32, %c0_i32_0 : i32, i32
  }
  func.func @transform_2(%arg0: i32) -> (i32, i32) {
    %c0_i32 = arith.constant 0 : i32
    %c0_i32_0 = arith.constant 0 : i32
    %c0_i32_1 = arith.constant 0 : i32
    return %c0_i32, %c0_i32_0 : i32, i32
  }
  func.func @transform_3(%arg0: i32) -> (i32, i32) {
    %c0_i32 = arith.constant 0 : i32
    %c0_i32_0 = arith.constant 0 : i32
    %c0_i32_1 = arith.constant 0 : i32
    return %c0_i32, %c0_i32_0 : i32, i32
  }
  func.func @transform_4(%arg0: i32) -> (i32, i32) {
    %c0_i32 = arith.constant 0 : i32
    %c0_i32_0 = arith.constant 0 : i32
    %c0_i32_1 = arith.constant 0 : i32
    return %c0_i32, %c0_i32_0 : i32, i32
  }
  func.func @transform_5(%arg0: i32) -> (i32, i32) {
    %c0_i32 = arith.constant 0 : i32
    %c0_i32_0 = arith.constant 0 : i32
    return %arg0, %c0_i32 : i32, i32
  }
}

</mosaic_0001>

<llo_original>
// kernel: tpu_custom_call.1
$region0: #{tpu_custom_call.1}
  #allocation0 [shape = 'u32[]', space=smem, size = 0x4, offset = 0x4, fixed_abs, tag = 'smem constant byte address 0x4 - core index']
  #allocation1 [shape = 'u32[144,128]{1,0:T(1,128)}', space=vmem, size = 0x12000, scoped, tag = 'internal scratch']
  %s0 = inlined_call_operand.vmem [shape: f32[96,4], index: 0, kind: input, shape index: {}]
  %s1 = inlined_call_operand.vmem [shape: f32[2,128], index: 1, kind: input, shape index: {}]
  %s2 = inlined_call_operand.hbm [shape: bf16[512,256], index: 2, kind: input, shape index: {}]
  %s3 = inlined_call_operand.vmem [shape: f32[2,256], index: 3, kind: input, shape index: {}]
  %s4 = inlined_call_operand.hbm [shape: bf16[256,256], index: 4, kind: input, shape index: {}]
  %s5 = inlined_call_operand.hbm [shape: bf16[96,256], index: 5, kind: output, shape index: {}]
  %s6 = sld [smem:[#allocation0]]
  $region61: #{tpu_custom_call.1} parent=0
    _
  %s8 = ssub.s32 1, %s6
  %s9 = scalar_select 0, %s8, %s6
  $region1: #{tpu_custom_call.1} parent=0
    #allocation2 [shape = 'u8[262144]{0}', space=vmem, size = 0x40000, scoped, tag = 'input window, operand 2, single buffered']
    #allocation3 [shape = 's32[2]{0}', space=sflag, size = 0x8, scoped, tag = 'scoped memory for tpu_custom_call.1']
    #allocation4 [shape = 's32[2]{0}', space=sflag, size = 0x8, scoped, tag = 'scoped memory for tpu_custom_call.1']
    #allocation5 [shape = 'u8[131072]{0}', space=vmem, size = 0x20000, scoped, tag = 'input window, operand 4, single buffered']
    #allocation6 [shape = 's32[1]{0}', space=sflag, size = 0x4, scoped, tag = 'scoped memory for tpu_custom_call.1']
    #allocation7 [shape = 'u8[49152]{0}', space=vmem, size = 0xc000, scoped, tag = 'output window, operand 0']
    %10 = vsyncpa [#allocation3], 0
    %11 = vsyncpa [#allocation6], 0
    %12 = vsyncpa [#allocation4], 0
    %s13 = scalar_lea.sflag [#allocation4], 1
    %14 = vsyncpa %s13, 0
    loop: start=0, step=1, limit=4
    $region2: #{tpu_custom_call.1} parent=1 // loop_pre_header
      _
    $region3: #{tpu_custom_call.1} parent=1 // loop_header
      %s16 = sphi 0, %s20
      %p17 = scmp.ge.s32.totalorder %s16, 4
      %s26 = sphi 0, %s28
      %s29 = sphi 0, %s26
      %s30 = sphi 0, %s29
      %s46 = sphi 0, %s30
      %s50 = sphi 0, %s50
      %s52 = sphi 0, %s50
      %s53 = sphi 0, %s52
      %s67 = sphi 0, %s53
      %s71 = sphi 0, %s71
      %s73 = sphi 0, %s71
      %s74 = sphi 0, %s73
      %s88 = sphi 0, %s74
      %s92 = sphi 0, %s92
      %s94 = sphi 0, %s92
      %s95 = sphi 0, %s94
      %s109 = sphi 0, %s95
      %s113 = sphi 0, %s113
      %s115 = sphi 0, %s113
      %s116 = sphi 0, %s115
      %s130 = sphi 0, %s116
      %s136 = sphi 0, %s138
      %s139 = sphi 0, %s136
      %s140 = sphi 0, %s139
      %s156 = sphi 0, %s140
    $region4: #{tpu_custom_call.1} parent=1 // loop_header_branch
      %19 = sbr.rel (%p17) target = $region8
    $region5: #{tpu_custom_call.1} parent=1 // loop_body
      %s21 = ssub.s32 %s16, 1
      %s22 = ssub.s32 %s16, 2
      %s23 = sadd.s32 %s16, 1
      %s24 = ssub.s32 %s16, %s23
      %p25 = scmp.eq.s32.totalorder %s24, 0
      %s27 = sadd.s32 %s26, 1
      %s28 = scalar_select %p25, %s26, %s27
      %p31 = pneg %p25
      %p32 = scmp.eq.s32.totalorder %s16, 1
      %p33 = por %p31, %p32
      %p34 = scmp.ne.s32.totalorder %s26, %s29
      %p35 = scmp.eq.s32.totalorder %s16, 0
      %p36 = por %p34, %p35
      %p37 = scmp.ne.s32.totalorder %s26, %s29
      %p38 = scmp.eq.s32.totalorder %s21, 1
      %p39 = por %p37, %p38
      %p40 = scmp.ne.s32.totalorder %s29, %s30
      %p41 = scmp.eq.s32.totalorder %s21, 0
      %p42 = por %p40, %p41
      %p43 = scmp.ne.s32.totalorder %s29, %s30
      %p44 = scmp.eq.s32.totalorder %s22, 1
      %p45 = por %p43, %p44
      %p47 = scmp.ne.s32.totalorder %s30, %s46
      %p48 = scmp.eq.s32.totalorder %s22, 0
      %p49 = por %p47, %p48
      %s51 = sadd.s32 %s50, 1
      %p54 = scmp.eq.s32.totalorder %s16, 1
      %p55 = scmp.ne.s32.totalorder %s50, %s52
      %p56 = scmp.eq.s32.totalorder %s16, 0
      %p57 = por %p55, %p56
      %p58 = scmp.ne.s32.totalorder %s50, %s52
      %p59 = scmp.eq.s32.totalorder %s21, 1
      %p60 = por %p58, %p59
      %p61 = scmp.ne.s32.totalorder %s52, %s53
      %p62 = scmp.eq.s32.totalorder %s21, 0
      %p63 = por %p61, %p62
      %p64 = scmp.ne.s32.totalorder %s52, %s53
      %p65 = scmp.eq.s32.totalorder %s22, 1
      %p66 = por %p64, %p65
      %p68 = scmp.ne.s32.totalorder %s53, %s67
      %p69 = scmp.eq.s32.totalorder %s22, 0
      %p70 = por %p68, %p69
      %s72 = sadd.s32 %s71, 1
      %p75 = scmp.eq.s32.totalorder %s16, 1
      %p76 = scmp.ne.s32.totalorder %s71, %s73
      %p77 = scmp.eq.s32.totalorder %s16, 0
      %p78 = por %p76, %p77
      %p79 = scmp.ne.s32.totalorder %s71, %s73
      %p80 = scmp.eq.s32.totalorder %s21, 1
      %p81 = por %p79, %p80
      %p82 = scmp.ne.s32.totalorder %s73, %s74
      %p83 = scmp.eq.s32.totalorder %s21, 0
      %p84 = por %p82, %p83
      %p85 = scmp.ne.s32.totalorder %s73, %s74
      %p86 = scmp.eq.s32.totalorder %s22, 1
      %p87 = por %p85, %p86
      %p89 = scmp.ne.s32.totalorder %s74, %s88
      %p90 = scmp.eq.s32.totalorder %s22, 0
      %p91 = por %p89, %p90
      %s93 = sadd.s32 %s92, 1
      %p96 = scmp.eq.s32.totalorder %s16, 1
      %p97 = scmp.ne.s32.totalorder %s92, %s94
      %p98 = scmp.eq.s32.totalorder %s16, 0
      %p99 = por %p97, %p98
      %p100 = scmp.ne.s32.totalorder %s92, %s94
      %p101 = scmp.eq.s32.totalorder %s21, 1
      %p102 = por %p100, %p101
      %p103 = scmp.ne.s32.totalorder %s94, %s95
      %p104 = scmp.eq.s32.totalorder %s21, 0
      %p105 = por %p103, %p104
      %p106 = scmp.ne.s32.totalorder %s94, %s95
      %p107 = scmp.eq.s32.totalorder %s22, 1
      %p108 = por %p106, %p107
      %p110 = scmp.ne.s32.totalorder %s95, %s109
      %p111 = scmp.eq.s32.totalorder %s22, 0
      %p112 = por %p110, %p111
      %s114 = sadd.s32 %s113, 1
      %p117 = scmp.eq.s32.totalorder %s16, 1
      %p118 = scmp.ne.s32.totalorder %s113, %s115
      %p119 = scmp.eq.s32.totalorder %s16, 0
      %p120 = por %p118, %p119
      %p121 = scmp.ne.s32.totalorder %s113, %s115
      %p122 = scmp.eq.s32.totalorder %s21, 1
      %p123 = por %p121, %p122
      %p124 = scmp.ne.s32.totalorder %s115, %s116
      %p125 = scmp.eq.s32.totalorder %s21, 0
      %p126 = por %p124, %p125
      %p127 = scmp.ne.s32.totalorder %s115, %s116
      %p128 = scmp.eq.s32.totalorder %s22, 1
      %p129 = por %p127, %p128
      %p131 = scmp.ne.s32.totalorder %s116, %s130
      %p132 = scmp.eq.s32.totalorder %s22, 0
      %p133 = por %p131, %p132
      %s134 = ssub.s32 %s16, %s23
      %p135 = scmp.eq.s32.totalorder %s134, 0
      %s137 = sadd.s32 %s136, 1
      %s138 = scalar_select %p135, %s136, %s137
      %p141 = pneg %p135
      %p142 = scmp.eq.s32.totalorder %s16, 1
      %p143 = por %p141, %p142
      %p144 = scmp.ne.s32.totalorder %s136, %s139
      %p145 = scmp.eq.s32.totalorder %s16, 0
      %p146 = por %p144, %p145
      %p147 = scmp.ne.s32.totalorder %s136, %s139
      %p148 = scmp.eq.s32.totalorder %s21, 1
      %p149 = por %p147, %p148
      %p150 = scmp.ne.s32.totalorder %s139, %s140
      %p151 = scmp.eq.s32.totalorder %s21, 0
      %p152 = por %p150, %p151
      %p153 = scmp.ne.s32.totalorder %s139, %s140
      %p154 = scmp.eq.s32.totalorder %s22, 1
      %p155 = por %p153, %p154
      %p157 = scmp.ne.s32.totalorder %s140, %s156
      %p158 = scmp.eq.s32.totalorder %s22, 0
      %p159 = por %p157, %p158
      %p160 = scmp.le.s32.totalorder 1, %s16
      %p161 = scmp.lt.s32.totalorder %s16, 3
      %p162 = pnand %p160, %p161
      %p163 = pneg %p162
      // Predicated region
      $region9: #{tpu_custom_call.1} parent=5 // pred_check
        _
      $region10: #{tpu_custom_call.1} parent=5 // pred_check_branch
        %165 = sbr.rel (%p162) target = $region12
      $region11: #{tpu_custom_call.1} parent=5 // pred_region
        %s166 = ssub.s32 %s16, 1
        // Predicated region
        $region13: #{tpu_custom_call.1} parent=11 // pred_check
          %p167 = pneg %p63
        $region14: #{tpu_custom_call.1} parent=11 // pred_check_branch
          %169 = sbr.rel (%p167) target = $region16
        $region15: #{tpu_custom_call.1} parent=11 // pred_region
          _
        $region16: #{tpu_custom_call.1} parent=11 // pred_fallthru
          _
        // Predicated region
        $region17: #{tpu_custom_call.1} parent=11 // pred_check
          %p170 = pneg %p84
        $region18: #{tpu_custom_call.1} parent=11 // pred_check_branch
          %172 = sbr.rel (%p170) target = $region20
        $region19: #{tpu_custom_call.1} parent=11 // pred_region
          %s174 = ssub.s32 8192, 8192
          %175 = vsyncadd [#allocation3], %s174
          %s176 = sshll.u32 [#allocation2], 4
          %s177 = int_to_ptr.vmem [resolvable:$true] %s176
          %182 = dma.hbm_to_vmem [thread:$0]  %s2, 8192, %s177, [#allocation3], 128, 128, 8
        $region20: #{tpu_custom_call.1} parent=11 // pred_fallthru
          _
        // Predicated region
        $region21: #{tpu_custom_call.1} parent=11 // pred_check
          %p183 = pneg %p105
        $region22: #{tpu_custom_call.1} parent=11 // pred_check_branch
          %185 = sbr.rel (%p183) target = $region24
        $region23: #{tpu_custom_call.1} parent=11 // pred_region
          _
        $region24: #{tpu_custom_call.1} parent=11 // pred_fallthru
          _
        // Predicated region
        $region25: #{tpu_custom_call.1} parent=11 // pred_check
          %p186 = pneg %p126
        $region26: #{tpu_custom_call.1} parent=11 // pred_check_branch
          %188 = sbr.rel (%p186) target = $region28
        $region27: #{tpu_custom_call.1} parent=11 // pred_region
          %s190 = ssub.s32 4096, 4096
          %191 = vsyncadd [#allocation6], %s190
          %s192 = sshll.u32 [#allocation5], 4
          %s193 = int_to_ptr.vmem [resolvable:$true] %s192
          %198 = dma.hbm_to_vmem [thread:$0]  %s4, 4096, %s193, [#allocation6], 128, 128, 8
        $region28: #{tpu_custom_call.1} parent=11 // pred_fallthru
          _
      $region12: #{tpu_custom_call.1} parent=5 // pred_fallthru
        _
      %p199 = scmp.lt.s32.totalorder %s16, 2
      // Predicated region
      $region29: #{tpu_custom_call.1} parent=5 // pred_check
        %p200 = pneg %p199
      $region30: #{tpu_custom_call.1} parent=5 // pred_check_branch
        %202 = sbr.rel (%p200) target = $region32
      $region31: #{tpu_custom_call.1} parent=5 // pred_region
        // Predicated region
        $region33: #{tpu_custom_call.1} parent=31 // pred_check
          %p203 = pneg %p36
        $region34: #{tpu_custom_call.1} parent=31 // pred_check_branch
          %205 = sbr.rel (%p203) target = $region36
        $region35: #{tpu_custom_call.1} parent=31 // pred_region
          %s206 = smul.u32 6, %s16
          %p207 = scmp.lt.s32.totalorder %s206, 11
          %s208 = scalar_select %p207, %s206, 11
          %s209 = smul.addr %s208, 8
          %s210 = scalar_lea.vmem %s0, %s209
          %s211 = smul.u32 6, %s16
        $region36: #{tpu_custom_call.1} parent=31 // pred_fallthru
          _
      $region32: #{tpu_custom_call.1} parent=5 // pred_fallthru
        _
      %p212 = scmp.le.s32.totalorder 1, %s16
      %p213 = scmp.lt.s32.totalorder %s16, 3
      %p214 = pnand %p212, %p213
      %p215 = pneg %p214
      // Predicated region
      $region37: #{tpu_custom_call.1} parent=5 // pred_check
        _
      $region38: #{tpu_custom_call.1} parent=5 // pred_check_branch
        %217 = sbr.rel (%p214) target = $region40
      $region39: #{tpu_custom_call.1} parent=5 // pred_region
        %s218 = ssub.s32 %s16, 1
        // Predicated region
        $region41: #{tpu_custom_call.1} parent=39 // pred_check
          %p219 = pneg %p84
        $region42: #{tpu_custom_call.1} parent=39 // pred_check_branch
          %221 = sbr.rel (%p219) target = $region44
        $region43: #{tpu_custom_call.1} parent=39 // pred_region
          %222 = dma.done [#allocation3], 8192
        $region44: #{tpu_custom_call.1} parent=39 // pred_fallthru
          _
        // Predicated region
        $region45: #{tpu_custom_call.1} parent=39 // pred_check
          %p223 = pneg %p126
        $region46: #{tpu_custom_call.1} parent=39 // pred_check_branch
          %225 = sbr.rel (%p223) target = $region48
        $region47: #{tpu_custom_call.1} parent=39 // pred_region
          %226 = dma.done [#allocation6], 4096
        $region48: #{tpu_custom_call.1} parent=39 // pred_fallthru
          _
        %s227 = smul.u32 6, %s21
        %p228 = scmp.lt.s32.totalorder %s227, 11
        %s229 = scalar_select %p228, %s227, 11
        %s230 = smul.addr %s229, 8
        %s231 = scalar_lea.vmem %s0, %s230
        %p232 = pneg %p42
        %p233 = pneg %p39
        %p234 = pneg %p63
        %p235 = pneg %p60
        %p236 = pneg %p84
        %p237 = pneg %p81
        %p238 = pneg %p105
        %p239 = pneg %p102
        %p240 = pneg %p126
        %p241 = pneg %p123
        %p242 = pneg %p152
        %p243 = pneg %p149
        %s244 = sand.u32 %s139, 1
        %s245 = scalar_lea.sflag [#allocation4], %s244
        %s246 = sand.u32 %s139, 1
        %s247 = smul.addr %s246, 48
        %s248 = scalar_lea.vmem [#allocation7], %s247
        %s249 = smul.u32 6, %s21
        %p250 = scmp.lt.s32.totalorder %s249, 11
        %s251 = scalar_select %p250, %s249, 11
        %s252 = smul.addr %s251, 8
        %s253 = scalar_lea.vmem %s0, %s252
        %s254 = smul.u32 6, %s21
        %s255 = smul.u32 6, %s21
        %v256 = vld [vmem:[%s253] sm:$0xff]
        %v257 = vld [vmem:[%s253 + $0x8] sm:$0xff]
        %v258 = vld [vmem:[%s253 + $0x10] sm:$0xff]
        %v259 = vld [vmem:[%s253 + $0x18] sm:$0xff]
        %v260 = vld [vmem:[%s253 + $0x20] sm:$0xff]
        %v261 = vld [vmem:[%s253 + $0x28] sm:$0xff]
        %v262 = vld [vmem:[%s1] sm:$0x1]
        %v263 = vld [vmem:[%s1 + $0x1] sm:$0x1]
        %265 = vset.pattern.permute.xlu0 0
        %266 = vperm.xlu0 %265, %v256
        %v267 = vpop.permute.xlu0 %266
        %270 = vset.pattern.permute.xlu0 0
        %271 = vperm.xlu0 %270, %v257
        %v272 = vpop.permute.xlu0 %271
        %275 = vset.pattern.permute.xlu0 0
        %276 = vperm.xlu0 %275, %v258
        %v277 = vpop.permute.xlu0 %276
        %280 = vset.pattern.permute.xlu0 0
        %281 = vperm.xlu0 %280, %v259
        %v282 = vpop.permute.xlu0 %281
        %285 = vset.pattern.permute.xlu0 0
        %286 = vperm.xlu0 %285, %v260
        %v287 = vpop.permute.xlu0 %286
        %290 = vset.pattern.permute.xlu0 0
        %291 = vperm.xlu0 %290, %v261
        %v292 = vpop.permute.xlu0 %291
        %v294 = vlaneseq
        %v295 = vshrl.u32 %v294, 7
        %v296 = vsub.s32 0, %v295
        %v297 = vrot.slane %v262, %v296
        %v298 = vmul.f32 %v267, %v297
        %v299 = vmul.f32 %v272, %v297
        %v300 = vmul.f32 %v277, %v297
        %v301 = vmul.f32 %v282, %v297
        %v302 = vmul.f32 %v287, %v297
        %v303 = vmul.f32 %v292, %v297
        %v304 = vlaneseq
        %v305 = vshrl.u32 %v304, 7
        %v306 = vsub.s32 0, %v305
        %v307 = vrot.slane %v263, %v306
        %v308 = vadd.f32 %v298, %v307
        %v309 = vadd.f32 %v299, %v307
        %v310 = vadd.f32 %v300, %v307
        %v311 = vadd.f32 %v301, %v307
        %v312 = vadd.f32 %v302, %v307
        %v313 = vadd.f32 %v303, %v307
        %v314 = vand.u32 2147483647, %v308
        %vm315 = vcmp.le.f32.partialorder %v314, 0.7853982
        %vm316 = vcmp.lt.s32.totalorder %v308, 0
        %v317 = vand.u32 %v308, 2139095040
        %v318 = vshrl.u32 %v317, 23
        %v319 = vsub.s32 %v318, 127
        %v320 = vand.u32 2147483647, %v308
        %v321 = vand.u32 %v320, 8388607
        %v322 = vor.u32 %v321, 8388608
        %v323 = vsub.s32 0, %v322
        %v324 = vadd.s32 %v319, 1
        %vm325 = vcmp.gt.s32.totalorder %v324, 0
        %v326 = vsel %vm325, %v324, 0
        %v327 = vshrl.u32 %v326, 5
        %v328 = vand.u32 %v326, 31
        %v329 = vsub.s32 32, %v328
        %v330 = vshrl.u32 683565275, %v329
        %v331 = vshll.u32 683565275, %v328
        %v332 = vshrl.u32 2475754826, %v329
        %v333 = vor.u32 %v331, %v332
        %v334 = vshll.u32 2475754826, %v328
        %v335 = vshrl.u32 2131351028, %v329
        %v336 = vor.u32 %v334, %v335
        %v337 = vshll.u32 2131351028, %v328
        %v338 = vshrl.u32 2102212464, %v329
        %v339 = vor.u32 %v337, %v338
        %v340 = vshll.u32 2102212464, %v328
        %v341 = vshrl.u32 920167782, %v329
        %v342 = vor.u32 %v340, %v341
        %v343 = vshll.u32 920167782, %v328
        %v344 = vshrl.u32 1326507024, %v329
        %v345 = vor.u32 %v343, %v344
        %vm346 = vcmp.lt.s32.totalorder %v327, 1
        %vm347 = vcmp.lt.s32.totalorder %v327, 2
        %vm348 = vcmp.lt.s32.totalorder %v327, 3
        %vm349 = vcmp.lt.s32.totalorder %v327, 4
        %v350 = vsel %vm346, %v330, %v333
        %v351 = vsel %vm349, %v339, 2102212464
        %v352 = vsel %vm348, %v336, %v351
        %v353 = vsel %vm347, %v350, %v352
        %v354 = vsel %vm346, %v333, %v336
        %v355 = vsel %vm349, %v342, 920167782
        %v356 = vsel %vm348, %v339, %v355
        %v357 = vsel %vm347, %v354, %v356
        %v358 = vsel %vm346, %v336, %v339
        %v359 = vsel %vm349, %v345, 1326507024
        %v360 = vsel %vm348, %v342, %v359
        %v361 = vsel %vm347, %v358, %v360
        %v362 = vshll.u32 %v322, 8
        %v363 = vmul.u32.u64.compose %v362, %v361
        %v364 = vextract.low.u32 %v363
        %v365 = vextract.high.u32 %v363
        %v366 = vmul.u32.u64.compose %v362, %v357
        %v367 = vextract.low.u32 %v366
        %v368 = vextract.high.u32 %v366
        %v369 = vmul.u32 %v362, %v353
        %v370 = vadd.s32 %v365, %v367
        %vm371 = vc.u32 %v365, %v367
        %v372 = vadd.s32 %v368, 1
        %v373 = vsel %vm371, %v372, %v368
        %v374 = vadd.s32 %v369, %v373
        %v375 = vadd.s32 %v374, 536870912
        %v376 = vshrl.u32 %v375, 30
        %v377 = vshll.u32 %v376, 30
        %v378 = vsub.s32 %v374, %v377
        %vm379 = vcmp.lt.s32.totalorder %v378, 0
        %v380 = vsub.s32 0, %v378
        %v381 = vsel %vm379, %v380, %v378
        %v382 = vclz %v381
        %v383 = vsub.s32 %v382, 2
        %vm384 = vcmp.gt.s32.totalorder 0, %v383
        %v385 = vsel %vm384, 0, %v383
        %v386 = vsub.s32 32, %v385
        %v387 = vshll.u32 %v378, %v385
        %v388 = vshrl.u32 %v370, %v386
        %v389 = vor.u32 %v387, %v388
        %v390 = vsub.s32 4294967266, %v385
        %v391 = vadd.s32 %v390, 127
        %v392 = vshll.u32 %v391, 23
        %v393 = vor.u32 4788187, %v392
        %v394 = vand.u32 2147483647, %v393
        %v396 = vcvt.s32.f32 %v389
        %v397 = vmul.f32 %v396, %v394
        %v398 = vxor.u32 %v397, 2147483648
        %v399 = vsel %vm316, %v398, %v397
        %v400 = vsub.s32 4, %v376
        %v401 = vsel %vm316, %v400, %v376
        %v402 = vsel %vm315, %v308, %v399
        %v403 = vsel %vm315, 0, %v401
        %v404 = vcosq.f32.pop %v402
        %v405 = vsinq.f32.pop %v402
        %vm406 = vweird.f32 %v308
        %v407 = vadd.s32 %v403, 3
        %v408 = vand.u32 %v407, 3
        %vm409 = vcmp.lt.s32.totalorder %v408, 2
        %vm410 = vcmp.eq.s32.totalorder %v408, 0
        %v411 = vxor.u32 %v405, 2147483648
        %v412 = vsel %vm410, %v404, %v411
        %vm413 = vcmp.eq.s32.totalorder %v408, 2
        %v414 = vxor.u32 %v404, 2147483648
        %v415 = vsel %vm413, %v414, %v405
        %v416 = vsel %vm409, %v412, %v415
        %v417 = vsel %vm406, nan, %v416
        %v418 = vand.u32 2147483647, %v309
        %vm419 = vcmp.le.f32.partialorder %v418, 0.7853982
        %vm420 = vcmp.lt.s32.totalorder %v309, 0
        %v421 = vand.u32 %v309, 2139095040
        %v422 = vshrl.u32 %v421, 23
        %v423 = vsub.s32 %v422, 127
        %v424 = vand.u32 2147483647, %v309
        %v425 = vand.u32 %v424, 8388607
        %v426 = vor.u32 %v425, 8388608
        %v427 = vsub.s32 0, %v426
        %v428 = vadd.s32 %v423, 1
        %vm429 = vcmp.gt.s32.totalorder %v428, 0
        %v430 = vsel %vm429, %v428, 0
        %v431 = vshrl.u32 %v430, 5
        %v432 = vand.u32 %v430, 31
        %v433 = vsub.s32 32, %v432
        %v434 = vshrl.u32 683565275, %v433
        %v435 = vshll.u32 683565275, %v432
        %v436 = vshrl.u32 2475754826, %v433
        %v437 = vor.u32 %v435, %v436
        %v438 = vshll.u32 2475754826, %v432
        %v439 = vshrl.u32 2131351028, %v433
        %v440 = vor.u32 %v438, %v439
        %v441 = vshll.u32 2131351028, %v432
        %v442 = vshrl.u32 2102212464, %v433
        %v443 = vor.u32 %v441, %v442
        %v444 = vshll.u32 2102212464, %v432
        %v445 = vshrl.u32 920167782, %v433
        %v446 = vor.u32 %v444, %v445
        %v447 = vshll.u32 920167782, %v432
        %v448 = vshrl.u32 1326507024, %v433
        %v449 = vor.u32 %v447, %v448
        %vm450 = vcmp.lt.s32.totalorder %v431, 1
        %vm451 = vcmp.lt.s32.totalorder %v431, 2
        %vm452 = vcmp.lt.s32.totalorder %v431, 3
        %vm453 = vcmp.lt.s32.totalorder %v431, 4
        %v454 = vsel %vm450, %v434, %v437
        %v455 = vsel %vm453, %v443, 2102212464
        %v456 = vsel %vm452, %v440, %v455
        %v457 = vsel %vm451, %v454, %v456
        %v458 = vsel %vm450, %v437, %v440
        %v459 = vsel %vm453, %v446, 920167782
        %v460 = vsel %vm452, %v443, %v459
        %v461 = vsel %vm451, %v458, %v460
        %v462 = vsel %vm450, %v440, %v443
        %v463 = vsel %vm453, %v449, 1326507024
        %v464 = vsel %vm452, %v446, %v463
        %v465 = vsel %vm451, %v462, %v464
        %v466 = vshll.u32 %v426, 8
        %v467 = vmul.u32.u64.compose %v466, %v465
        %v468 = vextract.low.u32 %v467
        %v469 = vextract.high.u32 %v467
        %v470 = vmul.u32.u64.compose %v466, %v461
        %v471 = vextract.low.u32 %v470
        %v472 = vextract.high.u32 %v470
        %v473 = vmul.u32 %v466, %v457
        %v474 = vadd.s32 %v469, %v471
        %vm475 = vc.u32 %v469, %v471
        %v476 = vadd.s32 %v472, 1
        %v477 = vsel %vm475, %v476, %v472
        %v478 = vadd.s32 %v473, %v477
        %v479 = vadd.s32 %v478, 536870912
        %v480 = vshrl.u32 %v479, 30
        %v481 = vshll.u32 %v480, 30
        %v482 = vsub.s32 %v478, %v481
        %vm483 = vcmp.lt.s32.totalorder %v482, 0
        %v484 = vsub.s32 0, %v482
        %v485 = vsel %vm483, %v484, %v482
        %v486 = vclz %v485
        %v487 = vsub.s32 %v486, 2
        %vm488 = vcmp.gt.s32.totalorder 0, %v487
        %v489 = vsel %vm488, 0, %v487
        %v490 = vsub.s32 32, %v489
        %v491 = vshll.u32 %v482, %v489
        %v492 = vshrl.u32 %v474, %v490
        %v493 = vor.u32 %v491, %v492
        %v494 = vsub.s32 4294967266, %v489
        %v495 = vadd.s32 %v494, 127
        %v496 = vshll.u32 %v495, 23
        %v497 = vor.u32 4788187, %v496
        %v498 = vand.u32 2147483647, %v497
        %v500 = vcvt.s32.f32 %v493
        %v501 = vmul.f32 %v500, %v498
        %v502 = vxor.u32 %v501, 2147483648
        %v503 = vsel %vm420, %v502, %v501
        %v504 = vsub.s32 4, %v480
        %v505 = vsel %vm420, %v504, %v480
        %v506 = vsel %vm419, %v309, %v503
        %v507 = vsel %vm419, 0, %v505
        %v508 = vcosq.f32.pop %v506
        %v509 = vsinq.f32.pop %v506
        %vm510 = vweird.f32 %v309
        %v511 = vadd.s32 %v507, 3
        %v512 = vand.u32 %v511, 3
        %vm513 = vcmp.lt.s32.totalorder %v512, 2
        %vm514 = vcmp.eq.s32.totalorder %v512, 0
        %v515 = vxor.u32 %v509, 2147483648
        %v516 = vsel %vm514, %v508, %v515
        %vm517 = vcmp.eq.s32.totalorder %v512, 2
        %v518 = vxor.u32 %v508, 2147483648
        %v519 = vsel %vm517, %v518, %v509
        %v520 = vsel %vm513, %v516, %v519
        %v521 = vsel %vm510, nan, %v520
        %v522 = vand.u32 2147483647, %v310
        %vm523 = vcmp.le.f32.partialorder %v522, 0.7853982
        %vm524 = vcmp.lt.s32.totalorder %v310, 0
        %v525 = vand.u32 %v310, 2139095040
        %v526 = vshrl.u32 %v525, 23
        %v527 = vsub.s32 %v526, 127
        %v528 = vand.u32 2147483647, %v310
        %v529 = vand.u32 %v528, 8388607
        %v530 = vor.u32 %v529, 8388608
        %v531 = vsub.s32 0, %v530
        %v532 = vadd.s32 %v527, 1
        %vm533 = vcmp.gt.s32.totalorder %v532, 0
        %v534 = vsel %vm533, %v532, 0
        %v535 = vshrl.u32 %v534, 5
        %v536 = vand.u32 %v534, 31
        %v537 = vsub.s32 32, %v536
        %v538 = vshrl.u32 683565275, %v537
        %v539 = vshll.u32 683565275, %v536
        %v540 = vshrl.u32 2475754826, %v537
        %v541 = vor.u32 %v539, %v540
        %v542 = vshll.u32 2475754826, %v536
        %v543 = vshrl.u32 2131351028, %v537
        %v544 = vor.u32 %v542, %v543
        %v545 = vshll.u32 2131351028, %v536
        %v546 = vshrl.u32 2102212464, %v537
        %v547 = vor.u32 %v545, %v546
        %v548 = vshll.u32 2102212464, %v536
        %v549 = vshrl.u32 920167782, %v537
        %v550 = vor.u32 %v548, %v549
        %v551 = vshll.u32 920167782, %v536
        %v552 = vshrl.u32 1326507024, %v537
        %v553 = vor.u32 %v551, %v552
        %vm554 = vcmp.lt.s32.totalorder %v535, 1
        %vm555 = vcmp.lt.s32.totalorder %v535, 2
        %vm556 = vcmp.lt.s32.totalorder %v535, 3
        %vm557 = vcmp.lt.s32.totalorder %v535, 4
        %v558 = vsel %vm554, %v538, %v541
        %v559 = vsel %vm557, %v547, 2102212464
        %v560 = vsel %vm556, %v544, %v559
        %v561 = vsel %vm555, %v558, %v560
        %v562 = vsel %vm554, %v541, %v544
        %v563 = vsel %vm557, %v550, 920167782
        %v564 = vsel %vm556, %v547, %v563
        %v565 = vsel %vm555, %v562, %v564
        %v566 = vsel %vm554, %v544, %v547
        %v567 = vsel %vm557, %v553, 1326507024
        %v568 = vsel %vm556, %v550, %v567
        %v569 = vsel %vm555, %v566, %v568
        %v570 = vshll.u32 %v530, 8
        %v571 = vmul.u32.u64.compose %v570, %v569
        %v572 = vextract.low.u32 %v571
        %v573 = vextract.high.u32 %v571
        %v574 = vmul.u32.u64.compose %v570, %v565
        %v575 = vextract.low.u32 %v574
        %v576 = vextract.high.u32 %v574
        %v577 = vmul.u32 %v570, %v561
        %v578 = vadd.s32 %v573, %v575
        %vm579 = vc.u32 %v573, %v575
        %v580 = vadd.s32 %v576, 1
        %v581 = vsel %vm579, %v580, %v576
        %v582 = vadd.s32 %v577, %v581
        %v583 = vadd.s32 %v582, 536870912
        %v584 = vshrl.u32 %v583, 30
        %v585 = vshll.u32 %v584, 30
        %v586 = vsub.s32 %v582, %v585
        %vm587 = vcmp.lt.s32.totalorder %v586, 0
        %v588 = vsub.s32 0, %v586
        %v589 = vsel %vm587, %v588, %v586
        %v590 = vclz %v589
        %v591 = vsub.s32 %v590, 2
        %vm592 = vcmp.gt.s32.totalorder 0, %v591
        %v593 = vsel %vm592, 0, %v591
        %v594 = vsub.s32 32, %v593
        %v595 = vshll.u32 %v586, %v593
        %v596 = vshrl.u32 %v578, %v594
        %v597 = vor.u32 %v595, %v596
        %v598 = vsub.s32 4294967266, %v593
        %v599 = vadd.s32 %v598, 127
        %v600 = vshll.u32 %v599, 23
        %v601 = vor.u32 4788187, %v600
        %v602 = vand.u32 2147483647, %v601
        %v604 = vcvt.s32.f32 %v597
        %v605 = vmul.f32 %v604, %v602
        %v606 = vxor.u32 %v605, 2147483648
        %v607 = vsel %vm524, %v606, %v605
        %v608 = vsub.s32 4, %v584
        %v609 = vsel %vm524, %v608, %v584
        %v610 = vsel %vm523, %v310, %v607
        %v611 = vsel %vm523, 0, %v609
        %v612 = vcosq.f32.pop %v610
        %v613 = vsinq.f32.pop %v610
        %vm614 = vweird.f32 %v310
        %v615 = vadd.s32 %v611, 3
        %v616 = vand.u32 %v615, 3
        %vm617 = vcmp.lt.s32.totalorder %v616, 2
        %vm618 = vcmp.eq.s32.totalorder %v616, 0
        %v619 = vxor.u32 %v613, 2147483648
        %v620 = vsel %vm618, %v612, %v619
        %vm621 = vcmp.eq.s32.totalorder %v616, 2
        %v622 = vxor.u32 %v612, 2147483648
        %v623 = vsel %vm621, %v622, %v613
        %v624 = vsel %vm617, %v620, %v623
        %v625 = vsel %vm614, nan, %v624
        %v626 = vand.u32 2147483647, %v311
        %vm627 = vcmp.le.f32.partialorder %v626, 0.7853982
        %vm628 = vcmp.lt.s32.totalorder %v311, 0
        %v629 = vand.u32 %v311, 2139095040
        %v630 = vshrl.u32 %v629, 23
        %v631 = vsub.s32 %v630, 127
        %v632 = vand.u32 2147483647, %v311
        %v633 = vand.u32 %v632, 8388607
        %v634 = vor.u32 %v633, 8388608
        %v635 = vsub.s32 0, %v634
        %v636 = vadd.s32 %v631, 1
        %vm637 = vcmp.gt.s32.totalorder %v636, 0
        %v638 = vsel %vm637, %v636, 0
        %v639 = vshrl.u32 %v638, 5
        %v640 = vand.u32 %v638, 31
        %v641 = vsub.s32 32, %v640
        %v642 = vshrl.u32 683565275, %v641
        %v643 = vshll.u32 683565275, %v640
        %v644 = vshrl.u32 2475754826, %v641
        %v645 = vor.u32 %v643, %v644
        %v646 = vshll.u32 2475754826, %v640
        %v647 = vshrl.u32 2131351028, %v641
        %v648 = vor.u32 %v646, %v647
        %v649 = vshll.u32 2131351028, %v640
        %v650 = vshrl.u32 2102212464, %v641
        %v651 = vor.u32 %v649, %v650
        %v652 = vshll.u32 2102212464, %v640
        %v653 = vshrl.u32 920167782, %v641
        %v654 = vor.u32 %v652, %v653
        %v655 = vshll.u32 920167782, %v640
        %v656 = vshrl.u32 1326507024, %v641
        %v657 = vor.u32 %v655, %v656
        %vm658 = vcmp.lt.s32.totalorder %v639, 1
        %vm659 = vcmp.lt.s32.totalorder %v639, 2
        %vm660 = vcmp.lt.s32.totalorder %v639, 3
        %vm661 = vcmp.lt.s32.totalorder %v639, 4
        %v662 = vsel %vm658, %v642, %v645
        %v663 = vsel %vm661, %v651, 2102212464
        %v664 = vsel %vm660, %v648, %v663
        %v665 = vsel %vm659, %v662, %v664
        %v666 = vsel %vm658, %v645, %v648
        %v667 = vsel %vm661, %v654, 920167782
        %v668 = vsel %vm660, %v651, %v667
        %v669 = vsel %vm659, %v666, %v668
        %v670 = vsel %vm658, %v648, %v651
        %v671 = vsel %vm661, %v657, 1326507024
        %v672 = vsel %vm660, %v654, %v671
        %v673 = vsel %vm659, %v670, %v672
        %v674 = vshll.u32 %v634, 8
        %v675 = vmul.u32.u64.compose %v674, %v673
        %v676 = vextract.low.u32 %v675
        %v677 = vextract.high.u32 %v675
        %v678 = vmul.u32.u64.compose %v674, %v669
        %v679 = vextract.low.u32 %v678
        %v680 = vextract.high.u32 %v678
        %v681 = vmul.u32 %v674, %v665
        %v682 = vadd.s32 %v677, %v679
        %vm683 = vc.u32 %v677, %v679
        %v684 = vadd.s32 %v680, 1
        %v685 = vsel %vm683, %v684, %v680
        %v686 = vadd.s32 %v681, %v685
        %v687 = vadd.s32 %v686, 536870912
        %v688 = vshrl.u32 %v687, 30
        %v689 = vshll.u32 %v688, 30
        %v690 = vsub.s32 %v686, %v689
        %vm691 = vcmp.lt.s32.totalorder %v690, 0
        %v692 = vsub.s32 0, %v690
        %v693 = vsel %vm691, %v692, %v690
        %v694 = vclz %v693
        %v695 = vsub.s32 %v694, 2
        %vm696 = vcmp.gt.s32.totalorder 0, %v695
        %v697 = vsel %vm696, 0, %v695
        %v698 = vsub.s32 32, %v697
        %v699 = vshll.u32 %v690, %v697
        %v700 = vshrl.u32 %v682, %v698
        %v701 = vor.u32 %v699, %v700
        %v702 = vsub.s32 4294967266, %v697
        %v703 = vadd.s32 %v702, 127
        %v704 = vshll.u32 %v703, 23
        %v705 = vor.u32 4788187, %v704
        %v706 = vand.u32 2147483647, %v705
        %v708 = vcvt.s32.f32 %v701
        %v709 = vmul.f32 %v708, %v706
        %v710 = vxor.u32 %v709, 2147483648
        %v711 = vsel %vm628, %v710, %v709
        %v712 = vsub.s32 4, %v688
        %v713 = vsel %vm628, %v712, %v688
        %v714 = vsel %vm627, %v311, %v711
        %v715 = vsel %vm627, 0, %v713
        %v716 = vcosq.f32.pop %v714
        %v717 = vsinq.f32.pop %v714
        %vm718 = vweird.f32 %v311
        %v719 = vadd.s32 %v715, 3
        %v720 = vand.u32 %v719, 3
        %vm721 = vcmp.lt.s32.totalorder %v720, 2
        %vm722 = vcmp.eq.s32.totalorder %v720, 0
        %v723 = vxor.u32 %v717, 2147483648
        %v724 = vsel %vm722, %v716, %v723
        %vm725 = vcmp.eq.s32.totalorder %v720, 2
        %v726 = vxor.u32 %v716, 2147483648
        %v727 = vsel %vm725, %v726, %v717
        %v728 = vsel %vm721, %v724, %v727
        %v729 = vsel %vm718, nan, %v728
        %v730 = vand.u32 2147483647, %v312
        %vm731 = vcmp.le.f32.partialorder %v730, 0.7853982
        %vm732 = vcmp.lt.s32.totalorder %v312, 0
        %v733 = vand.u32 %v312, 2139095040
        %v734 = vshrl.u32 %v733, 23
        %v735 = vsub.s32 %v734, 127
        %v736 = vand.u32 2147483647, %v312
        %v737 = vand.u32 %v736, 8388607
        %v738 = vor.u32 %v737, 8388608
        %v739 = vsub.s32 0, %v738
        %v740 = vadd.s32 %v735, 1
        %vm741 = vcmp.gt.s32.totalorder %v740, 0
        %v742 = vsel %vm741, %v740, 0
        %v743 = vshrl.u32 %v742, 5
        %v744 = vand.u32 %v742, 31
        %v745 = vsub.s32 32, %v744
        %v746 = vshrl.u32 683565275, %v745
        %v747 = vshll.u32 683565275, %v744
        %v748 = vshrl.u32 2475754826, %v745
        %v749 = vor.u32 %v747, %v748
        %v750 = vshll.u32 2475754826, %v744
        %v751 = vshrl.u32 2131351028, %v745
        %v752 = vor.u32 %v750, %v751
        %v753 = vshll.u32 2131351028, %v744
        %v754 = vshrl.u32 2102212464, %v745
        %v755 = vor.u32 %v753, %v754
        %v756 = vshll.u32 2102212464, %v744
        %v757 = vshrl.u32 920167782, %v745
        %v758 = vor.u32 %v756, %v757
        %v759 = vshll.u32 920167782, %v744
        %v760 = vshrl.u32 1326507024, %v745
        %v761 = vor.u32 %v759, %v760
        %vm762 = vcmp.lt.s32.totalorder %v743, 1
        %vm763 = vcmp.lt.s32.totalorder %v743, 2
        %vm764 = vcmp.lt.s32.totalorder %v743, 3
        %vm765 = vcmp.lt.s32.totalorder %v743, 4
        %v766 = vsel %vm762, %v746, %v749
        %v767 = vsel %vm765, %v755, 2102212464
        %v768 = vsel %vm764, %v752, %v767
        %v769 = vsel %vm763, %v766, %v768
        %v770 = vsel %vm762, %v749, %v752
        %v771 = vsel %vm765, %v758, 920167782
        %v772 = vsel %vm764, %v755, %v771
        %v773 = vsel %vm763, %v770, %v772
        %v774 = vsel %vm762, %v752, %v755
        %v775 = vsel %vm765, %v761, 1326507024
        %v776 = vsel %vm764, %v758, %v775
        %v777 = vsel %vm763, %v774, %v776
        %v778 = vshll.u32 %v738, 8
        %v779 = vmul.u32.u64.compose %v778, %v777
        %v780 = vextract.low.u32 %v779
        %v781 = vextract.high.u32 %v779
        %v782 = vmul.u32.u64.compose %v778, %v773
        %v783 = vextract.low.u32 %v782
        %v784 = vextract.high.u32 %v782
        %v785 = vmul.u32 %v778, %v769
        %v786 = vadd.s32 %v781, %v783
        %vm787 = vc.u32 %v781, %v783
        %v788 = vadd.s32 %v784, 1
        %v789 = vsel %vm787, %v788, %v784
        %v790 = vadd.s32 %v785, %v789
        %v791 = vadd.s32 %v790, 536870912
        %v792 = vshrl.u32 %v791, 30
        %v793 = vshll.u32 %v792, 30
        %v794 = vsub.s32 %v790, %v793
        %vm795 = vcmp.lt.s32.totalorder %v794, 0
        %v796 = vsub.s32 0, %v794
        %v797 = vsel %vm795, %v796, %v794
        %v798 = vclz %v797
        %v799 = vsub.s32 %v798, 2
        %vm800 = vcmp.gt.s32.totalorder 0, %v799
        %v801 = vsel %vm800, 0, %v799
        %v802 = vsub.s32 32, %v801
        %v803 = vshll.u32 %v794, %v801
        %v804 = vshrl.u32 %v786, %v802
        %v805 = vor.u32 %v803, %v804
        %v806 = vsub.s32 4294967266, %v801
        %v807 = vadd.s32 %v806, 127
        %v808 = vshll.u32 %v807, 23
        %v809 = vor.u32 4788187, %v808
        %v810 = vand.u32 2147483647, %v809
        %v812 = vcvt.s32.f32 %v805
        %v813 = vmul.f32 %v812, %v810
        %v814 = vxor.u32 %v813, 2147483648
        %v815 = vsel %vm732, %v814, %v813
        %v816 = vsub.s32 4, %v792
        %v817 = vsel %vm732, %v816, %v792
        %v818 = vsel %vm731, %v312, %v815
        %v819 = vsel %vm731, 0, %v817
        %v820 = vcosq.f32.pop %v818
        %v821 = vsinq.f32.pop %v818
        %vm822 = vweird.f32 %v312
        %v823 = vadd.s32 %v819, 3
        %v824 = vand.u32 %v823, 3
        %vm825 = vcmp.lt.s32.totalorder %v824, 2
        %vm826 = vcmp.eq.s32.totalorder %v824, 0
        %v827 = vxor.u32 %v821, 2147483648
        %v828 = vsel %vm826, %v820, %v827
        %vm829 = vcmp.eq.s32.totalorder %v824, 2
        %v830 = vxor.u32 %v820, 2147483648
        %v831 = vsel %vm829, %v830, %v821
        %v832 = vsel %vm825, %v828, %v831
        %v833 = vsel %vm822, nan, %v832
        %v834 = vand.u32 2147483647, %v313
        %vm835 = vcmp.le.f32.partialorder %v834, 0.7853982
        %vm836 = vcmp.lt.s32.totalorder %v313, 0
        %v837 = vand.u32 %v313, 2139095040
        %v838 = vshrl.u32 %v837, 23
        %v839 = vsub.s32 %v838, 127
        %v840 = vand.u32 2147483647, %v313
        %v841 = vand.u32 %v840, 8388607
        %v842 = vor.u32 %v841, 8388608
        %v843 = vsub.s32 0, %v842
        %v844 = vadd.s32 %v839, 1
        %vm845 = vcmp.gt.s32.totalorder %v844, 0
        %v846 = vsel %vm845, %v844, 0
        %v847 = vshrl.u32 %v846, 5
        %v848 = vand.u32 %v846, 31
        %v849 = vsub.s32 32, %v848
        %v850 = vshrl.u32 683565275, %v849
        %v851 = vshll.u32 683565275, %v848
        %v852 = vshrl.u32 2475754826, %v849
        %v853 = vor.u32 %v851, %v852
        %v854 = vshll.u32 2475754826, %v848
        %v855 = vshrl.u32 2131351028, %v849
        %v856 = vor.u32 %v854, %v855
        %v857 = vshll.u32 2131351028, %v848
        %v858 = vshrl.u32 2102212464, %v849
        %v859 = vor.u32 %v857, %v858
        %v860 = vshll.u32 2102212464, %v848
        %v861 = vshrl.u32 920167782, %v849
        %v862 = vor.u32 %v860, %v861
        %v863 = vshll.u32 920167782, %v848
        %v864 = vshrl.u32 1326507024, %v849
        %v865 = vor.u32 %v863, %v864
        %vm866 = vcmp.lt.s32.totalorder %v847, 1
        %vm867 = vcmp.lt.s32.totalorder %v847, 2
        %vm868 = vcmp.lt.s32.totalorder %v847, 3
        %vm869 = vcmp.lt.s32.totalorder %v847, 4
        %v870 = vsel %vm866, %v850, %v853
        %v871 = vsel %vm869, %v859, 2102212464
        %v872 = vsel %vm868, %v856, %v871
        %v873 = vsel %vm867, %v870, %v872
        %v874 = vsel %vm866, %v853, %v856
        %v875 = vsel %vm869, %v862, 920167782
        %v876 = vsel %vm868, %v859, %v875
        %v877 = vsel %vm867, %v874, %v876
        %v878 = vsel %vm866, %v856, %v859
        %v879 = vsel %vm869, %v865, 1326507024
        %v880 = vsel %vm868, %v862, %v879
        %v881 = vsel %vm867, %v878, %v880
        %v882 = vshll.u32 %v842, 8
        %v883 = vmul.u32.u64.compose %v882, %v881
        %v884 = vextract.low.u32 %v883
        %v885 = vextract.high.u32 %v883
        %v886 = vmul.u32.u64.compose %v882, %v877
        %v887 = vextract.low.u32 %v886
        %v888 = vextract.high.u32 %v886
        %v889 = vmul.u32 %v882, %v873
        %v890 = vadd.s32 %v885, %v887
        %vm891 = vc.u32 %v885, %v887
        %v892 = vadd.s32 %v888, 1
        %v893 = vsel %vm891, %v892, %v888
        %v894 = vadd.s32 %v889, %v893
        %v895 = vadd.s32 %v894, 536870912
        %v896 = vshrl.u32 %v895, 30
        %v897 = vshll.u32 %v896, 30
        %v898 = vsub.s32 %v894, %v897
        %vm899 = vcmp.lt.s32.totalorder %v898, 0
        %v900 = vsub.s32 0, %v898
        %v901 = vsel %vm899, %v900, %v898
        %v902 = vclz %v901
        %v903 = vsub.s32 %v902, 2
        %vm904 = vcmp.gt.s32.totalorder 0, %v903
        %v905 = vsel %vm904, 0, %v903
        %v906 = vsub.s32 32, %v905
        %v907 = vshll.u32 %v898, %v905
        %v908 = vshrl.u32 %v890, %v906
        %v909 = vor.u32 %v907, %v908
        %v910 = vsub.s32 4294967266, %v905
        %v911 = vadd.s32 %v910, 127
        %v912 = vshll.u32 %v911, 23
        %v913 = vor.u32 4788187, %v912
        %v914 = vand.u32 2147483647, %v913
        %v916 = vcvt.s32.f32 %v909
        %v917 = vmul.f32 %v916, %v914
        %v918 = vxor.u32 %v917, 2147483648
        %v919 = vsel %vm836, %v918, %v917
        %v920 = vsub.s32 4, %v896
        %v921 = vsel %vm836, %v920, %v896
        %v922 = vsel %vm835, %v313, %v919
        %v923 = vsel %vm835, 0, %v921
        %v924 = vcosq.f32.pop %v922
        %v925 = vsinq.f32.pop %v922
        %vm926 = vweird.f32 %v313
        %v927 = vadd.s32 %v923, 3
        %v928 = vand.u32 %v927, 3
        %vm929 = vcmp.lt.s32.totalorder %v928, 2
        %vm930 = vcmp.eq.s32.totalorder %v928, 0
        %v931 = vxor.u32 %v925, 2147483648
        %v932 = vsel %vm930, %v924, %v931
        %vm933 = vcmp.eq.s32.totalorder %v928, 2
        %v934 = vxor.u32 %v924, 2147483648
        %v935 = vsel %vm933, %v934, %v925
        %v936 = vsel %vm929, %v932, %v935
        %v937 = vsel %vm926, nan, %v936
        %v938 = vpack.c.bf16 %v521, %v417
        %v939 = vpack.c.bf16 %v729, %v625
        %v940 = vpack.c.bf16 %v937, %v833
        %941 = vset.pattern.permute.xlu0 1
        %942 = vperm.xlu0 %941, %v256
        %v943 = vpop.permute.xlu0 %942
        %945 = vset.pattern.permute.xlu0 1
        %946 = vperm.xlu0 %945, %v257
        %v947 = vpop.permute.xlu0 %946
        %949 = vset.pattern.permute.xlu0 1
        %950 = vperm.xlu0 %949, %v258
        %v951 = vpop.permute.xlu0 %950
        %953 = vset.pattern.permute.xlu0 1
        %954 = vperm.xlu0 %953, %v259
        %v955 = vpop.permute.xlu0 %954
        %957 = vset.pattern.permute.xlu0 1
        %958 = vperm.xlu0 %957, %v260
        %v959 = vpop.permute.xlu0 %958
        %961 = vset.pattern.permute.xlu0 1
        %962 = vperm.xlu0 %961, %v261
        %v963 = vpop.permute.xlu0 %962
        %v965 = vmul.f32 %v943, %v297
        %v966 = vmul.f32 %v947, %v297
        %v967 = vmul.f32 %v951, %v297
        %v968 = vmul.f32 %v955, %v297
        %v969 = vmul.f32 %v959, %v297
        %v970 = vmul.f32 %v963, %v297
        %v971 = vadd.f32 %v965, %v307
        %v972 = vadd.f32 %v966, %v307
        %v973 = vadd.f32 %v967, %v307
        %v974 = vadd.f32 %v968, %v307
        %v975 = vadd.f32 %v969, %v307
        %v976 = vadd.f32 %v970, %v307
        %v977 = vand.u32 2147483647, %v971
        %vm978 = vcmp.le.f32.partialorder %v977, 0.7853982
        %vm979 = vcmp.lt.s32.totalorder %v971, 0
        %v980 = vand.u32 %v971, 2139095040
        %v981 = vshrl.u32 %v980, 23
        %v982 = vsub.s32 %v981, 127
        %v983 = vand.u32 2147483647, %v971
        %v984 = vand.u32 %v983, 8388607
        %v985 = vor.u32 %v984, 8388608
        %v986 = vsub.s32 0, %v985
        %v987 = vadd.s32 %v982, 1
        %vm988 = vcmp.gt.s32.totalorder %v987, 0
        %v989 = vsel %vm988, %v987, 0
        %v990 = vshrl.u32 %v989, 5
        %v991 = vand.u32 %v989, 31
        %v992 = vsub.s32 32, %v991
        %v993 = vshrl.u32 683565275, %v992
        %v994 = vshll.u32 683565275, %v991
        %v995 = vshrl.u32 2475754826, %v992
        %v996 = vor.u32 %v994, %v995
        %v997 = vshll.u32 2475754826, %v991
        %v998 = vshrl.u32 2131351028, %v992
        %v999 = vor.u32 %v997, %v998
        %v1000 = vshll.u32 2131351028, %v991
        %v1001 = vshrl.u32 2102212464, %v992
        %v1002 = vor.u32 %v1000, %v1001
        %v1003 = vshll.u32 2102212464, %v991
        %v1004 = vshrl.u32 920167782, %v992
        %v1005 = vor.u32 %v1003, %v1004
        %v1006 = vshll.u32 920167782, %v991
        %v1007 = vshrl.u32 1326507024, %v992
        %v1008 = vor.u32 %v1006, %v1007
        %vm1009 = vcmp.lt.s32.totalorder %v990, 1
        %vm1010 = vcmp.lt.s32.totalorder %v990, 2
        %vm1011 = vcmp.lt.s32.totalorder %v990, 3
        %vm1012 = vcmp.lt.s32.totalorder %v990, 4
        %v1013 = vsel %vm1009, %v993, %v996
        %v1014 = vsel %vm1012, %v1002, 2102212464
        %v1015 = vsel %vm1011, %v999, %v1014
        %v1016 = vsel %vm1010, %v1013, %v1015
        %v1017 = vsel %vm1009, %v996, %v999
        %v1018 = vsel %vm1012, %v1005, 920167782
        %v1019 = vsel %vm1011, %v1002, %v1018
        %v1020 = vsel %vm1010, %v1017, %v1019
        %v1021 = vsel %vm1009, %v999, %v1002
        %v1022 = vsel %vm1012, %v1008, 1326507024
        %v1023 = vsel %vm1011, %v1005, %v1022
        %v1024 = vsel %vm1010, %v1021, %v1023
        %v1025 = vshll.u32 %v985, 8
        %v1026 = vmul.u32.u64.compose %v1025, %v1024
        %v1027 = vextract.low.u32 %v1026
        %v1028 = vextract.high.u32 %v1026
        %v1029 = vmul.u32.u64.compose %v1025, %v1020
        %v1030 = vextract.low.u32 %v1029
        %v1031 = vextract.high.u32 %v1029
        %v1032 = vmul.u32 %v1025, %v1016
        %v1033 = vadd.s32 %v1028, %v1030
        %vm1034 = vc.u32 %v1028, %v1030
        %v1035 = vadd.s32 %v1031, 1
        %v1036 = vsel %vm1034, %v1035, %v1031
        %v1037 = vadd.s32 %v1032, %v1036
        %v1038 = vadd.s32 %v1037, 536870912
        %v1039 = vshrl.u32 %v1038, 30
        %v1040 = vshll.u32 %v1039, 30
        %v1041 = vsub.s32 %v1037, %v1040
        %vm1042 = vcmp.lt.s32.totalorder %v1041, 0
        %v1043 = vsub.s32 0, %v1041
        %v1044 = vsel %vm1042, %v1043, %v1041
        %v1045 = vclz %v1044
        %v1046 = vsub.s32 %v1045, 2
        %vm1047 = vcmp.gt.s32.totalorder 0, %v1046
        %v1048 = vsel %vm1047, 0, %v1046
        %v1049 = vsub.s32 32, %v1048
        %v1050 = vshll.u32 %v1041, %v1048
        %v1051 = vshrl.u32 %v1033, %v1049
        %v1052 = vor.u32 %v1050, %v1051
        %v1053 = vsub.s32 4294967266, %v1048
        %v1054 = vadd.s32 %v1053, 127
        %v1055 = vshll.u32 %v1054, 23
        %v1056 = vor.u32 4788187, %v1055
        %v1057 = vand.u32 2147483647, %v1056
        %v1059 = vcvt.s32.f32 %v1052
        %v1060 = vmul.f32 %v1059, %v1057
        %v1061 = vxor.u32 %v1060, 2147483648
        %v1062 = vsel %vm979, %v1061, %v1060
        %v1063 = vsub.s32 4, %v1039
        %v1064 = vsel %vm979, %v1063, %v1039
        %v1065 = vsel %vm978, %v971, %v1062
        %v1066 = vsel %vm978, 0, %v1064
        %v1067 = vcosq.f32.pop %v1065
        %v1068 = vsinq.f32.pop %v1065
        %vm1069 = vweird.f32 %v971
        %v1070 = vadd.s32 %v1066, 3
        %v1071 = vand.u32 %v1070, 3
        %vm1072 = vcmp.lt.s32.totalorder %v1071, 2
        %vm1073 = vcmp.eq.s32.totalorder %v1071, 0
        %v1074 = vxor.u32 %v1068, 2147483648
        %v1075 = vsel %vm1073, %v1067, %v1074
        %vm1076 = vcmp.eq.s32.totalorder %v1071, 2
        %v1077 = vxor.u32 %v1067, 2147483648
        %v1078 = vsel %vm1076, %v1077, %v1068
        %v1079 = vsel %vm1072, %v1075, %v1078
        %v1080 = vsel %vm1069, nan, %v1079
        %v1081 = vand.u32 2147483647, %v972
        %vm1082 = vcmp.le.f32.partialorder %v1081, 0.7853982
        %vm1083 = vcmp.lt.s32.totalorder %v972, 0
        %v1084 = vand.u32 %v972, 2139095040
        %v1085 = vshrl.u32 %v1084, 23
        %v1086 = vsub.s32 %v1085, 127
        %v1087 = vand.u32 2147483647, %v972
        %v1088 = vand.u32 %v1087, 8388607
        %v1089 = vor.u32 %v1088, 8388608
        %v1090 = vsub.s32 0, %v1089
        %v1091 = vadd.s32 %v1086, 1
        %vm1092 = vcmp.gt.s32.totalorder %v1091, 0
        %v1093 = vsel %vm1092, %v1091, 0
        %v1094 = vshrl.u32 %v1093, 5
        %v1095 = vand.u32 %v1093, 31
        %v1096 = vsub.s32 32, %v1095
        %v1097 = vshrl.u32 683565275, %v1096
        %v1098 = vshll.u32 683565275, %v1095
        %v1099 = vshrl.u32 2475754826, %v1096
        %v1100 = vor.u32 %v1098, %v1099
        %v1101 = vshll.u32 2475754826, %v1095
        %v1102 = vshrl.u32 2131351028, %v1096
        %v1103 = vor.u32 %v1101, %v1102
        %v1104 = vshll.u32 2131351028, %v1095
        %v1105 = vshrl.u32 2102212464, %v1096
        %v1106 = vor.u32 %v1104, %v1105
        %v1107 = vshll.u32 2102212464, %v1095
        %v1108 = vshrl.u32 920167782, %v1096
        %v1109 = vor.u32 %v1107, %v1108
        %v1110 = vshll.u32 920167782, %v1095
        %v1111 = vshrl.u32 1326507024, %v1096
        %v1112 = vor.u32 %v1110, %v1111
        %vm1113 = vcmp.lt.s32.totalorder %v1094, 1
        %vm1114 = vcmp.lt.s32.totalorder %v1094, 2
        %vm1115 = vcmp.lt.s32.totalorder %v1094, 3
        %vm1116 = vcmp.lt.s32.totalorder %v1094, 4
        %v1117 = vsel %vm1113, %v1097, %v1100
        %v1118 = vsel %vm1116, %v1106, 2102212464
        %v1119 = vsel %vm1115, %v1103, %v1118
        %v1120 = vsel %vm1114, %v1117, %v1119
        %v1121 = vsel %vm1113, %v1100, %v1103
        %v1122 = vsel %vm1116, %v1109, 920167782
        %v1123 = vsel %vm1115, %v1106, %v1122
        %v1124 = vsel %vm1114, %v1121, %v1123
        %v1125 = vsel %vm1113, %v1103, %v1106
        %v1126 = vsel %vm1116, %v1112, 1326507024
        %v1127 = vsel %vm1115, %v1109, %v1126
        %v1128 = vsel %vm1114, %v1125, %v1127
        %v1129 = vshll.u32 %v1089, 8
        %v1130 = vmul.u32.u64.compose %v1129, %v1128
        %v1131 = vextract.low.u32 %v1130
        %v1132 = vextract.high.u32 %v1130
        %v1133 = vmul.u32.u64.compose %v1129, %v1124
        %v1134 = vextract.low.u32 %v1133
        %v1135 = vextract.high.u32 %v1133
        %v1136 = vmul.u32 %v1129, %v1120
        %v1137 = vadd.s32 %v1132, %v1134
        %vm1138 = vc.u32 %v1132, %v1134
        %v1139 = vadd.s32 %v1135, 1
        %v1140 = vsel %vm1138, %v1139, %v1135
        %v1141 = vadd.s32 %v1136, %v1140
        %v1142 = vadd.s32 %v1141, 536870912
        %v1143 = vshrl.u32 %v1142, 30
        %v1144 = vshll.u32 %v1143, 30
        %v1145 = vsub.s32 %v1141, %v1144
        %vm1146 = vcmp.lt.s32.totalorder %v1145, 0
        %v1147 = vsub.s32 0, %v1145
        %v1148 = vsel %vm1146, %v1147, %v1145
        %v1149 = vclz %v1148
        %v1150 = vsub.s32 %v1149, 2
        %vm1151 = vcmp.gt.s32.totalorder 0, %v1150
        %v1152 = vsel %vm1151, 0, %v1150
        %v1153 = vsub.s32 32, %v1152
        %v1154 = vshll.u32 %v1145, %v1152
        %v1155 = vshrl.u32 %v1137, %v1153
        %v1156 = vor.u32 %v1154, %v1155
        %v1157 = vsub.s32 4294967266, %v1152
        %v1158 = vadd.s32 %v1157, 127
        %v1159 = vshll.u32 %v1158, 23
        %v1160 = vor.u32 4788187, %v1159
        %v1161 = vand.u32 2147483647, %v1160
        %v1163 = vcvt.s32.f32 %v1156
        %v1164 = vmul.f32 %v1163, %v1161
        %v1165 = vxor.u32 %v1164, 2147483648
        %v1166 = vsel %vm1083, %v1165, %v1164
        %v1167 = vsub.s32 4, %v1143
        %v1168 = vsel %vm1083, %v1167, %v1143
        %v1169 = vsel %vm1082, %v972, %v1166
        %v1170 = vsel %vm1082, 0, %v1168
        %v1171 = vcosq.f32.pop %v1169
        %v1172 = vsinq.f32.pop %v1169
        %vm1173 = vweird.f32 %v972
        %v1174 = vadd.s32 %v1170, 3
        %v1175 = vand.u32 %v1174, 3
        %vm1176 = vcmp.lt.s32.totalorder %v1175, 2
        %vm1177 = vcmp.eq.s32.totalorder %v1175, 0
        %v1178 = vxor.u32 %v1172, 2147483648
        %v1179 = vsel %vm1177, %v1171, %v1178
        %vm1180 = vcmp.eq.s32.totalorder %v1175, 2
        %v1181 = vxor.u32 %v1171, 2147483648
        %v1182 = vsel %vm1180, %v1181, %v1172
        %v1183 = vsel %vm1176, %v1179, %v1182
        %v1184 = vsel %vm1173, nan, %v1183
        %v1185 = vand.u32 2147483647, %v973
        %vm1186 = vcmp.le.f32.partialorder %v1185, 0.7853982
        %vm1187 = vcmp.lt.s32.totalorder %v973, 0
        %v1188 = vand.u32 %v973, 2139095040
        %v1189 = vshrl.u32 %v1188, 23
        %v1190 = vsub.s32 %v1189, 127
        %v1191 = vand.u32 2147483647, %v973
        %v1192 = vand.u32 %v1191, 8388607
        %v1193 = vor.u32 %v1192, 8388608
        %v1194 = vsub.s32 0, %v1193
        %v1195 = vadd.s32 %v1190, 1
        %vm1196 = vcmp.gt.s32.totalorder %v1195, 0
        %v1197 = vsel %vm1196, %v1195, 0
        %v1198 = vshrl.u32 %v1197, 5
        %v1199 = vand.u32 %v1197, 31
        %v1200 = vsub.s32 32, %v1199
        %v1201 = vshrl.u32 683565275, %v1200
        %v1202 = vshll.u32 683565275, %v1199
        %v1203 = vshrl.u32 2475754826, %v1200
        %v1204 = vor.u32 %v1202, %v1203
        %v1205 = vshll.u32 2475754826, %v1199
        %v1206 = vshrl.u32 2131351028, %v1200
        %v1207 = vor.u32 %v1205, %v1206
        %v1208 = vshll.u32 2131351028, %v1199
        %v1209 = vshrl.u32 2102212464, %v1200
        %v1210 = vor.u32 %v1208, %v1209
        %v1211 = vshll.u32 2102212464, %v1199
        %v1212 = vshrl.u32 920167782, %v1200
        %v1213 = vor.u32 %v1211, %v1212
        %v1214 = vshll.u32 920167782, %v1199
        %v1215 = vshrl.u32 1326507024, %v1200
        %v1216 = vor.u32 %v1214, %v1215
        %vm1217 = vcmp.lt.s32.totalorder %v1198, 1
        %vm1218 = vcmp.lt.s32.totalorder %v1198, 2
        %vm1219 = vcmp.lt.s32.totalorder %v1198, 3
        %vm1220 = vcmp.lt.s32.totalorder %v1198, 4
        %v1221 = vsel %vm1217, %v1201, %v1204
        %v1222 = vsel %vm1220, %v1210, 2102212464
        %v1223 = vsel %vm1219, %v1207, %v1222
        %v1224 = vsel %vm1218, %v1221, %v1223
        %v1225 = vsel %vm1217, %v1204, %v1207
        %v1226 = vsel %vm1220, %v1213, 920167782
        %v1227 = vsel %vm1219, %v1210, %v1226
        %v1228 = vsel %vm1218, %v1225, %v1227
        %v1229 = vsel %vm1217, %v1207, %v1210
        %v1230 = vsel %vm1220, %v1216, 1326507024
        %v1231 = vsel %vm1219, %v1213, %v1230
        %v1232 = vsel %vm1218, %v1229, %v1231
        %v1233 = vshll.u32 %v1193, 8
        %v1234 = vmul.u32.u64.compose %v1233, %v1232
        %v1235 = vextract.low.u32 %v1234
        %v1236 = vextract.high.u32 %v1234
        %v1237 = vmul.u32.u64.compose %v1233, %v1228
        %v1238 = vextract.low.u32 %v1237
        %v1239 = vextract.high.u32 %v1237
        %v1240 = vmul.u32 %v1233, %v1224
        %v1241 = vadd.s32 %v1236, %v1238
        %vm1242 = vc.u32 %v1236, %v1238
        %v1243 = vadd.s32 %v1239, 1
        %v1244 = vsel %vm1242, %v1243, %v1239
        %v1245 = vadd.s32 %v1240, %v1244
        %v1246 = vadd.s32 %v1245, 536870912
        %v1247 = vshrl.u32 %v1246, 30
        %v1248 = vshll.u32 %v1247, 30
        %v1249 = vsub.s32 %v1245, %v1248
        %vm1250 = vcmp.lt.s32.totalorder %v1249, 0
        %v1251 = vsub.s32 0, %v1249
        %v1252 = vsel %vm1250, %v1251, %v1249
        %v1253 = vclz %v1252
        %v1254 = vsub.s32 %v1253, 2
        %vm1255 = vcmp.gt.s32.totalorder 0, %v1254
        %v1256 = vsel %vm1255, 0, %v1254
        %v1257 = vsub.s32 32, %v1256
        %v1258 = vshll.u32 %v1249, %v1256
        %v1259 = vshrl.u32 %v1241, %v1257
        %v1260 = vor.u32 %v1258, %v1259
        %v1261 = vsub.s32 4294967266, %v1256
        %v1262 = vadd.s32 %v1261, 127
        %v1263 = vshll.u32 %v1262, 23
        %v1264 = vor.u32 4788187, %v1263
        %v1265 = vand.u32 2147483647, %v1264
        %v1267 = vcvt.s32.f32 %v1260
        %v1268 = vmul.f32 %v1267, %v1265
        %v1269 = vxor.u32 %v1268, 2147483648
        %v1270 = vsel %vm1187, %v1269, %v1268
        %v1271 = vsub.s32 4, %v1247
        %v1272 = vsel %vm1187, %v1271, %v1247
        %v1273 = vsel %vm1186, %v973, %v1270
        %v1274 = vsel %vm1186, 0, %v1272
        %v1275 = vcosq.f32.pop %v1273
        %v1276 = vsinq.f32.pop %v1273
        %vm1277 = vweird.f32 %v973
        %v1278 = vadd.s32 %v1274, 3
        %v1279 = vand.u32 %v1278, 3
        %vm1280 = vcmp.lt.s32.totalorder %v1279, 2
        %vm1281 = vcmp.eq.s32.totalorder %v1279, 0
        %v1282 = vxor.u32 %v1276, 2147483648
        %v1283 = vsel %vm1281, %v1275, %v1282
        %vm1284 = vcmp.eq.s32.totalorder %v1279, 2
        %v1285 = vxor.u32 %v1275, 2147483648
        %v1286 = vsel %vm1284, %v1285, %v1276
        %v1287 = vsel %vm1280, %v1283, %v1286
        %v1288 = vsel %vm1277, nan, %v1287
        %v1289 = vand.u32 2147483647, %v974
        %vm1290 = vcmp.le.f32.partialorder %v1289, 0.7853982
        %vm1291 = vcmp.lt.s32.totalorder %v974, 0
        %v1292 = vand.u32 %v974, 2139095040
        %v1293 = vshrl.u32 %v1292, 23
        %v1294 = vsub.s32 %v1293, 127
        %v1295 = vand.u32 2147483647, %v974
        %v1296 = vand.u32 %v1295, 8388607
        %v1297 = vor.u32 %v1296, 8388608
        %v1298 = vsub.s32 0, %v1297
        %v1299 = vadd.s32 %v1294, 1
        %vm1300 = vcmp.gt.s32.totalorder %v1299, 0
        %v1301 = vsel %vm1300, %v1299, 0
        %v1302 = vshrl.u32 %v1301, 5
        %v1303 = vand.u32 %v1301, 31
        %v1304 = vsub.s32 32, %v1303
        %v1305 = vshrl.u32 683565275, %v1304
        %v1306 = vshll.u32 683565275, %v1303
        %v1307 = vshrl.u32 2475754826, %v1304
        %v1308 = vor.u32 %v1306, %v1307
        %v1309 = vshll.u32 2475754826, %v1303
        %v1310 = vshrl.u32 2131351028, %v1304
        %v1311 = vor.u32 %v1309, %v1310
        %v1312 = vshll.u32 2131351028, %v1303
        %v1313 = vshrl.u32 2102212464, %v1304
        %v1314 = vor.u32 %v1312, %v1313
        %v1315 = vshll.u32 2102212464, %v1303
        %v1316 = vshrl.u32 920167782, %v1304
        %v1317 = vor.u32 %v1315, %v1316
        %v1318 = vshll.u32 920167782, %v1303
        %v1319 = vshrl.u32 1326507024, %v1304
        %v1320 = vor.u32 %v1318, %v1319
        %vm1321 = vcmp.lt.s32.totalorder %v1302, 1
        %vm1322 = vcmp.lt.s32.totalorder %v1302, 2
        %vm1323 = vcmp.lt.s32.totalorder %v1302, 3
        %vm1324 = vcmp.lt.s32.totalorder %v1302, 4
        %v1325 = vsel %vm1321, %v1305, %v1308
        %v1326 = vsel %vm1324, %v1314, 2102212464
        %v1327 = vsel %vm1323, %v1311, %v1326
        %v1328 = vsel %vm1322, %v1325, %v1327
        %v1329 = vsel %vm1321, %v1308, %v1311
        %v1330 = vsel %vm1324, %v1317, 920167782
        %v1331 = vsel %vm1323, %v1314, %v1330
        %v1332 = vsel %vm1322, %v1329, %v1331
        %v1333 = vsel %vm1321, %v1311, %v1314
        %v1334 = vsel %vm1324, %v1320, 1326507024
        %v1335 = vsel %vm1323, %v1317, %v1334
        %v1336 = vsel %vm1322, %v1333, %v1335
        %v1337 = vshll.u32 %v1297, 8
        %v1338 = vmul.u32.u64.compose %v1337, %v1336
        %v1339 = vextract.low.u32 %v1338
        %v1340 = vextract.high.u32 %v1338
        %v1341 = vmul.u32.u64.compose %v1337, %v1332
        %v1342 = vextract.low.u32 %v1341
        %v1343 = vextract.high.u32 %v1341
        %v1344 = vmul.u32 %v1337, %v1328
        %v1345 = vadd.s32 %v1340, %v1342
        %vm1346 = vc.u32 %v1340, %v1342
        %v1347 = vadd.s32 %v1343, 1
        %v1348 = vsel %vm1346, %v1347, %v1343
        %v1349 = vadd.s32 %v1344, %v1348
        %v1350 = vadd.s32 %v1349, 536870912
        %v1351 = vshrl.u32 %v1350, 30
        %v1352 = vshll.u32 %v1351, 30
        %v1353 = vsub.s32 %v1349, %v1352
        %vm1354 = vcmp.lt.s32.totalorder %v1353, 0
        %v1355 = vsub.s32 0, %v1353
        %v1356 = vsel %vm1354, %v1355, %v1353
        %v1357 = vclz %v1356
        %v1358 = vsub.s32 %v1357, 2
        %vm1359 = vcmp.gt.s32.totalorder 0, %v1358
        %v1360 = vsel %vm1359, 0, %v1358
        %v1361 = vsub.s32 32, %v1360
        %v1362 = vshll.u32 %v1353, %v1360
        %v1363 = vshrl.u32 %v1345, %v1361
        %v1364 = vor.u32 %v1362, %v1363
        %v1365 = vsub.s32 4294967266, %v1360
        %v1366 = vadd.s32 %v1365, 127
        %v1367 = vshll.u32 %v1366, 23
        %v1368 = vor.u32 4788187, %v1367
        %v1369 = vand.u32 2147483647, %v1368
        %v1371 = vcvt.s32.f32 %v1364
        %v1372 = vmul.f32 %v1371, %v1369
        %v1373 = vxor.u32 %v1372, 2147483648
        %v1374 = vsel %vm1291, %v1373, %v1372
        %v1375 = vsub.s32 4, %v1351
        %v1376 = vsel %vm1291, %v1375, %v1351
        %v1377 = vsel %vm1290, %v974, %v1374
        %v1378 = vsel %vm1290, 0, %v1376
        %v1379 = vcosq.f32.pop %v1377
        %v1380 = vsinq.f32.pop %v1377
        %vm1381 = vweird.f32 %v974
        %v1382 = vadd.s32 %v1378, 3
        %v1383 = vand.u32 %v1382, 3
        %vm1384 = vcmp.lt.s32.totalorder %v1383, 2
        %vm1385 = vcmp.eq.s32.totalorder %v1383, 0
        %v1386 = vxor.u32 %v1380, 2147483648
        %v1387 = vsel %vm1385, %v1379, %v1386
        %vm1388 = vcmp.eq.s32.totalorder %v1383, 2
        %v1389 = vxor.u32 %v1379, 2147483648
        %v1390 = vsel %vm1388, %v1389, %v1380
        %v1391 = vsel %vm1384, %v1387, %v1390
        %v1392 = vsel %vm1381, nan, %v1391
        %v1393 = vand.u32 2147483647, %v975
        %vm1394 = vcmp.le.f32.partialorder %v1393, 0.7853982
        %vm1395 = vcmp.lt.s32.totalorder %v975, 0
        %v1396 = vand.u32 %v975, 2139095040
        %v1397 = vshrl.u32 %v1396, 23
        %v1398 = vsub.s32 %v1397, 127
        %v1399 = vand.u32 2147483647, %v975
        %v1400 = vand.u32 %v1399, 8388607
        %v1401 = vor.u32 %v1400, 8388608
        %v1402 = vsub.s32 0, %v1401
        %v1403 = vadd.s32 %v1398, 1
        %vm1404 = vcmp.gt.s32.totalorder %v1403, 0
        %v1405 = vsel %vm1404, %v1403, 0
        %v1406 = vshrl.u32 %v1405, 5
        %v1407 = vand.u32 %v1405, 31
        %v1408 = vsub.s32 32, %v1407
        %v1409 = vshrl.u32 683565275, %v1408
        %v1410 = vshll.u32 683565275, %v1407
        %v1411 = vshrl.u32 2475754826, %v1408
        %v1412 = vor.u32 %v1410, %v1411
        %v1413 = vshll.u32 2475754826, %v1407
        %v1414 = vshrl.u32 2131351028, %v1408
        %v1415 = vor.u32 %v1413, %v1414
        %v1416 = vshll.u32 2131351028, %v1407
        %v1417 = vshrl.u32 2102212464, %v1408
        %v1418 = vor.u32 %v1416, %v1417
        %v1419 = vshll.u32 2102212464, %v1407
        %v1420 = vshrl.u32 920167782, %v1408
        %v1421 = vor.u32 %v1419, %v1420
        %v1422 = vshll.u32 920167782, %v1407
        %v1423 = vshrl.u32 1326507024, %v1408
        %v1424 = vor.u32 %v1422, %v1423
        %vm1425 = vcmp.lt.s32.totalorder %v1406, 1
        %vm1426 = vcmp.lt.s32.totalorder %v1406, 2
        %vm1427 = vcmp.lt.s32.totalorder %v1406, 3
        %vm1428 = vcmp.lt.s32.totalorder %v1406, 4
        %v1429 = vsel %vm1425, %v1409, %v1412
        %v1430 = vsel %vm1428, %v1418, 2102212464
        %v1431 = vsel %vm1427, %v1415, %v1430
        %v1432 = vsel %vm1426, %v1429, %v1431
        %v1433 = vsel %vm1425, %v1412, %v1415
        %v1434 = vsel %vm1428, %v1421, 920167782
        %v1435 = vsel %vm1427, %v1418, %v1434
        %v1436 = vsel %vm1426, %v1433, %v1435
        %v1437 = vsel %vm1425, %v1415, %v1418
        %v1438 = vsel %vm1428, %v1424, 1326507024
        %v1439 = vsel %vm1427, %v1421, %v1438
        %v1440 = vsel %vm1426, %v1437, %v1439
        %v1441 = vshll.u32 %v1401, 8
        %v1442 = vmul.u32.u64.compose %v1441, %v1440
        %v1443 = vextract.low.u32 %v1442
        %v1444 = vextract.high.u32 %v1442
        %v1445 = vmul.u32.u64.compose %v1441, %v1436
        %v1446 = vextract.low.u32 %v1445
        %v1447 = vextract.high.u32 %v1445
        %v1448 = vmul.u32 %v1441, %v1432
        %v1449 = vadd.s32 %v1444, %v1446
        %vm1450 = vc.u32 %v1444, %v1446
        %v1451 = vadd.s32 %v1447, 1
        %v1452 = vsel %vm1450, %v1451, %v1447
        %v1453 = vadd.s32 %v1448, %v1452
        %v1454 = vadd.s32 %v1453, 536870912
        %v1455 = vshrl.u32 %v1454, 30
        %v1456 = vshll.u32 %v1455, 30
        %v1457 = vsub.s32 %v1453, %v1456
        %vm1458 = vcmp.lt.s32.totalorder %v1457, 0
        %v1459 = vsub.s32 0, %v1457
        %v1460 = vsel %vm1458, %v1459, %v1457
        %v1461 = vclz %v1460
        %v1462 = vsub.s32 %v1461, 2
        %vm1463 = vcmp.gt.s32.totalorder 0, %v1462
        %v1464 = vsel %vm1463, 0, %v1462
        %v1465 = vsub.s32 32, %v1464
        %v1466 = vshll.u32 %v1457, %v1464
        %v1467 = vshrl.u32 %v1449, %v1465
        %v1468 = vor.u32 %v1466, %v1467
        %v1469 = vsub.s32 4294967266, %v1464
        %v1470 = vadd.s32 %v1469, 127
        %v1471 = vshll.u32 %v1470, 23
        %v1472 = vor.u32 4788187, %v1471
        %v1473 = vand.u32 2147483647, %v1472
        %v1475 = vcvt.s32.f32 %v1468
        %v1476 = vmul.f32 %v1475, %v1473
        %v1477 = vxor.u32 %v1476, 2147483648
        %v1478 = vsel %vm1395, %v1477, %v1476
        %v1479 = vsub.s32 4, %v1455
        %v1480 = vsel %vm1395, %v1479, %v1455
        %v1481 = vsel %vm1394, %v975, %v1478
        %v1482 = vsel %vm1394, 0, %v1480
        %v1483 = vcosq.f32.pop %v1481
        %v1484 = vsinq.f32.pop %v1481
        %vm1485 = vweird.f32 %v975
        %v1486 = vadd.s32 %v1482, 3
        %v1487 = vand.u32 %v1486, 3
        %vm1488 = vcmp.lt.s32.totalorder %v1487, 2
        %vm1489 = vcmp.eq.s32.totalorder %v1487, 0
        %v1490 = vxor.u32 %v1484, 2147483648
        %v1491 = vsel %vm1489, %v1483, %v1490
        %vm1492 = vcmp.eq.s32.totalorder %v1487, 2
        %v1493 = vxor.u32 %v1483, 2147483648
        %v1494 = vsel %vm1492, %v1493, %v1484
        %v1495 = vsel %vm1488, %v1491, %v1494
        %v1496 = vsel %vm1485, nan, %v1495
        %v1497 = vand.u32 2147483647, %v976
        %vm1498 = vcmp.le.f32.partialorder %v1497, 0.7853982
        %vm1499 = vcmp.lt.s32.totalorder %v976, 0
        %v1500 = vand.u32 %v976, 2139095040
        %v1501 = vshrl.u32 %v1500, 23
        %v1502 = vsub.s32 %v1501, 127
        %v1503 = vand.u32 2147483647, %v976
        %v1504 = vand.u32 %v1503, 8388607
        %v1505 = vor.u32 %v1504, 8388608
        %v1506 = vsub.s32 0, %v1505
        %v1507 = vadd.s32 %v1502, 1
        %vm1508 = vcmp.gt.s32.totalorder %v1507, 0
        %v1509 = vsel %vm1508, %v1507, 0
        %v1510 = vshrl.u32 %v1509, 5
        %v1511 = vand.u32 %v1509, 31
        %v1512 = vsub.s32 32, %v1511
        %v1513 = vshrl.u32 683565275, %v1512
        %v1514 = vshll.u32 683565275, %v1511
        %v1515 = vshrl.u32 2475754826, %v1512
        %v1516 = vor.u32 %v1514, %v1515
        %v1517 = vshll.u32 2475754826, %v1511
        %v1518 = vshrl.u32 2131351028, %v1512
        %v1519 = vor.u32 %v1517, %v1518
        %v1520 = vshll.u32 2131351028, %v1511
        %v1521 = vshrl.u32 2102212464, %v1512
        %v1522 = vor.u32 %v1520, %v1521
        %v1523 = vshll.u32 2102212464, %v1511
        %v1524 = vshrl.u32 920167782, %v1512
        %v1525 = vor.u32 %v1523, %v1524
        %v1526 = vshll.u32 920167782, %v1511
        %v1527 = vshrl.u32 1326507024, %v1512
        %v1528 = vor.u32 %v1526, %v1527
        %vm1529 = vcmp.lt.s32.totalorder %v1510, 1
        %vm1530 = vcmp.lt.s32.totalorder %v1510, 2
        %vm1531 = vcmp.lt.s32.totalorder %v1510, 3
        %vm1532 = vcmp.lt.s32.totalorder %v1510, 4
        %v1533 = vsel %vm1529, %v1513, %v1516
        %v1534 = vsel %vm1532, %v1522, 2102212464
        %v1535 = vsel %vm1531, %v1519, %v1534
        %v1536 = vsel %vm1530, %v1533, %v1535
        %v1537 = vsel %vm1529, %v1516, %v1519
        %v1538 = vsel %vm1532, %v1525, 920167782
        %v1539 = vsel %vm1531, %v1522, %v1538
        %v1540 = vsel %vm1530, %v1537, %v1539
        %v1541 = vsel %vm1529, %v1519, %v1522
        %v1542 = vsel %vm1532, %v1528, 1326507024
        %v1543 = vsel %vm1531, %v1525, %v1542
        %v1544 = vsel %vm1530, %v1541, %v1543
        %v1545 = vshll.u32 %v1505, 8
        %v1546 = vmul.u32.u64.compose %v1545, %v1544
        %v1547 = vextract.low.u32 %v1546
        %v1548 = vextract.high.u32 %v1546
        %v1549 = vmul.u32.u64.compose %v1545, %v1540
        %v1550 = vextract.low.u32 %v1549
        %v1551 = vextract.high.u32 %v1549
        %v1552 = vmul.u32 %v1545, %v1536
        %v1553 = vadd.s32 %v1548, %v1550
        %vm1554 = vc.u32 %v1548, %v1550
        %v1555 = vadd.s32 %v1551, 1
        %v1556 = vsel %vm1554, %v1555, %v1551
        %v1557 = vadd.s32 %v1552, %v1556
        %v1558 = vadd.s32 %v1557, 536870912
        %v1559 = vshrl.u32 %v1558, 30
        %v1560 = vshll.u32 %v1559, 30
        %v1561 = vsub.s32 %v1557, %v1560
        %vm1562 = vcmp.lt.s32.totalorder %v1561, 0
        %v1563 = vsub.s32 0, %v1561
        %v1564 = vsel %vm1562, %v1563, %v1561
        %v1565 = vclz %v1564
        %v1566 = vsub.s32 %v1565, 2
        %vm1567 = vcmp.gt.s32.totalorder 0, %v1566
        %v1568 = vsel %vm1567, 0, %v1566
        %v1569 = vsub.s32 32, %v1568
        %v1570 = vshll.u32 %v1561, %v1568
        %v1571 = vshrl.u32 %v1553, %v1569
        %v1572 = vor.u32 %v1570, %v1571
        %v1573 = vsub.s32 4294967266, %v1568
        %v1574 = vadd.s32 %v1573, 127
        %v1575 = vshll.u32 %v1574, 23
        %v1576 = vor.u32 4788187, %v1575
        %v1577 = vand.u32 2147483647, %v1576
        %v1579 = vcvt.s32.f32 %v1572
        %v1580 = vmul.f32 %v1579, %v1577
        %v1581 = vxor.u32 %v1580, 2147483648
        %v1582 = vsel %vm1499, %v1581, %v1580
        %v1583 = vsub.s32 4, %v1559
        %v1584 = vsel %vm1499, %v1583, %v1559
        %v1585 = vsel %vm1498, %v976, %v1582
        %v1586 = vsel %vm1498, 0, %v1584
        %v1587 = vcosq.f32.pop %v1585
        %v1588 = vsinq.f32.pop %v1585
        %vm1589 = vweird.f32 %v976
        %v1590 = vadd.s32 %v1586, 3
        %v1591 = vand.u32 %v1590, 3
        %vm1592 = vcmp.lt.s32.totalorder %v1591, 2
        %vm1593 = vcmp.eq.s32.totalorder %v1591, 0
        %v1594 = vxor.u32 %v1588, 2147483648
        %v1595 = vsel %vm1593, %v1587, %v1594
        %vm1596 = vcmp.eq.s32.totalorder %v1591, 2
        %v1597 = vxor.u32 %v1587, 2147483648
        %v1598 = vsel %vm1596, %v1597, %v1588
        %v1599 = vsel %vm1592, %v1595, %v1598
        %v1600 = vsel %vm1589, nan, %v1599
        %v1601 = vpack.c.bf16 %v1184, %v1080
        %v1602 = vpack.c.bf16 %v1392, %v1288
        %v1603 = vpack.c.bf16 %v1600, %v1496
        %1604 = vset.pattern.permute.xlu0 2
        %1605 = vperm.xlu0 %1604, %v256
        %v1606 = vpop.permute.xlu0 %1605
        %1608 = vset.pattern.permute.xlu0 2
        %1609 = vperm.xlu0 %1608, %v257
        %v1610 = vpop.permute.xlu0 %1609
        %1612 = vset.pattern.permute.xlu0 2
        %1613 = vperm.xlu0 %1612, %v258
        %v1614 = vpop.permute.xlu0 %1613
        %1616 = vset.pattern.permute.xlu0 2
        %1617 = vperm.xlu0 %1616, %v259
        %v1618 = vpop.permute.xlu0 %1617
        %1620 = vset.pattern.permute.xlu0 2
        %1621 = vperm.xlu0 %1620, %v260
        %v1622 = vpop.permute.xlu0 %1621
        %1624 = vset.pattern.permute.xlu0 2
        %1625 = vperm.xlu0 %1624, %v261
        %v1626 = vpop.permute.xlu0 %1625
        %v1628 = vmul.f32 %v1606, %v297
        %v1629 = vmul.f32 %v1610, %v297
        %v1630 = vmul.f32 %v1614, %v297
        %v1631 = vmul.f32 %v1618, %v297
        %v1632 = vmul.f32 %v1622, %v297
        %v1633 = vmul.f32 %v1626, %v297
        %v1634 = vadd.f32 %v1628, %v307
        %v1635 = vadd.f32 %v1629, %v307
        %v1636 = vadd.f32 %v1630, %v307
        %v1637 = vadd.f32 %v1631, %v307
        %v1638 = vadd.f32 %v1632, %v307
        %v1639 = vadd.f32 %v1633, %v307
        %v1640 = vand.u32 2147483647, %v1634
        %vm1641 = vcmp.le.f32.partialorder %v1640, 0.7853982
        %vm1642 = vcmp.lt.s32.totalorder %v1634, 0
        %v1643 = vand.u32 %v1634, 2139095040
        %v1644 = vshrl.u32 %v1643, 23
        %v1645 = vsub.s32 %v1644, 127
        %v1646 = vand.u32 2147483647, %v1634
        %v1647 = vand.u32 %v1646, 8388607
        %v1648 = vor.u32 %v1647, 8388608
        %v1649 = vsub.s32 0, %v1648
        %v1650 = vadd.s32 %v1645, 1
        %vm1651 = vcmp.gt.s32.totalorder %v1650, 0
        %v1652 = vsel %vm1651, %v1650, 0
        %v1653 = vshrl.u32 %v1652, 5
        %v1654 = vand.u32 %v1652, 31
        %v1655 = vsub.s32 32, %v1654
        %v1656 = vshrl.u32 683565275, %v1655
        %v1657 = vshll.u32 683565275, %v1654
        %v1658 = vshrl.u32 2475754826, %v1655
        %v1659 = vor.u32 %v1657, %v1658
        %v1660 = vshll.u32 2475754826, %v1654
        %v1661 = vshrl.u32 2131351028, %v1655
        %v1662 = vor.u32 %v1660, %v1661
        %v1663 = vshll.u32 2131351028, %v1654
        %v1664 = vshrl.u32 2102212464, %v1655
        %v1665 = vor.u32 %v1663, %v1664
        %v1666 = vshll.u32 2102212464, %v1654
        %v1667 = vshrl.u32 920167782, %v1655
        %v1668 = vor.u32 %v1666, %v1667
        %v1669 = vshll.u32 920167782, %v1654
        %v1670 = vshrl.u32 1326507024, %v1655
        %v1671 = vor.u32 %v1669, %v1670
        %vm1672 = vcmp.lt.s32.totalorder %v1653, 1
        %vm1673 = vcmp.lt.s32.totalorder %v1653, 2
        %vm1674 = vcmp.lt.s32.totalorder %v1653, 3
        %vm1675 = vcmp.lt.s32.totalorder %v1653, 4
        %v1676 = vsel %vm1672, %v1656, %v1659
        %v1677 = vsel %vm1675, %v1665, 2102212464
        %v1678 = vsel %vm1674, %v1662, %v1677
        %v1679 = vsel %vm1673, %v1676, %v1678
        %v1680 = vsel %vm1672, %v1659, %v1662
        %v1681 = vsel %vm1675, %v1668, 920167782
        %v1682 = vsel %vm1674, %v1665, %v1681
        %v1683 = vsel %vm1673, %v1680, %v1682
        %v1684 = vsel %vm1672, %v1662, %v1665
        %v1685 = vsel %vm1675, %v1671, 1326507024
        %v1686 = vsel %vm1674, %v1668, %v1685
        %v1687 = vsel %vm1673, %v1684, %v1686
        %v1688 = vshll.u32 %v1648, 8
        %v1689 = vmul.u32.u64.compose %v1688, %v1687
        %v1690 = vextract.low.u32 %v1689
        %v1691 = vextract.high.u32 %v1689
        %v1692 = vmul.u32.u64.compose %v1688, %v1683
        %v1693 = vextract.low.u32 %v1692
        %v1694 = vextract.high.u32 %v1692
        %v1695 = vmul.u32 %v1688, %v1679
        %v1696 = vadd.s32 %v1691, %v1693
        %vm1697 = vc.u32 %v1691, %v1693
        %v1698 = vadd.s32 %v1694, 1
        %v1699 = vsel %vm1697, %v1698, %v1694
        %v1700 = vadd.s32 %v1695, %v1699
        %v1701 = vadd.s32 %v1700, 536870912
        %v1702 = vshrl.u32 %v1701, 30
        %v1703 = vshll.u32 %v1702, 30
        %v1704 = vsub.s32 %v1700, %v1703
        %vm1705 = vcmp.lt.s32.totalorder %v1704, 0
        %v1706 = vsub.s32 0, %v1704
        %v1707 = vsel %vm1705, %v1706, %v1704
        %v1708 = vclz %v1707
        %v1709 = vsub.s32 %v1708, 2
        %vm1710 = vcmp.gt.s32.totalorder 0, %v1709
        %v1711 = vsel %vm1710, 0, %v1709
        %v1712 = vsub.s32 32, %v1711
        %v1713 = vshll.u32 %v1704, %v1711
        %v1714 = vshrl.u32 %v1696, %v1712
        %v1715 = vor.u32 %v1713, %v1714
        %v1716 = vsub.s32 4294967266, %v1711
        %v1717 = vadd.s32 %v1716, 127
        %v1718 = vshll.u32 %v1717, 23
        %v1719 = vor.u32 4788187, %v1718
        %v1720 = vand.u32 2147483647, %v1719
        %v1722 = vcvt.s32.f32 %v1715
        %v1723 = vmul.f32 %v1722, %v1720
        %v1724 = vxor.u32 %v1723, 2147483648
        %v1725 = vsel %vm1642, %v1724, %v1723
        %v1726 = vsub.s32 4, %v1702
        %v1727 = vsel %vm1642, %v1726, %v1702
        %v1728 = vsel %vm1641, %v1634, %v1725
        %v1729 = vsel %vm1641, 0, %v1727
        %v1730 = vcosq.f32.pop %v1728
        %v1731 = vsinq.f32.pop %v1728
        %vm1732 = vweird.f32 %v1634
        %v1733 = vadd.s32 %v1729, 3
        %v1734 = vand.u32 %v1733, 3
        %vm1735 = vcmp.lt.s32.totalorder %v1734, 2
        %vm1736 = vcmp.eq.s32.totalorder %v1734, 0
        %v1737 = vxor.u32 %v1731, 2147483648
        %v1738 = vsel %vm1736, %v1730, %v1737
        %vm1739 = vcmp.eq.s32.totalorder %v1734, 2
        %v1740 = vxor.u32 %v1730, 2147483648
        %v1741 = vsel %vm1739, %v1740, %v1731
        %v1742 = vsel %vm1735, %v1738, %v1741
        %v1743 = vsel %vm1732, nan, %v1742
        %v1744 = vand.u32 2147483647, %v1635
        %vm1745 = vcmp.le.f32.partialorder %v1744, 0.7853982
        %vm1746 = vcmp.lt.s32.totalorder %v1635, 0
        %v1747 = vand.u32 %v1635, 2139095040
        %v1748 = vshrl.u32 %v1747, 23
        %v1749 = vsub.s32 %v1748, 127
        %v1750 = vand.u32 2147483647, %v1635
        %v1751 = vand.u32 %v1750, 8388607
        %v1752 = vor.u32 %v1751, 8388608
        %v1753 = vsub.s32 0, %v1752
        %v1754 = vadd.s32 %v1749, 1
        %vm1755 = vcmp.gt.s32.totalorder %v1754, 0
        %v1756 = vsel %vm1755, %v1754, 0
        %v1757 = vshrl.u32 %v1756, 5
        %v1758 = vand.u32 %v1756, 31
        %v1759 = vsub.s32 32, %v1758
        %v1760 = vshrl.u32 683565275, %v1759
        %v1761 = vshll.u32 683565275, %v1758
        %v1762 = vshrl.u32 2475754826, %v1759
        %v1763 = vor.u32 %v1761, %v1762
        %v1764 = vshll.u32 2475754826, %v1758
        %v1765 = vshrl.u32 2131351028, %v1759
        %v1766 = vor.u32 %v1764, %v1765
        %v1767 = vshll.u32 2131351028, %v1758
        %v1768 = vshrl.u32 2102212464, %v1759
        %v1769 = vor.u32 %v1767, %v1768
        %v1770 = vshll.u32 2102212464, %v1758
        %v1771 = vshrl.u32 920167782, %v1759
        %v1772 = vor.u32 %v1770, %v1771
        %v1773 = vshll.u32 920167782, %v1758
        %v1774 = vshrl.u32 1326507024, %v1759
        %v1775 = vor.u32 %v1773, %v1774
        %vm1776 = vcmp.lt.s32.totalorder %v1757, 1
        %vm1777 = vcmp.lt.s32.totalorder %v1757, 2
        %vm1778 = vcmp.lt.s32.totalorder %v1757, 3
        %vm1779 = vcmp.lt.s32.totalorder %v1757, 4
        %v1780 = vsel %vm1776, %v1760, %v1763
        %v1781 = vsel %vm1779, %v1769, 2102212464
        %v1782 = vsel %vm1778, %v1766, %v1781
        %v1783 = vsel %vm1777, %v1780, %v1782
        %v1784 = vsel %vm1776, %v1763, %v1766
        %v1785 = vsel %vm1779, %v1772, 920167782
        %v1786 = vsel %vm1778, %v1769, %v1785
        %v1787 = vsel %vm1777, %v1784, %v1786
        %v1788 = vsel %vm1776, %v1766, %v1769
        %v1789 = vsel %vm1779, %v1775, 1326507024
        %v1790 = vsel %vm1778, %v1772, %v1789
        %v1791 = vsel %vm1777, %v1788, %v1790
        %v1792 = vshll.u32 %v1752, 8
        %v1793 = vmul.u32.u64.compose %v1792, %v1791
        %v1794 = vextract.low.u32 %v1793
        %v1795 = vextract.high.u32 %v1793
        %v1796 = vmul.u32.u64.compose %v1792, %v1787
        %v1797 = vextract.low.u32 %v1796
        %v1798 = vextract.high.u32 %v1796
        %v1799 = vmul.u32 %v1792, %v1783
        %v1800 = vadd.s32 %v1795, %v1797
        %vm1801 = vc.u32 %v1795, %v1797
        %v1802 = vadd.s32 %v1798, 1
        %v1803 = vsel %vm1801, %v1802, %v1798
        %v1804 = vadd.s32 %v1799, %v1803
        %v1805 = vadd.s32 %v1804, 536870912
        %v1806 = vshrl.u32 %v1805, 30
        %v1807 = vshll.u32 %v1806, 30
        %v1808 = vsub.s32 %v1804, %v1807
        %vm1809 = vcmp.lt.s32.totalorder %v1808, 0
        %v1810 = vsub.s32 0, %v1808
        %v1811 = vsel %vm1809, %v1810, %v1808
        %v1812 = vclz %v1811
        %v1813 = vsub.s32 %v1812, 2
        %vm1814 = vcmp.gt.s32.totalorder 0, %v1813
        %v1815 = vsel %vm1814, 0, %v1813
        %v1816 = vsub.s32 32, %v1815
        %v1817 = vshll.u32 %v1808, %v1815
        %v1818 = vshrl.u32 %v1800, %v1816
        %v1819 = vor.u32 %v1817, %v1818
        %v1820 = vsub.s32 4294967266, %v1815
        %v1821 = vadd.s32 %v1820, 127
        %v1822 = vshll.u32 %v1821, 23
        %v1823 = vor.u32 4788187, %v1822
        %v1824 = vand.u32 2147483647, %v1823
        %v1826 = vcvt.s32.f32 %v1819
        %v1827 = vmul.f32 %v1826, %v1824
        %v1828 = vxor.u32 %v1827, 2147483648
        %v1829 = vsel %vm1746, %v1828, %v1827
        %v1830 = vsub.s32 4, %v1806
        %v1831 = vsel %vm1746, %v1830, %v1806
        %v1832 = vsel %vm1745, %v1635, %v1829
        %v1833 = vsel %vm1745, 0, %v1831
        %v1834 = vcosq.f32.pop %v1832
        %v1835 = vsinq.f32.pop %v1832
        %vm1836 = vweird.f32 %v1635
        %v1837 = vadd.s32 %v1833, 3
        %v1838 = vand.u32 %v1837, 3
        %vm1839 = vcmp.lt.s32.totalorder %v1838, 2
        %vm1840 = vcmp.eq.s32.totalorder %v1838, 0
        %v1841 = vxor.u32 %v1835, 2147483648
        %v1842 = vsel %vm1840, %v1834, %v1841
        %vm1843 = vcmp.eq.s32.totalorder %v1838, 2
        %v1844 = vxor.u32 %v1834, 2147483648
        %v1845 = vsel %vm1843, %v1844, %v1835
        %v1846 = vsel %vm1839, %v1842, %v1845
        %v1847 = vsel %vm1836, nan, %v1846
        %v1848 = vand.u32 2147483647, %v1636
        %vm1849 = vcmp.le.f32.partialorder %v1848, 0.7853982
        %vm1850 = vcmp.lt.s32.totalorder %v1636, 0
        %v1851 = vand.u32 %v1636, 2139095040
        %v1852 = vshrl.u32 %v1851, 23
        %v1853 = vsub.s32 %v1852, 127
        %v1854 = vand.u32 2147483647, %v1636
        %v1855 = vand.u32 %v1854, 8388607
        %v1856 = vor.u32 %v1855, 8388608
        %v1857 = vsub.s32 0, %v1856
        %v1858 = vadd.s32 %v1853, 1
        %vm1859 = vcmp.gt.s32.totalorder %v1858, 0
        %v1860 = vsel %vm1859, %v1858, 0
        %v1861 = vshrl.u32 %v1860, 5
        %v1862 = vand.u32 %v1860, 31
        %v1863 = vsub.s32 32, %v1862
        %v1864 = vshrl.u32 683565275, %v1863
        %v1865 = vshll.u32 683565275, %v1862
        %v1866 = vshrl.u32 2475754826, %v1863
        %v1867 = vor.u32 %v1865, %v1866
        %v1868 = vshll.u32 2475754826, %v1862
        %v1869 = vshrl.u32 2131351028, %v1863
        %v1870 = vor.u32 %v1868, %v1869
        %v1871 = vshll.u32 2131351028, %v1862
        %v1872 = vshrl.u32 2102212464, %v1863
        %v1873 = vor.u32 %v1871, %v1872
        %v1874 = vshll.u32 2102212464, %v1862
        %v1875 = vshrl.u32 920167782, %v1863
        %v1876 = vor.u32 %v1874, %v1875
        %v1877 = vshll.u32 920167782, %v1862
        %v1878 = vshrl.u32 1326507024, %v1863
        %v1879 = vor.u32 %v1877, %v1878
        %vm1880 = vcmp.lt.s32.totalorder %v1861, 1
        %vm1881 = vcmp.lt.s32.totalorder %v1861, 2
        %vm1882 = vcmp.lt.s32.totalorder %v1861, 3
        %vm1883 = vcmp.lt.s32.totalorder %v1861, 4
        %v1884 = vsel %vm1880, %v1864, %v1867
        %v1885 = vsel %vm1883, %v1873, 2102212464
        %v1886 = vsel %vm1882, %v1870, %v1885
        %v1887 = vsel %vm1881, %v1884, %v1886
        %v1888 = vsel %vm1880, %v1867, %v1870
        %v1889 = vsel %vm1883, %v1876, 920167782
        %v1890 = vsel %vm1882, %v1873, %v1889
        %v1891 = vsel %vm1881, %v1888, %v1890
        %v1892 = vsel %vm1880, %v1870, %v1873
        %v1893 = vsel %vm1883, %v1879, 1326507024
        %v1894 = vsel %vm1882, %v1876, %v1893
        %v1895 = vsel %vm1881, %v1892, %v1894
        %v1896 = vshll.u32 %v1856, 8
        %v1897 = vmul.u32.u64.compose %v1896, %v1895
        %v1898 = vextract.low.u32 %v1897
        %v1899 = vextract.high.u32 %v1897
        %v1900 = vmul.u32.u64.compose %v1896, %v1891
        %v1901 = vextract.low.u32 %v1900
        %v1902 = vextract.high.u32 %v1900
        %v1903 = vmul.u32 %v1896, %v1887
        %v1904 = vadd.s32 %v1899, %v1901
        %vm1905 = vc.u32 %v1899, %v1901
        %v1906 = vadd.s32 %v1902, 1
        %v1907 = vsel %vm1905, %v1906, %v1902
        %v1908 = vadd.s32 %v1903, %v1907
        %v1909 = vadd.s32 %v1908, 536870912
        %v1910 = vshrl.u32 %v1909, 30
        %v1911 = vshll.u32 %v1910, 30
        %v1912 = vsub.s32 %v1908, %v1911
        %vm1913 = vcmp.lt.s32.totalorder %v1912, 0
        %v1914 = vsub.s32 0, %v1912
        %v1915 = vsel %vm1913, %v1914, %v1912
        %v1916 = vclz %v1915
        %v1917 = vsub.s32 %v1916, 2
        %vm1918 = vcmp.gt.s32.totalorder 0, %v1917
        %v1919 = vsel %vm1918, 0, %v1917
        %v1920 = vsub.s32 32, %v1919
        %v1921 = vshll.u32 %v1912, %v1919
        %v1922 = vshrl.u32 %v1904, %v1920
        %v1923 = vor.u32 %v1921, %v1922
        %v1924 = vsub.s32 4294967266, %v1919
        %v1925 = vadd.s32 %v1924, 127
        %v1926 = vshll.u32 %v1925, 23
        %v1927 = vor.u32 4788187, %v1926
        %v1928 = vand.u32 2147483647, %v1927
        %v1930 = vcvt.s32.f32 %v1923
        %v1931 = vmul.f32 %v1930, %v1928
        %v1932 = vxor.u32 %v1931, 2147483648
        %v1933 = vsel %vm1850, %v1932, %v1931
        %v1934 = vsub.s32 4, %v1910
        %v1935 = vsel %vm1850, %v1934, %v1910
        %v1936 = vsel %vm1849, %v1636, %v1933
        %v1937 = vsel %vm1849, 0, %v1935
        %v1938 = vcosq.f32.pop %v1936
        %v1939 = vsinq.f32.pop %v1936
        %vm1940 = vweird.f32 %v1636
        %v1941 = vadd.s32 %v1937, 3
        %v1942 = vand.u32 %v1941, 3
        %vm1943 = vcmp.lt.s32.totalorder %v1942, 2
        %vm1944 = vcmp.eq.s32.totalorder %v1942, 0
        %v1945 = vxor.u32 %v1939, 2147483648
        %v1946 = vsel %vm1944, %v1938, %v1945
        %vm1947 = vcmp.eq.s32.totalorder %v1942, 2
        %v1948 = vxor.u32 %v1938, 2147483648
        %v1949 = vsel %vm1947, %v1948, %v1939
        %v1950 = vsel %vm1943, %v1946, %v1949
        %v1951 = vsel %vm1940, nan, %v1950
        %v1952 = vand.u32 2147483647, %v1637
        %vm1953 = vcmp.le.f32.partialorder %v1952, 0.7853982
        %vm1954 = vcmp.lt.s32.totalorder %v1637, 0
        %v1955 = vand.u32 %v1637, 2139095040
        %v1956 = vshrl.u32 %v1955, 23
        %v1957 = vsub.s32 %v1956, 127
        %v1958 = vand.u32 2147483647, %v1637
        %v1959 = vand.u32 %v1958, 8388607
        %v1960 = vor.u32 %v1959, 8388608
        %v1961 = vsub.s32 0, %v1960
        %v1962 = vadd.s32 %v1957, 1
        %vm1963 = vcmp.gt.s32.totalorder %v1962, 0
        %v1964 = vsel %vm1963, %v1962, 0
        %v1965 = vshrl.u32 %v1964, 5
        %v1966 = vand.u32 %v1964, 31
        %v1967 = vsub.s32 32, %v1966
        %v1968 = vshrl.u32 683565275, %v1967
        %v1969 = vshll.u32 683565275, %v1966
        %v1970 = vshrl.u32 2475754826, %v1967
        %v1971 = vor.u32 %v1969, %v1970
        %v1972 = vshll.u32 2475754826, %v1966
        %v1973 = vshrl.u32 2131351028, %v1967
        %v1974 = vor.u32 %v1972, %v1973
        %v1975 = vshll.u32 2131351028, %v1966
        %v1976 = vshrl.u32 2102212464, %v1967
        %v1977 = vor.u32 %v1975, %v1976
        %v1978 = vshll.u32 2102212464, %v1966
        %v1979 = vshrl.u32 920167782, %v1967
        %v1980 = vor.u32 %v1978, %v1979
        %v1981 = vshll.u32 920167782, %v1966
        %v1982 = vshrl.u32 1326507024, %v1967
        %v1983 = vor.u32 %v1981, %v1982
        %vm1984 = vcmp.lt.s32.totalorder %v1965, 1
        %vm1985 = vcmp.lt.s32.totalorder %v1965, 2
        %vm1986 = vcmp.lt.s32.totalorder %v1965, 3
        %vm1987 = vcmp.lt.s32.totalorder %v1965, 4
        %v1988 = vsel %vm1984, %v1968, %v1971
        %v1989 = vsel %vm1987, %v1977, 2102212464
        %v1990 = vsel %vm1986, %v1974, %v1989
        %v1991 = vsel %vm1985, %v1988, %v1990
        %v1992 = vsel %vm1984, %v1971, %v1974
        %v1993 = vsel %vm1987, %v1980, 920167782
        %v1994 = vsel %vm1986, %v1977, %v1993
        %v1995 = vsel %vm1985, %v1992, %v1994
        %v1996 = vsel %vm1984, %v1974, %v1977
        %v1997 = vsel %vm1987, %v1983, 1326507024
        %v1998 = vsel %vm1986, %v1980, %v1997
        %v1999 = vsel %vm1985, %v1996, %v1998
        %v2000 = vshll.u32 %v1960, 8
        %v2001 = vmul.u32.u64.compose %v2000, %v1999
        %v2002 = vextract.low.u32 %v2001
        %v2003 = vextract.high.u32 %v2001
        %v2004 = vmul.u32.u64.compose %v2000, %v1995
        %v2005 = vextract.low.u32 %v2004
        %v2006 = vextract.high.u32 %v2004
        %v2007 = vmul.u32 %v2000, %v1991
        %v2008 = vadd.s32 %v2003, %v2005
        %vm2009 = vc.u32 %v2003, %v2005
        %v2010 = vadd.s32 %v2006, 1
        %v2011 = vsel %vm2009, %v2010, %v2006
        %v2012 = vadd.s32 %v2007, %v2011
        %v2013 = vadd.s32 %v2012, 536870912
        %v2014 = vshrl.u32 %v2013, 30
        %v2015 = vshll.u32 %v2014, 30
        %v2016 = vsub.s32 %v2012, %v2015
        %vm2017 = vcmp.lt.s32.totalorder %v2016, 0
        %v2018 = vsub.s32 0, %v2016
        %v2019 = vsel %vm2017, %v2018, %v2016
        %v2020 = vclz %v2019
        %v2021 = vsub.s32 %v2020, 2
        %vm2022 = vcmp.gt.s32.totalorder 0, %v2021
        %v2023 = vsel %vm2022, 0, %v2021
        %v2024 = vsub.s32 32, %v2023
        %v2025 = vshll.u32 %v2016, %v2023
        %v2026 = vshrl.u32 %v2008, %v2024
        %v2027 = vor.u32 %v2025, %v2026
        %v2028 = vsub.s32 4294967266, %v2023
        %v2029 = vadd.s32 %v2028, 127
        %v2030 = vshll.u32 %v2029, 23
        %v2031 = vor.u32 4788187, %v2030
        %v2032 = vand.u32 2147483647, %v2031
        %v2034 = vcvt.s32.f32 %v2027
        %v2035 = vmul.f32 %v2034, %v2032
        %v2036 = vxor.u32 %v2035, 2147483648
        %v2037 = vsel %vm1954, %v2036, %v2035
        %v2038 = vsub.s32 4, %v2014
        %v2039 = vsel %vm1954, %v2038, %v2014
        %v2040 = vsel %vm1953, %v1637, %v2037
        %v2041 = vsel %vm1953, 0, %v2039
        %v2042 = vcosq.f32.pop %v2040
        %v2043 = vsinq.f32.pop %v2040
        %vm2044 = vweird.f32 %v1637
        %v2045 = vadd.s32 %v2041, 3
        %v2046 = vand.u32 %v2045, 3
        %vm2047 = vcmp.lt.s32.totalorder %v2046, 2
        %vm2048 = vcmp.eq.s32.totalorder %v2046, 0
        %v2049 = vxor.u32 %v2043, 2147483648
        %v2050 = vsel %vm2048, %v2042, %v2049
        %vm2051 = vcmp.eq.s32.totalorder %v2046, 2
        %v2052 = vxor.u32 %v2042, 2147483648
        %v2053 = vsel %vm2051, %v2052, %v2043
        %v2054 = vsel %vm2047, %v2050, %v2053
        %v2055 = vsel %vm2044, nan, %v2054
        %v2056 = vand.u32 2147483647, %v1638
        %vm2057 = vcmp.le.f32.partialorder %v2056, 0.7853982
        %vm2058 = vcmp.lt.s32.totalorder %v1638, 0
        %v2059 = vand.u32 %v1638, 2139095040
        %v2060 = vshrl.u32 %v2059, 23
        %v2061 = vsub.s32 %v2060, 127
        %v2062 = vand.u32 2147483647, %v1638
        %v2063 = vand.u32 %v2062, 8388607
        %v2064 = vor.u32 %v2063, 8388608
        %v2065 = vsub.s32 0, %v2064
        %v2066 = vadd.s32 %v2061, 1
        %vm2067 = vcmp.gt.s32.totalorder %v2066, 0
        %v2068 = vsel %vm2067, %v2066, 0
        %v2069 = vshrl.u32 %v2068, 5
        %v2070 = vand.u32 %v2068, 31
        %v2071 = vsub.s32 32, %v2070
        %v2072 = vshrl.u32 683565275, %v2071
        %v2073 = vshll.u32 683565275, %v2070
        %v2074 = vshrl.u32 2475754826, %v2071
        %v2075 = vor.u32 %v2073, %v2074
        %v2076 = vshll.u32 2475754826, %v2070
        %v2077 = vshrl.u32 2131351028, %v2071
        %v2078 = vor.u32 %v2076, %v2077
        %v2079 = vshll.u32 2131351028, %v2070
        %v2080 = vshrl.u32 2102212464, %v2071
        %v2081 = vor.u32 %v2079, %v2080
        %v2082 = vshll.u32 2102212464, %v2070
        %v2083 = vshrl.u32 920167782, %v2071
        %v2084 = vor.u32 %v2082, %v2083
        %v2085 = vshll.u32 920167782, %v2070
        %v2086 = vshrl.u32 1326507024, %v2071
        %v2087 = vor.u32 %v2085, %v2086
        %vm2088 = vcmp.lt.s32.totalorder %v2069, 1
        %vm2089 = vcmp.lt.s32.totalorder %v2069, 2
        %vm2090 = vcmp.lt.s32.totalorder %v2069, 3
        %vm2091 = vcmp.lt.s32.totalorder %v2069, 4
        %v2092 = vsel %vm2088, %v2072, %v2075
        %v2093 = vsel %vm2091, %v2081, 2102212464
        %v2094 = vsel %vm2090, %v2078, %v2093
        %v2095 = vsel %vm2089, %v2092, %v2094
        %v2096 = vsel %vm2088, %v2075, %v2078
        %v2097 = vsel %vm2091, %v2084, 920167782
        %v2098 = vsel %vm2090, %v2081, %v2097
        %v2099 = vsel %vm2089, %v2096, %v2098
        %v2100 = vsel %vm2088, %v2078, %v2081
        %v2101 = vsel %vm2091, %v2087, 1326507024
        %v2102 = vsel %vm2090, %v2084, %v2101
        %v2103 = vsel %vm2089, %v2100, %v2102
        %v2104 = vshll.u32 %v2064, 8
        %v2105 = vmul.u32.u64.compose %v2104, %v2103
        %v2106 = vextract.low.u32 %v2105
        %v2107 = vextract.high.u32 %v2105
        %v2108 = vmul.u32.u64.compose %v2104, %v2099
        %v2109 = vextract.low.u32 %v2108
        %v2110 = vextract.high.u32 %v2108
        %v2111 = vmul.u32 %v2104, %v2095
        %v2112 = vadd.s32 %v2107, %v2109
        %vm2113 = vc.u32 %v2107, %v2109
        %v2114 = vadd.s32 %v2110, 1
        %v2115 = vsel %vm2113, %v2114, %v2110
        %v2116 = vadd.s32 %v2111, %v2115
        %v2117 = vadd.s32 %v2116, 536870912
        %v2118 = vshrl.u32 %v2117, 30
        %v2119 = vshll.u32 %v2118, 30
        %v2120 = vsub.s32 %v2116, %v2119
        %vm2121 = vcmp.lt.s32.totalorder %v2120, 0
        %v2122 = vsub.s32 0, %v2120
        %v2123 = vsel %vm2121, %v2122, %v2120
        %v2124 = vclz %v2123
        %v2125 = vsub.s32 %v2124, 2
        %vm2126 = vcmp.gt.s32.totalorder 0, %v2125
        %v2127 = vsel %vm2126, 0, %v2125
        %v2128 = vsub.s32 32, %v2127
        %v2129 = vshll.u32 %v2120, %v2127
        %v2130 = vshrl.u32 %v2112, %v2128
        %v2131 = vor.u32 %v2129, %v2130
        %v2132 = vsub.s32 4294967266, %v2127
        %v2133 = vadd.s32 %v2132, 127
        %v2134 = vshll.u32 %v2133, 23
        %v2135 = vor.u32 4788187, %v2134
        %v2136 = vand.u32 2147483647, %v2135
        %v2138 = vcvt.s32.f32 %v2131
        %v2139 = vmul.f32 %v2138, %v2136
        %v2140 = vxor.u32 %v2139, 2147483648
        %v2141 = vsel %vm2058, %v2140, %v2139
        %v2142 = vsub.s32 4, %v2118
        %v2143 = vsel %vm2058, %v2142, %v2118
        %v2144 = vsel %vm2057, %v1638, %v2141
        %v2145 = vsel %vm2057, 0, %v2143
        %v2146 = vcosq.f32.pop %v2144
        %v2147 = vsinq.f32.pop %v2144
        %vm2148 = vweird.f32 %v1638
        %v2149 = vadd.s32 %v2145, 3
        %v2150 = vand.u32 %v2149, 3
        %vm2151 = vcmp.lt.s32.totalorder %v2150, 2
        %vm2152 = vcmp.eq.s32.totalorder %v2150, 0
        %v2153 = vxor.u32 %v2147, 2147483648
        %v2154 = vsel %vm2152, %v2146, %v2153
        %vm2155 = vcmp.eq.s32.totalorder %v2150, 2
        %v2156 = vxor.u32 %v2146, 2147483648
        %v2157 = vsel %vm2155, %v2156, %v2147
        %v2158 = vsel %vm2151, %v2154, %v2157
        %v2159 = vsel %vm2148, nan, %v2158
        %v2160 = vand.u32 2147483647, %v1639
        %vm2161 = vcmp.le.f32.partialorder %v2160, 0.7853982
        %vm2162 = vcmp.lt.s32.totalorder %v1639, 0
        %v2163 = vand.u32 %v1639, 2139095040
        %v2164 = vshrl.u32 %v2163, 23
        %v2165 = vsub.s32 %v2164, 127
        %v2166 = vand.u32 2147483647, %v1639
        %v2167 = vand.u32 %v2166, 8388607
        %v2168 = vor.u32 %v2167, 8388608
        %v2169 = vsub.s32 0, %v2168
        %v2170 = vadd.s32 %v2165, 1
        %vm2171 = vcmp.gt.s32.totalorder %v2170, 0
        %v2172 = vsel %vm2171, %v2170, 0
        %v2173 = vshrl.u32 %v2172, 5
        %v2174 = vand.u32 %v2172, 31
        %v2175 = vsub.s32 32, %v2174
        %v2176 = vshrl.u32 683565275, %v2175
        %v2177 = vshll.u32 683565275, %v2174
        %v2178 = vshrl.u32 2475754826, %v2175
        %v2179 = vor.u32 %v2177, %v2178
        %v2180 = vshll.u32 2475754826, %v2174
        %v2181 = vshrl.u32 2131351028, %v2175
        %v2182 = vor.u32 %v2180, %v2181
        %v2183 = vshll.u32 2131351028, %v2174
        %v2184 = vshrl.u32 2102212464, %v2175
        %v2185 = vor.u32 %v2183, %v2184
        %v2186 = vshll.u32 2102212464, %v2174
        %v2187 = vshrl.u32 920167782, %v2175
        %v2188 = vor.u32 %v2186, %v2187
        %v2189 = vshll.u32 920167782, %v2174
        %v2190 = vshrl.u32 1326507024, %v2175
        %v2191 = vor.u32 %v2189, %v2190
        %vm2192 = vcmp.lt.s32.totalorder %v2173, 1
        %vm2193 = vcmp.lt.s32.totalorder %v2173, 2
        %vm2194 = vcmp.lt.s32.totalorder %v2173, 3
        %vm2195 = vcmp.lt.s32.totalorder %v2173, 4
        %v2196 = vsel %vm2192, %v2176, %v2179
        %v2197 = vsel %vm2195, %v2185, 2102212464
        %v2198 = vsel %vm2194, %v2182, %v2197
        %v2199 = vsel %vm2193, %v2196, %v2198
        %v2200 = vsel %vm2192, %v2179, %v2182
        %v2201 = vsel %vm2195, %v2188, 920167782
        %v2202 = vsel %vm2194, %v2185, %v2201
        %v2203 = vsel %vm2193, %v2200, %v2202
        %v2204 = vsel %vm2192, %v2182, %v2185
        %v2205 = vsel %vm2195, %v2191, 1326507024
        %v2206 = vsel %vm2194, %v2188, %v2205
        %v2207 = vsel %vm2193, %v2204, %v2206
        %v2208 = vshll.u32 %v2168, 8
        %v2209 = vmul.u32.u64.compose %v2208, %v2207
        %v2210 = vextract.low.u32 %v2209
        %v2211 = vextract.high.u32 %v2209
        %v2212 = vmul.u32.u64.compose %v2208, %v2203
        %v2213 = vextract.low.u32 %v2212
        %v2214 = vextract.high.u32 %v2212
        %v2215 = vmul.u32 %v2208, %v2199
        %v2216 = vadd.s32 %v2211, %v2213
        %vm2217 = vc.u32 %v2211, %v2213
        %v2218 = vadd.s32 %v2214, 1
        %v2219 = vsel %vm2217, %v2218, %v2214
        %v2220 = vadd.s32 %v2215, %v2219
        %v2221 = vadd.s32 %v2220, 536870912
        %v2222 = vshrl.u32 %v2221, 30
        %v2223 = vshll.u32 %v2222, 30
        %v2224 = vsub.s32 %v2220, %v2223
        %vm2225 = vcmp.lt.s32.totalorder %v2224, 0
        %v2226 = vsub.s32 0, %v2224
        %v2227 = vsel %vm2225, %v2226, %v2224
        %v2228 = vclz %v2227
        %v2229 = vsub.s32 %v2228, 2
        %vm2230 = vcmp.gt.s32.totalorder 0, %v2229
        %v2231 = vsel %vm2230, 0, %v2229
        %v2232 = vsub.s32 32, %v2231
        %v2233 = vshll.u32 %v2224, %v2231
        %v2234 = vshrl.u32 %v2216, %v2232
        %v2235 = vor.u32 %v2233, %v2234
        %v2236 = vsub.s32 4294967266, %v2231
        %v2237 = vadd.s32 %v2236, 127
        %v2238 = vshll.u32 %v2237, 23
        %v2239 = vor.u32 4788187, %v2238
        %v2240 = vand.u32 2147483647, %v2239
        %v2242 = vcvt.s32.f32 %v2235
        %v2243 = vmul.f32 %v2242, %v2240
        %v2244 = vxor.u32 %v2243, 2147483648
        %v2245 = vsel %vm2162, %v2244, %v2243
        %v2246 = vsub.s32 4, %v2222
        %v2247 = vsel %vm2162, %v2246, %v2222
        %v2248 = vsel %vm2161, %v1639, %v2245
        %v2249 = vsel %vm2161, 0, %v2247
        %v2250 = vcosq.f32.pop %v2248
        %v2251 = vsinq.f32.pop %v2248
        %vm2252 = vweird.f32 %v1639
        %v2253 = vadd.s32 %v2249, 3
        %v2254 = vand.u32 %v2253, 3
        %vm2255 = vcmp.lt.s32.totalorder %v2254, 2
        %vm2256 = vcmp.eq.s32.totalorder %v2254, 0
        %v2257 = vxor.u32 %v2251, 2147483648
        %v2258 = vsel %vm2256, %v2250, %v2257
        %vm2259 = vcmp.eq.s32.totalorder %v2254, 2
        %v2260 = vxor.u32 %v2250, 2147483648
        %v2261 = vsel %vm2259, %v2260, %v2251
        %v2262 = vsel %vm2255, %v2258, %v2261
        %v2263 = vsel %vm2252, nan, %v2262
        %v2264 = vpack.c.bf16 %v1847, %v1743
        %v2265 = vpack.c.bf16 %v2055, %v1951
        %v2266 = vpack.c.bf16 %v2263, %v2159
        %2267 = vset.pattern.permute.xlu0 3
        %2268 = vperm.xlu0 %2267, %v256
        %v2269 = vpop.permute.xlu0 %2268
        %2271 = vset.pattern.permute.xlu0 3
        %2272 = vperm.xlu0 %2271, %v257
        %v2273 = vpop.permute.xlu0 %2272
        %2275 = vset.pattern.permute.xlu0 3
        %2276 = vperm.xlu0 %2275, %v258
        %v2277 = vpop.permute.xlu0 %2276
        %2279 = vset.pattern.permute.xlu0 3
        %2280 = vperm.xlu0 %2279, %v259
        %v2281 = vpop.permute.xlu0 %2280
        %2283 = vset.pattern.permute.xlu0 3
        %2284 = vperm.xlu0 %2283, %v260
        %v2285 = vpop.permute.xlu0 %2284
        %2287 = vset.pattern.permute.xlu0 3
        %2288 = vperm.xlu0 %2287, %v261
        %v2289 = vpop.permute.xlu0 %2288
        %v2291 = vmul.f32 %v2269, %v297
        %v2292 = vmul.f32 %v2273, %v297
        %v2293 = vmul.f32 %v2277, %v297
        %v2294 = vmul.f32 %v2281, %v297
        %v2295 = vmul.f32 %v2285, %v297
        %v2296 = vmul.f32 %v2289, %v297
        %v2297 = vadd.f32 %v2291, %v307
        %v2298 = vadd.f32 %v2292, %v307
        %v2299 = vadd.f32 %v2293, %v307
        %v2300 = vadd.f32 %v2294, %v307
        %v2301 = vadd.f32 %v2295, %v307
        %v2302 = vadd.f32 %v2296, %v307
        %v2303 = vand.u32 2147483647, %v2297
        %vm2304 = vcmp.le.f32.partialorder %v2303, 0.7853982
        %vm2305 = vcmp.lt.s32.totalorder %v2297, 0
        %v2306 = vand.u32 %v2297, 2139095040
        %v2307 = vshrl.u32 %v2306, 23
        %v2308 = vsub.s32 %v2307, 127
        %v2309 = vand.u32 2147483647, %v2297
        %v2310 = vand.u32 %v2309, 8388607
        %v2311 = vor.u32 %v2310, 8388608
        %v2312 = vsub.s32 0, %v2311
        %v2313 = vadd.s32 %v2308, 1
        %vm2314 = vcmp.gt.s32.totalorder %v2313, 0
        %v2315 = vsel %vm2314, %v2313, 0
        %v2316 = vshrl.u32 %v2315, 5
        %v2317 = vand.u32 %v2315, 31
        %v2318 = vsub.s32 32, %v2317
        %v2319 = vshrl.u32 683565275, %v2318
        %v2320 = vshll.u32 683565275, %v2317
        %v2321 = vshrl.u32 2475754826, %v2318
        %v2322 = vor.u32 %v2320, %v2321
        %v2323 = vshll.u32 2475754826, %v2317
        %v2324 = vshrl.u32 2131351028, %v2318
        %v2325 = vor.u32 %v2323, %v2324
        %v2326 = vshll.u32 2131351028, %v2317
        %v2327 = vshrl.u32 2102212464, %v2318
        %v2328 = vor.u32 %v2326, %v2327
        %v2329 = vshll.u32 2102212464, %v2317
        %v2330 = vshrl.u32 920167782, %v2318
        %v2331 = vor.u32 %v2329, %v2330
        %v2332 = vshll.u32 920167782, %v2317
        %v2333 = vshrl.u32 1326507024, %v2318
        %v2334 = vor.u32 %v2332, %v2333
        %vm2335 = vcmp.lt.s32.totalorder %v2316, 1
        %vm2336 = vcmp.lt.s32.totalorder %v2316, 2
        %vm2337 = vcmp.lt.s32.totalorder %v2316, 3
        %vm2338 = vcmp.lt.s32.totalorder %v2316, 4
        %v2339 = vsel %vm2335, %v2319, %v2322
        %v2340 = vsel %vm2338, %v2328, 2102212464
        %v2341 = vsel %vm2337, %v2325, %v2340
        %v2342 = vsel %vm2336, %v2339, %v2341
        %v2343 = vsel %vm2335, %v2322, %v2325
        %v2344 = vsel %vm2338, %v2331, 920167782
        %v2345 = vsel %vm2337, %v2328, %v2344
        %v2346 = vsel %vm2336, %v2343, %v2345
        %v2347 = vsel %vm2335, %v2325, %v2328
        %v2348 = vsel %vm2338, %v2334, 1326507024
        %v2349 = vsel %vm2337, %v2331, %v2348
        %v2350 = vsel %vm2336, %v2347, %v2349
        %v2351 = vshll.u32 %v2311, 8
        %v2352 = vmul.u32.u64.compose %v2351, %v2350
        %v2353 = vextract.low.u32 %v2352
        %v2354 = vextract.high.u32 %v2352
        %v2355 = vmul.u32.u64.compose %v2351, %v2346
        %v2356 = vextract.low.u32 %v2355
        %v2357 = vextract.high.u32 %v2355
        %v2358 = vmul.u32 %v2351, %v2342
        %v2359 = vadd.s32 %v2354, %v2356
        %vm2360 = vc.u32 %v2354, %v2356
        %v2361 = vadd.s32 %v2357, 1
        %v2362 = vsel %vm2360, %v2361, %v2357
        %v2363 = vadd.s32 %v2358, %v2362
        %v2364 = vadd.s32 %v2363, 536870912
        %v2365 = vshrl.u32 %v2364, 30
        %v2366 = vshll.u32 %v2365, 30
        %v2367 = vsub.s32 %v2363, %v2366
        %vm2368 = vcmp.lt.s32.totalorder %v2367, 0
        %v2369 = vsub.s32 0, %v2367
        %v2370 = vsel %vm2368, %v2369, %v2367
        %v2371 = vclz %v2370
        %v2372 = vsub.s32 %v2371, 2
        %vm2373 = vcmp.gt.s32.totalorder 0, %v2372
        %v2374 = vsel %vm2373, 0, %v2372
        %v2375 = vsub.s32 32, %v2374
        %v2376 = vshll.u32 %v2367, %v2374
        %v2377 = vshrl.u32 %v2359, %v2375
        %v2378 = vor.u32 %v2376, %v2377
        %v2379 = vsub.s32 4294967266, %v2374
        %v2380 = vadd.s32 %v2379, 127
        %v2381 = vshll.u32 %v2380, 23
        %v2382 = vor.u32 4788187, %v2381
        %v2383 = vand.u32 2147483647, %v2382
        %v2385 = vcvt.s32.f32 %v2378
        %v2386 = vmul.f32 %v2385, %v2383
        %v2387 = vxor.u32 %v2386, 2147483648
        %v2388 = vsel %vm2305, %v2387, %v2386
        %v2389 = vsub.s32 4, %v2365
        %v2390 = vsel %vm2305, %v2389, %v2365
        %v2391 = vsel %vm2304, %v2297, %v2388
        %v2392 = vsel %vm2304, 0, %v2390
        %v2393 = vcosq.f32.pop %v2391
        %v2394 = vsinq.f32.pop %v2391
        %vm2395 = vweird.f32 %v2297
        %v2396 = vadd.s32 %v2392, 3
        %v2397 = vand.u32 %v2396, 3
        %vm2398 = vcmp.lt.s32.totalorder %v2397, 2
        %vm2399 = vcmp.eq.s32.totalorder %v2397, 0
        %v2400 = vxor.u32 %v2394, 2147483648
        %v2401 = vsel %vm2399, %v2393, %v2400
        %vm2402 = vcmp.eq.s32.totalorder %v2397, 2
        %v2403 = vxor.u32 %v2393, 2147483648
        %v2404 = vsel %vm2402, %v2403, %v2394
        %v2405 = vsel %vm2398, %v2401, %v2404
        %v2406 = vsel %vm2395, nan, %v2405
        %v2407 = vand.u32 2147483647, %v2298
        %vm2408 = vcmp.le.f32.partialorder %v2407, 0.7853982
        %vm2409 = vcmp.lt.s32.totalorder %v2298, 0
        %v2410 = vand.u32 %v2298, 2139095040
        %v2411 = vshrl.u32 %v2410, 23
        %v2412 = vsub.s32 %v2411, 127
        %v2413 = vand.u32 2147483647, %v2298
        %v2414 = vand.u32 %v2413, 8388607
        %v2415 = vor.u32 %v2414, 8388608
        %v2416 = vsub.s32 0, %v2415
        %v2417 = vadd.s32 %v2412, 1
        %vm2418 = vcmp.gt.s32.totalorder %v2417, 0
        %v2419 = vsel %vm2418, %v2417, 0
        %v2420 = vshrl.u32 %v2419, 5
        %v2421 = vand.u32 %v2419, 31
        %v2422 = vsub.s32 32, %v2421
        %v2423 = vshrl.u32 683565275, %v2422
        %v2424 = vshll.u32 683565275, %v2421
        %v2425 = vshrl.u32 2475754826, %v2422
        %v2426 = vor.u32 %v2424, %v2425
        %v2427 = vshll.u32 2475754826, %v2421
        %v2428 = vshrl.u32 2131351028, %v2422
        %v2429 = vor.u32 %v2427, %v2428
        %v2430 = vshll.u32 2131351028, %v2421
        %v2431 = vshrl.u32 2102212464, %v2422
        %v2432 = vor.u32 %v2430, %v2431
        %v2433 = vshll.u32 2102212464, %v2421
        %v2434 = vshrl.u32 920167782, %v2422
        %v2435 = vor.u32 %v2433, %v2434
        %v2436 = vshll.u32 920167782, %v2421
        %v2437 = vshrl.u32 1326507024, %v2422
        %v2438 = vor.u32 %v2436, %v2437
        %vm2439 = vcmp.lt.s32.totalorder %v2420, 1
        %vm2440 = vcmp.lt.s32.totalorder %v2420, 2
        %vm2441 = vcmp.lt.s32.totalorder %v2420, 3
        %vm2442 = vcmp.lt.s32.totalorder %v2420, 4
        %v2443 = vsel %vm2439, %v2423, %v2426
        %v2444 = vsel %vm2442, %v2432, 2102212464
        %v2445 = vsel %vm2441, %v2429, %v2444
        %v2446 = vsel %vm2440, %v2443, %v2445
        %v2447 = vsel %vm2439, %v2426, %v2429
        %v2448 = vsel %vm2442, %v2435, 920167782
        %v2449 = vsel %vm2441, %v2432, %v2448
        %v2450 = vsel %vm2440, %v2447, %v2449
        %v2451 = vsel %vm2439, %v2429, %v2432
        %v2452 = vsel %vm2442, %v2438, 1326507024
        %v2453 = vsel %vm2441, %v2435, %v2452
        %v2454 = vsel %vm2440, %v2451, %v2453
        %v2455 = vshll.u32 %v2415, 8
        %v2456 = vmul.u32.u64.compose %v2455, %v2454
        %v2457 = vextract.low.u32 %v2456
        %v2458 = vextract.high.u32 %v2456
        %v2459 = vmul.u32.u64.compose %v2455, %v2450
        %v2460 = vextract.low.u32 %v2459
        %v2461 = vextract.high.u32 %v2459
        %v2462 = vmul.u32 %v2455, %v2446
        %v2463 = vadd.s32 %v2458, %v2460
        %vm2464 = vc.u32 %v2458, %v2460
        %v2465 = vadd.s32 %v2461, 1
        %v2466 = vsel %vm2464, %v2465, %v2461
        %v2467 = vadd.s32 %v2462, %v2466
        %v2468 = vadd.s32 %v2467, 536870912
        %v2469 = vshrl.u32 %v2468, 30
        %v2470 = vshll.u32 %v2469, 30
        %v2471 = vsub.s32 %v2467, %v2470
        %vm2472 = vcmp.lt.s32.totalorder %v2471, 0
        %v2473 = vsub.s32 0, %v2471
        %v2474 = vsel %vm2472, %v2473, %v2471
        %v2475 = vclz %v2474
        %v2476 = vsub.s32 %v2475, 2
        %vm2477 = vcmp.gt.s32.totalorder 0, %v2476
        %v2478 = vsel %vm2477, 0, %v2476
        %v2479 = vsub.s32 32, %v2478
        %v2480 = vshll.u32 %v2471, %v2478
        %v2481 = vshrl.u32 %v2463, %v2479
        %v2482 = vor.u32 %v2480, %v2481
        %v2483 = vsub.s32 4294967266, %v2478
        %v2484 = vadd.s32 %v2483, 127
        %v2485 = vshll.u32 %v2484, 23
        %v2486 = vor.u32 4788187, %v2485
        %v2487 = vand.u32 2147483647, %v2486
        %v2489 = vcvt.s32.f32 %v2482
        %v2490 = vmul.f32 %v2489, %v2487
        %v2491 = vxor.u32 %v2490, 2147483648
        %v2492 = vsel %vm2409, %v2491, %v2490
        %v2493 = vsub.s32 4, %v2469
        %v2494 = vsel %vm2409, %v2493, %v2469
        %v2495 = vsel %vm2408, %v2298, %v2492
        %v2496 = vsel %vm2408, 0, %v2494
        %v2497 = vcosq.f32.pop %v2495
        %v2498 = vsinq.f32.pop %v2495
        %vm2499 = vweird.f32 %v2298
        %v2500 = vadd.s32 %v2496, 3
        %v2501 = vand.u32 %v2500, 3
        %vm2502 = vcmp.lt.s32.totalorder %v2501, 2
        %vm2503 = vcmp.eq.s32.totalorder %v2501, 0
        %v2504 = vxor.u32 %v2498, 2147483648
        %v2505 = vsel %vm2503, %v2497, %v2504
        %vm2506 = vcmp.eq.s32.totalorder %v2501, 2
        %v2507 = vxor.u32 %v2497, 2147483648
        %v2508 = vsel %vm2506, %v2507, %v2498
        %v2509 = vsel %vm2502, %v2505, %v2508
        %v2510 = vsel %vm2499, nan, %v2509
        %v2511 = vand.u32 2147483647, %v2299
        %vm2512 = vcmp.le.f32.partialorder %v2511, 0.7853982
        %vm2513 = vcmp.lt.s32.totalorder %v2299, 0
        %v2514 = vand.u32 %v2299, 2139095040
        %v2515 = vshrl.u32 %v2514, 23
        %v2516 = vsub.s32 %v2515, 127
        %v2517 = vand.u32 2147483647, %v2299
        %v2518 = vand.u32 %v2517, 8388607
        %v2519 = vor.u32 %v2518, 8388608
        %v2520 = vsub.s32 0, %v2519
        %v2521 = vadd.s32 %v2516, 1
        %vm2522 = vcmp.gt.s32.totalorder %v2521, 0
        %v2523 = vsel %vm2522, %v2521, 0
        %v2524 = vshrl.u32 %v2523, 5
        %v2525 = vand.u32 %v2523, 31
        %v2526 = vsub.s32 32, %v2525
        %v2527 = vshrl.u32 683565275, %v2526
        %v2528 = vshll.u32 683565275, %v2525
        %v2529 = vshrl.u32 2475754826, %v2526
        %v2530 = vor.u32 %v2528, %v2529
        %v2531 = vshll.u32 2475754826, %v2525
        %v2532 = vshrl.u32 2131351028, %v2526
        %v2533 = vor.u32 %v2531, %v2532
        %v2534 = vshll.u32 2131351028, %v2525
        %v2535 = vshrl.u32 2102212464, %v2526
        %v2536 = vor.u32 %v2534, %v2535
        %v2537 = vshll.u32 2102212464, %v2525
        %v2538 = vshrl.u32 920167782, %v2526
        %v2539 = vor.u32 %v2537, %v2538
        %v2540 = vshll.u32 920167782, %v2525
        %v2541 = vshrl.u32 1326507024, %v2526
        %v2542 = vor.u32 %v2540, %v2541
        %vm2543 = vcmp.lt.s32.totalorder %v2524, 1
        %vm2544 = vcmp.lt.s32.totalorder %v2524, 2
        %vm2545 = vcmp.lt.s32.totalorder %v2524, 3
        %vm2546 = vcmp.lt.s32.totalorder %v2524, 4
        %v2547 = vsel %vm2543, %v2527, %v2530
        %v2548 = vsel %vm2546, %v2536, 2102212464
        %v2549 = vsel %vm2545, %v2533, %v2548
        %v2550 = vsel %vm2544, %v2547, %v2549
        %v2551 = vsel %vm2543, %v2530, %v2533
        %v2552 = vsel %vm2546, %v2539, 920167782
        %v2553 = vsel %vm2545, %v2536, %v2552
        %v2554 = vsel %vm2544, %v2551, %v2553
        %v2555 = vsel %vm2543, %v2533, %v2536
        %v2556 = vsel %vm2546, %v2542, 1326507024
        %v2557 = vsel %vm2545, %v2539, %v2556
        %v2558 = vsel %vm2544, %v2555, %v2557
        %v2559 = vshll.u32 %v2519, 8
        %v2560 = vmul.u32.u64.compose %v2559, %v2558
        %v2561 = vextract.low.u32 %v2560
        %v2562 = vextract.high.u32 %v2560
        %v2563 = vmul.u32.u64.compose %v2559, %v2554
        %v2564 = vextract.low.u32 %v2563
        %v2565 = vextract.high.u32 %v2563
        %v2566 = vmul.u32 %v2559, %v2550
        %v2567 = vadd.s32 %v2562, %v2564
        %vm2568 = vc.u32 %v2562, %v2564
        %v2569 = vadd.s32 %v2565, 1
        %v2570 = vsel %vm2568, %v2569, %v2565
        %v2571 = vadd.s32 %v2566, %v2570
        %v2572 = vadd.s32 %v2571, 536870912
        %v2573 = vshrl.u32 %v2572, 30
        %v2574 = vshll.u32 %v2573, 30
        %v2575 = vsub.s32 %v2571, %v2574
        %vm2576 = vcmp.lt.s32.totalorder %v2575, 0
        %v2577 = vsub.s32 0, %v2575
        %v2578 = vsel %vm2576, %v2577, %v2575
        %v2579 = vclz %v2578
        %v2580 = vsub.s32 %v2579, 2
        %vm2581 = vcmp.gt.s32.totalorder 0, %v2580
        %v2582 = vsel %vm2581, 0, %v2580
        %v2583 = vsub.s32 32, %v2582
        %v2584 = vshll.u32 %v2575, %v2582
        %v2585 = vshrl.u32 %v2567, %v2583
        %v2586 = vor.u32 %v2584, %v2585
        %v2587 = vsub.s32 4294967266, %v2582
        %v2588 = vadd.s32 %v2587, 127
        %v2589 = vshll.u32 %v2588, 23
        %v2590 = vor.u32 4788187, %v2589
        %v2591 = vand.u32 2147483647, %v2590
        %v2593 = vcvt.s32.f32 %v2586
        %v2594 = vmul.f32 %v2593, %v2591
        %v2595 = vxor.u32 %v2594, 2147483648
        %v2596 = vsel %vm2513, %v2595, %v2594
        %v2597 = vsub.s32 4, %v2573
        %v2598 = vsel %vm2513, %v2597, %v2573
        %v2599 = vsel %vm2512, %v2299, %v2596
        %v2600 = vsel %vm2512, 0, %v2598
        %v2601 = vcosq.f32.pop %v2599
        %v2602 = vsinq.f32.pop %v2599
        %vm2603 = vweird.f32 %v2299
        %v2604 = vadd.s32 %v2600, 3
        %v2605 = vand.u32 %v2604, 3
        %vm2606 = vcmp.lt.s32.totalorder %v2605, 2
        %vm2607 = vcmp.eq.s32.totalorder %v2605, 0
        %v2608 = vxor.u32 %v2602, 2147483648
        %v2609 = vsel %vm2607, %v2601, %v2608
        %vm2610 = vcmp.eq.s32.totalorder %v2605, 2
        %v2611 = vxor.u32 %v2601, 2147483648
        %v2612 = vsel %vm2610, %v2611, %v2602
        %v2613 = vsel %vm2606, %v2609, %v2612
        %v2614 = vsel %vm2603, nan, %v2613
        %v2615 = vand.u32 2147483647, %v2300
        %vm2616 = vcmp.le.f32.partialorder %v2615, 0.7853982
        %vm2617 = vcmp.lt.s32.totalorder %v2300, 0
        %v2618 = vand.u32 %v2300, 2139095040
        %v2619 = vshrl.u32 %v2618, 23
        %v2620 = vsub.s32 %v2619, 127
        %v2621 = vand.u32 2147483647, %v2300
        %v2622 = vand.u32 %v2621, 8388607
        %v2623 = vor.u32 %v2622, 8388608
        %v2624 = vsub.s32 0, %v2623
        %v2625 = vadd.s32 %v2620, 1
        %vm2626 = vcmp.gt.s32.totalorder %v2625, 0
        %v2627 = vsel %vm2626, %v2625, 0
        %v2628 = vshrl.u32 %v2627, 5
        %v2629 = vand.u32 %v2627, 31
        %v2630 = vsub.s32 32, %v2629
        %v2631 = vshrl.u32 683565275, %v2630
        %v2632 = vshll.u32 683565275, %v2629
        %v2633 = vshrl.u32 2475754826, %v2630
        %v2634 = vor.u32 %v2632, %v2633
        %v2635 = vshll.u32 2475754826, %v2629
        %v2636 = vshrl.u32 2131351028, %v2630
        %v2637 = vor.u32 %v2635, %v2636
        %v2638 = vshll.u32 2131351028, %v2629
        %v2639 = vshrl.u32 2102212464, %v2630
        %v2640 = vor.u32 %v2638, %v2639
        %v2641 = vshll.u32 2102212464, %v2629
        %v2642 = vshrl.u32 920167782, %v2630
        %v2643 = vor.u32 %v2641, %v2642
        %v2644 = vshll.u32 920167782, %v2629
        %v2645 = vshrl.u32 1326507024, %v2630
        %v2646 = vor.u32 %v2644, %v2645
        %vm2647 = vcmp.lt.s32.totalorder %v2628, 1
        %vm2648 = vcmp.lt.s32.totalorder %v2628, 2
        %vm2649 = vcmp.lt.s32.totalorder %v2628, 3
        %vm2650 = vcmp.lt.s32.totalorder %v2628, 4
        %v2651 = vsel %vm2647, %v2631, %v2634
        %v2652 = vsel %vm2650, %v2640, 2102212464
        %v2653 = vsel %vm2649, %v2637, %v2652
        %v2654 = vsel %vm2648, %v2651, %v2653
        %v2655 = vsel %vm2647, %v2634, %v2637
        %v2656 = vsel %vm2650, %v2643, 920167782
        %v2657 = vsel %vm2649, %v2640, %v2656
        %v2658 = vsel %vm2648, %v2655, %v2657
        %v2659 = vsel %vm2647, %v2637, %v2640
        %v2660 = vsel %vm2650, %v2646, 1326507024
        %v2661 = vsel %vm2649, %v2643, %v2660
        %v2662 = vsel %vm2648, %v2659, %v2661
        %v2663 = vshll.u32 %v2623, 8
        %v2664 = vmul.u32.u64.compose %v2663, %v2662
        %v2665 = vextract.low.u32 %v2664
        %v2666 = vextract.high.u32 %v2664
        %v2667 = vmul.u32.u64.compose %v2663, %v2658
        %v2668 = vextract.low.u32 %v2667
        %v2669 = vextract.high.u32 %v2667
        %v2670 = vmul.u32 %v2663, %v2654
        %v2671 = vadd.s32 %v2666, %v2668
        %vm2672 = vc.u32 %v2666, %v2668
        %v2673 = vadd.s32 %v2669, 1
        %v2674 = vsel %vm2672, %v2673, %v2669
        %v2675 = vadd.s32 %v2670, %v2674
        %v2676 = vadd.s32 %v2675, 536870912
        %v2677 = vshrl.u32 %v2676, 30
        %v2678 = vshll.u32 %v2677, 30
        %v2679 = vsub.s32 %v2675, %v2678
        %vm2680 = vcmp.lt.s32.totalorder %v2679, 0
        %v2681 = vsub.s32 0, %v2679
        %v2682 = vsel %vm2680, %v2681, %v2679
        %v2683 = vclz %v2682
        %v2684 = vsub.s32 %v2683, 2
        %vm2685 = vcmp.gt.s32.totalorder 0, %v2684
        %v2686 = vsel %vm2685, 0, %v2684
        %v2687 = vsub.s32 32, %v2686
        %v2688 = vshll.u32 %v2679, %v2686
        %v2689 = vshrl.u32 %v2671, %v2687
        %v2690 = vor.u32 %v2688, %v2689
        %v2691 = vsub.s32 4294967266, %v2686
        %v2692 = vadd.s32 %v2691, 127
        %v2693 = vshll.u32 %v2692, 23
        %v2694 = vor.u32 4788187, %v2693
        %v2695 = vand.u32 2147483647, %v2694
        %v2697 = vcvt.s32.f32 %v2690
        %v2698 = vmul.f32 %v2697, %v2695
        %v2699 = vxor.u32 %v2698, 2147483648
        %v2700 = vsel %vm2617, %v2699, %v2698
        %v2701 = vsub.s32 4, %v2677
        %v2702 = vsel %vm2617, %v2701, %v2677
        %v2703 = vsel %vm2616, %v2300, %v2700
        %v2704 = vsel %vm2616, 0, %v2702
        %v2705 = vcosq.f32.pop %v2703
        %v2706 = vsinq.f32.pop %v2703
        %vm2707 = vweird.f32 %v2300
        %v2708 = vadd.s32 %v2704, 3
        %v2709 = vand.u32 %v2708, 3
        %vm2710 = vcmp.lt.s32.totalorder %v2709, 2
        %vm2711 = vcmp.eq.s32.totalorder %v2709, 0
        %v2712 = vxor.u32 %v2706, 2147483648
        %v2713 = vsel %vm2711, %v2705, %v2712
        %vm2714 = vcmp.eq.s32.totalorder %v2709, 2
        %v2715 = vxor.u32 %v2705, 2147483648
        %v2716 = vsel %vm2714, %v2715, %v2706
        %v2717 = vsel %vm2710, %v2713, %v2716
        %v2718 = vsel %vm2707, nan, %v2717
        %v2719 = vand.u32 2147483647, %v2301
        %vm2720 = vcmp.le.f32.partialorder %v2719, 0.7853982
        %vm2721 = vcmp.lt.s32.totalorder %v2301, 0
        %v2722 = vand.u32 %v2301, 2139095040
        %v2723 = vshrl.u32 %v2722, 23
        %v2724 = vsub.s32 %v2723, 127
        %v2725 = vand.u32 2147483647, %v2301
        %v2726 = vand.u32 %v2725, 8388607
        %v2727 = vor.u32 %v2726, 8388608
        %v2728 = vsub.s32 0, %v2727
        %v2729 = vadd.s32 %v2724, 1
        %vm2730 = vcmp.gt.s32.totalorder %v2729, 0
        %v2731 = vsel %vm2730, %v2729, 0
        %v2732 = vshrl.u32 %v2731, 5
        %v2733 = vand.u32 %v2731, 31
        %v2734 = vsub.s32 32, %v2733
        %v2735 = vshrl.u32 683565275, %v2734
        %v2736 = vshll.u32 683565275, %v2733
        %v2737 = vshrl.u32 2475754826, %v2734
        %v2738 = vor.u32 %v2736, %v2737
        %v2739 = vshll.u32 2475754826, %v2733
        %v2740 = vshrl.u32 2131351028, %v2734
        %v2741 = vor.u32 %v2739, %v2740
        %v2742 = vshll.u32 2131351028, %v2733
        %v2743 = vshrl.u32 2102212464, %v2734
        %v2744 = vor.u32 %v2742, %v2743
        %v2745 = vshll.u32 2102212464, %v2733
        %v2746 = vshrl.u32 920167782, %v2734
        %v2747 = vor.u32 %v2745, %v2746
        %v2748 = vshll.u32 920167782, %v2733
        %v2749 = vshrl.u32 1326507024, %v2734
        %v2750 = vor.u32 %v2748, %v2749
        %vm2751 = vcmp.lt.s32.totalorder %v2732, 1
        %vm2752 = vcmp.lt.s32.totalorder %v2732, 2
        %vm2753 = vcmp.lt.s32.totalorder %v2732, 3
        %vm2754 = vcmp.lt.s32.totalorder %v2732, 4
        %v2755 = vsel %vm2751, %v2735, %v2738
        %v2756 = vsel %vm2754, %v2744, 2102212464
        %v2757 = vsel %vm2753, %v2741, %v2756
        %v2758 = vsel %vm2752, %v2755, %v2757
        %v2759 = vsel %vm2751, %v2738, %v2741
        %v2760 = vsel %vm2754, %v2747, 920167782
        %v2761 = vsel %vm2753, %v2744, %v2760
        %v2762 = vsel %vm2752, %v2759, %v2761
        %v2763 = vsel %vm2751, %v2741, %v2744
        %v2764 = vsel %vm2754, %v2750, 1326507024
        %v2765 = vsel %vm2753, %v2747, %v2764
        %v2766 = vsel %vm2752, %v2763, %v2765
        %v2767 = vshll.u32 %v2727, 8
        %v2768 = vmul.u32.u64.compose %v2767, %v2766
        %v2769 = vextract.low.u32 %v2768
        %v2770 = vextract.high.u32 %v2768
        %v2771 = vmul.u32.u64.compose %v2767, %v2762
        %v2772 = vextract.low.u32 %v2771
        %v2773 = vextract.high.u32 %v2771
        %v2774 = vmul.u32 %v2767, %v2758
        %v2775 = vadd.s32 %v2770, %v2772
        %vm2776 = vc.u32 %v2770, %v2772
        %v2777 = vadd.s32 %v2773, 1
        %v2778 = vsel %vm2776, %v2777, %v2773
        %v2779 = vadd.s32 %v2774, %v2778
        %v2780 = vadd.s32 %v2779, 536870912
        %v2781 = vshrl.u32 %v2780, 30
        %v2782 = vshll.u32 %v2781, 30
        %v2783 = vsub.s32 %v2779, %v2782
        %vm2784 = vcmp.lt.s32.totalorder %v2783, 0
        %v2785 = vsub.s32 0, %v2783
        %v2786 = vsel %vm2784, %v2785, %v2783
        %v2787 = vclz %v2786
        %v2788 = vsub.s32 %v2787, 2
        %vm2789 = vcmp.gt.s32.totalorder 0, %v2788
        %v2790 = vsel %vm2789, 0, %v2788
        %v2791 = vsub.s32 32, %v2790
        %v2792 = vshll.u32 %v2783, %v2790
        %v2793 = vshrl.u32 %v2775, %v2791
        %v2794 = vor.u32 %v2792, %v2793
        %v2795 = vsub.s32 4294967266, %v2790
        %v2796 = vadd.s32 %v2795, 127
        %v2797 = vshll.u32 %v2796, 23
        %v2798 = vor.u32 4788187, %v2797
        %v2799 = vand.u32 2147483647, %v2798
        %v2801 = vcvt.s32.f32 %v2794
        %v2802 = vmul.f32 %v2801, %v2799
        %v2803 = vxor.u32 %v2802, 2147483648
        %v2804 = vsel %vm2721, %v2803, %v2802
        %v2805 = vsub.s32 4, %v2781
        %v2806 = vsel %vm2721, %v2805, %v2781
        %v2807 = vsel %vm2720, %v2301, %v2804
        %v2808 = vsel %vm2720, 0, %v2806
        %v2809 = vcosq.f32.pop %v2807
        %v2810 = vsinq.f32.pop %v2807
        %vm2811 = vweird.f32 %v2301
        %v2812 = vadd.s32 %v2808, 3
        %v2813 = vand.u32 %v2812, 3
        %vm2814 = vcmp.lt.s32.totalorder %v2813, 2
        %vm2815 = vcmp.eq.s32.totalorder %v2813, 0
        %v2816 = vxor.u32 %v2810, 2147483648
        %v2817 = vsel %vm2815, %v2809, %v2816
        %vm2818 = vcmp.eq.s32.totalorder %v2813, 2
        %v2819 = vxor.u32 %v2809, 2147483648
        %v2820 = vsel %vm2818, %v2819, %v2810
        %v2821 = vsel %vm2814, %v2817, %v2820
        %v2822 = vsel %vm2811, nan, %v2821
        %v2823 = vand.u32 2147483647, %v2302
        %vm2824 = vcmp.le.f32.partialorder %v2823, 0.7853982
        %vm2825 = vcmp.lt.s32.totalorder %v2302, 0
        %v2826 = vand.u32 %v2302, 2139095040
        %v2827 = vshrl.u32 %v2826, 23
        %v2828 = vsub.s32 %v2827, 127
        %v2829 = vand.u32 2147483647, %v2302
        %v2830 = vand.u32 %v2829, 8388607
        %v2831 = vor.u32 %v2830, 8388608
        %v2832 = vsub.s32 0, %v2831
        %v2833 = vadd.s32 %v2828, 1
        %vm2834 = vcmp.gt.s32.totalorder %v2833, 0
        %v2835 = vsel %vm2834, %v2833, 0
        %v2836 = vshrl.u32 %v2835, 5
        %v2837 = vand.u32 %v2835, 31
        %v2838 = vsub.s32 32, %v2837
        %v2839 = vshrl.u32 683565275, %v2838
        %v2840 = vshll.u32 683565275, %v2837
        %v2841 = vshrl.u32 2475754826, %v2838
        %v2842 = vor.u32 %v2840, %v2841
        %v2843 = vshll.u32 2475754826, %v2837
        %v2844 = vshrl.u32 2131351028, %v2838
        %v2845 = vor.u32 %v2843, %v2844
        %v2846 = vshll.u32 2131351028, %v2837
        %v2847 = vshrl.u32 2102212464, %v2838
        %v2848 = vor.u32 %v2846, %v2847
        %v2849 = vshll.u32 2102212464, %v2837
        %v2850 = vshrl.u32 920167782, %v2838
        %v2851 = vor.u32 %v2849, %v2850
        %v2852 = vshll.u32 920167782, %v2837
        %v2853 = vshrl.u32 1326507024, %v2838
        %v2854 = vor.u32 %v2852, %v2853
        %vm2855 = vcmp.lt.s32.totalorder %v2836, 1
        %vm2856 = vcmp.lt.s32.totalorder %v2836, 2
        %vm2857 = vcmp.lt.s32.totalorder %v2836, 3
        %vm2858 = vcmp.lt.s32.totalorder %v2836, 4
        %v2859 = vsel %vm2855, %v2839, %v2842
        %v2860 = vsel %vm2858, %v2848, 2102212464
        %v2861 = vsel %vm2857, %v2845, %v2860
        %v2862 = vsel %vm2856, %v2859, %v2861
        %v2863 = vsel %vm2855, %v2842, %v2845
        %v2864 = vsel %vm2858, %v2851, 920167782
        %v2865 = vsel %vm2857, %v2848, %v2864
        %v2866 = vsel %vm2856, %v2863, %v2865
        %v2867 = vsel %vm2855, %v2845, %v2848
        %v2868 = vsel %vm2858, %v2854, 1326507024
        %v2869 = vsel %vm2857, %v2851, %v2868
        %v2870 = vsel %vm2856, %v2867, %v2869
        %v2871 = vshll.u32 %v2831, 8
        %v2872 = vmul.u32.u64.compose %v2871, %v2870
        %v2873 = vextract.low.u32 %v2872
        %v2874 = vextract.high.u32 %v2872
        %v2875 = vmul.u32.u64.compose %v2871, %v2866
        %v2876 = vextract.low.u32 %v2875
        %v2877 = vextract.high.u32 %v2875
        %v2878 = vmul.u32 %v2871, %v2862
        %v2879 = vadd.s32 %v2874, %v2876
        %vm2880 = vc.u32 %v2874, %v2876
        %v2881 = vadd.s32 %v2877, 1
        %v2882 = vsel %vm2880, %v2881, %v2877
        %v2883 = vadd.s32 %v2878, %v2882
        %v2884 = vadd.s32 %v2883, 536870912
        %v2885 = vshrl.u32 %v2884, 30
        %v2886 = vshll.u32 %v2885, 30
        %v2887 = vsub.s32 %v2883, %v2886
        %vm2888 = vcmp.lt.s32.totalorder %v2887, 0
        %v2889 = vsub.s32 0, %v2887
        %v2890 = vsel %vm2888, %v2889, %v2887
        %v2891 = vclz %v2890
        %v2892 = vsub.s32 %v2891, 2
        %vm2893 = vcmp.gt.s32.totalorder 0, %v2892
        %v2894 = vsel %vm2893, 0, %v2892
        %v2895 = vsub.s32 32, %v2894
        %v2896 = vshll.u32 %v2887, %v2894
        %v2897 = vshrl.u32 %v2879, %v2895
        %v2898 = vor.u32 %v2896, %v2897
        %v2899 = vsub.s32 4294967266, %v2894
        %v2900 = vadd.s32 %v2899, 127
        %v2901 = vshll.u32 %v2900, 23
        %v2902 = vor.u32 4788187, %v2901
        %v2903 = vand.u32 2147483647, %v2902
        %v2905 = vcvt.s32.f32 %v2898
        %v2906 = vmul.f32 %v2905, %v2903
        %v2907 = vxor.u32 %v2906, 2147483648
        %v2908 = vsel %vm2825, %v2907, %v2906
        %v2909 = vsub.s32 4, %v2885
        %v2910 = vsel %vm2825, %v2909, %v2885
        %v2911 = vsel %vm2824, %v2302, %v2908
        %v2912 = vsel %vm2824, 0, %v2910
        %v2913 = vcosq.f32.pop %v2911
        %v2914 = vsinq.f32.pop %v2911
        %vm2915 = vweird.f32 %v2302
        %v2916 = vadd.s32 %v2912, 3
        %v2917 = vand.u32 %v2916, 3
        %vm2918 = vcmp.lt.s32.totalorder %v2917, 2
        %vm2919 = vcmp.eq.s32.totalorder %v2917, 0
        %v2920 = vxor.u32 %v2914, 2147483648
        %v2921 = vsel %vm2919, %v2913, %v2920
        %vm2922 = vcmp.eq.s32.totalorder %v2917, 2
        %v2923 = vxor.u32 %v2913, 2147483648
        %v2924 = vsel %vm2922, %v2923, %v2914
        %v2925 = vsel %vm2918, %v2921, %v2924
        %v2926 = vsel %vm2915, nan, %v2925
        %v2927 = vpack.c.bf16 %v2510, %v2406
        %v2928 = vpack.c.bf16 %v2718, %v2614
        %v2929 = vpack.c.bf16 %v2926, %v2822
        %v2930 = vld [vmem:[%s3] ss:$2 sm:$0x3]
        %s2931 = scalar_lea.vmem %s3, 1
        %v2932 = vld [vmem:[%s2931] ss:$2 sm:$0x3]
        %v2933 = vld [vmem:[#allocation2] sm:$0xff]
        %v2934 = vld [vmem:[#allocation2 + $0x8] sm:$0xff]
        %v2935 = vld [vmem:[#allocation2 + $0x10] sm:$0xff]
        %v2936 = vld [vmem:[#allocation2 + $0x18] sm:$0xff]
        %v2937 = vld [vmem:[#allocation2 + $0x20] sm:$0xff]
        %v2938 = vld [vmem:[#allocation2 + $0x28] sm:$0xff]
        %v2939 = vld [vmem:[#allocation2 + $0x30] sm:$0xff]
        %v2940 = vld [vmem:[#allocation2 + $0x38] sm:$0xff]
        %v2941 = vld [vmem:[#allocation2 + $0x40] sm:$0xff]
        %v2942 = vld [vmem:[#allocation2 + $0x48] sm:$0xff]
        %v2943 = vld [vmem:[#allocation2 + $0x50] sm:$0xff]
        %v2944 = vld [vmem:[#allocation2 + $0x58] sm:$0xff]
        %v2945 = vld [vmem:[#allocation2 + $0x60] sm:$0xff]
        %v2946 = vld [vmem:[#allocation2 + $0x68] sm:$0xff]
        %v2947 = vld [vmem:[#allocation2 + $0x70] sm:$0xff]
        %v2948 = vld [vmem:[#allocation2 + $0x78] sm:$0xff]
        %v2949 = vld [vmem:[#allocation2 + $0x80] sm:$0xff]
        %v2950 = vld [vmem:[#allocation2 + $0x88] sm:$0xff]
        %v2951 = vld [vmem:[#allocation2 + $0x90] sm:$0xff]
        %v2952 = vld [vmem:[#allocation2 + $0x98] sm:$0xff]
        %v2953 = vld [vmem:[#allocation2 + $0xa0] sm:$0xff]
        %v2954 = vld [vmem:[#allocation2 + $0xa8] sm:$0xff]
        %v2955 = vld [vmem:[#allocation2 + $0xb0] sm:$0xff]
        %v2956 = vld [vmem:[#allocation2 + $0xb8] sm:$0xff]
        %v2957 = vld [vmem:[#allocation2 + $0xc0] sm:$0xff]
        %v2958 = vld [vmem:[#allocation2 + $0xc8] sm:$0xff]
        %v2959 = vld [vmem:[#allocation2 + $0xd0] sm:$0xff]
        %v2960 = vld [vmem:[#allocation2 + $0xd8] sm:$0xff]
        %v2961 = vld [vmem:[#allocation2 + $0xe0] sm:$0xff]
        %v2962 = vld [vmem:[#allocation2 + $0xe8] sm:$0xff]
        %v2963 = vld [vmem:[#allocation2 + $0xf0] sm:$0xff]
        %v2964 = vld [vmem:[#allocation2 + $0xf8] sm:$0xff]
        %v2965 = vld [vmem:[#allocation2 + $0x100] sm:$0xff]
        %v2966 = vld [vmem:[#allocation2 + $0x108] sm:$0xff]
        %v2967 = vld [vmem:[#allocation2 + $0x110] sm:$0xff]
        %v2968 = vld [vmem:[#allocation2 + $0x118] sm:$0xff]
        %v2969 = vld [vmem:[#allocation2 + $0x120] sm:$0xff]
        %v2970 = vld [vmem:[#allocation2 + $0x128] sm:$0xff]
        %v2971 = vld [vmem:[#allocation2 + $0x130] sm:$0xff]
        %v2972 = vld [vmem:[#allocation2 + $0x138] sm:$0xff]
        %v2973 = vld [vmem:[#allocation2 + $0x140] sm:$0xff]
        %v2974 = vld [vmem:[#allocation2 + $0x148] sm:$0xff]
        %v2975 = vld [vmem:[#allocation2 + $0x150] sm:$0xff]
        %v2976 = vld [vmem:[#allocation2 + $0x158] sm:$0xff]
        %v2977 = vld [vmem:[#allocation2 + $0x160] sm:$0xff]
        %v2978 = vld [vmem:[#allocation2 + $0x168] sm:$0xff]
        %v2979 = vld [vmem:[#allocation2 + $0x170] sm:$0xff]
        %v2980 = vld [vmem:[#allocation2 + $0x178] sm:$0xff]
        %v2981 = vld [vmem:[#allocation2 + $0x180] sm:$0xff]
        %v2982 = vld [vmem:[#allocation2 + $0x188] sm:$0xff]
        %v2983 = vld [vmem:[#allocation2 + $0x190] sm:$0xff]
        %v2984 = vld [vmem:[#allocation2 + $0x198] sm:$0xff]
        %v2985 = vld [vmem:[#allocation2 + $0x1a0] sm:$0xff]
        %v2986 = vld [vmem:[#allocation2 + $0x1a8] sm:$0xff]
        %v2987 = vld [vmem:[#allocation2 + $0x1b0] sm:$0xff]
        %v2988 = vld [vmem:[#allocation2 + $0x1b8] sm:$0xff]
        %v2989 = vld [vmem:[#allocation2 + $0x1c0] sm:$0xff]
        %v2990 = vld [vmem:[#allocation2 + $0x1c8] sm:$0xff]
        %v2991 = vld [vmem:[#allocation2 + $0x1d0] sm:$0xff]
        %v2992 = vld [vmem:[#allocation2 + $0x1d8] sm:$0xff]
        %v2993 = vld [vmem:[#allocation2 + $0x1e0] sm:$0xff]
        %v2994 = vld [vmem:[#allocation2 + $0x1e8] sm:$0xff]
        %v2995 = vld [vmem:[#allocation2 + $0x1f0] sm:$0xff]
        %v2996 = vld [vmem:[#allocation2 + $0x1f8] sm:$0xff]
        %v2998 = vlaneseq
        %v2999 = vshrl.u32 %v2998, 7
        %v3000 = vsub.s32 0, %v2999
        %v3001 = vrot.slane %v2930, %v3000
        %v3002 = vlaneseq
        %v3003 = vshrl.u32 %v3002, 7
        %v3004 = vsub.s32 1, %v3003
        %v3005 = vrot.slane %v2930, %v3004
        %v3072 = vunpack.c.l.b16 %v2933
        %v3073 = vunpack.c.h.b16 %v2933
        %v3074 = vunpack.c.l.b16 %v2934
        %v3075 = vunpack.c.h.b16 %v2934
        %v3076 = vunpack.c.l.b16 %v2935
        %v3077 = vunpack.c.h.b16 %v2935
        %v3078 = vunpack.c.l.b16 %v2936
        %v3079 = vunpack.c.h.b16 %v2936
        %v3080 = vunpack.c.l.b16 %v2937
        %v3081 = vunpack.c.h.b16 %v2937
        %v3082 = vunpack.c.l.b16 %v2938
        %v3083 = vunpack.c.h.b16 %v2938
        %v3084 = vunpack.c.l.b16 %v2939
        %v3085 = vunpack.c.h.b16 %v2939
        %v3086 = vunpack.c.l.b16 %v2940
        %v3087 = vunpack.c.h.b16 %v2940
        %v3088 = vunpack.c.l.b16 %v2941
        %v3089 = vunpack.c.h.b16 %v2941
        %v3090 = vunpack.c.l.b16 %v2942
        %v3091 = vunpack.c.h.b16 %v2942
        %v3092 = vunpack.c.l.b16 %v2943
        %v3093 = vunpack.c.h.b16 %v2943
        %v3094 = vunpack.c.l.b16 %v2944
        %v3095 = vunpack.c.h.b16 %v2944
        %v3096 = vunpack.c.l.b16 %v2945
        %v3097 = vunpack.c.h.b16 %v2945
        %v3098 = vunpack.c.l.b16 %v2946
        %v3099 = vunpack.c.h.b16 %v2946
        %v3100 = vunpack.c.l.b16 %v2947
        %v3101 = vunpack.c.h.b16 %v2947
        %v3102 = vunpack.c.l.b16 %v2948
        %v3103 = vunpack.c.h.b16 %v2948
        %v3104 = vunpack.c.l.b16 %v2949
        %v3105 = vunpack.c.h.b16 %v2949
        %v3106 = vunpack.c.l.b16 %v2950
        %v3107 = vunpack.c.h.b16 %v2950
        %v3108 = vunpack.c.l.b16 %v2951
        %v3109 = vunpack.c.h.b16 %v2951
        %v3110 = vunpack.c.l.b16 %v2952
        %v3111 = vunpack.c.h.b16 %v2952
        %v3112 = vunpack.c.l.b16 %v2953
        %v3113 = vunpack.c.h.b16 %v2953
        %v3114 = vunpack.c.l.b16 %v2954
        %v3115 = vunpack.c.h.b16 %v2954
        %v3116 = vunpack.c.l.b16 %v2955
        %v3117 = vunpack.c.h.b16 %v2955
        %v3118 = vunpack.c.l.b16 %v2956
        %v3119 = vunpack.c.h.b16 %v2956
        %v3120 = vunpack.c.l.b16 %v2957
        %v3121 = vunpack.c.h.b16 %v2957
        %v3122 = vunpack.c.l.b16 %v2958
        %v3123 = vunpack.c.h.b16 %v2958
        %v3124 = vunpack.c.l.b16 %v2959
        %v3125 = vunpack.c.h.b16 %v2959
        %v3126 = vunpack.c.l.b16 %v2960
        %v3127 = vunpack.c.h.b16 %v2960
        %v3128 = vunpack.c.l.b16 %v2961
        %v3129 = vunpack.c.h.b16 %v2961
        %v3130 = vunpack.c.l.b16 %v2962
        %v3131 = vunpack.c.h.b16 %v2962
        %v3132 = vunpack.c.l.b16 %v2963
        %v3133 = vunpack.c.h.b16 %v2963
        %v3134 = vunpack.c.l.b16 %v2964
        %v3135 = vunpack.c.h.b16 %v2964
        %v3136 = vunpack.c.l.b16 %v2965
        %v3137 = vunpack.c.h.b16 %v2965
        %v3138 = vunpack.c.l.b16 %v2966
        %v3139 = vunpack.c.h.b16 %v2966
        %v3140 = vunpack.c.l.b16 %v2967
        %v3141 = vunpack.c.h.b16 %v2967
        %v3142 = vunpack.c.l.b16 %v2968
        %v3143 = vunpack.c.h.b16 %v2968
        %v3144 = vunpack.c.l.b16 %v2969
        %v3145 = vunpack.c.h.b16 %v2969
        %v3146 = vunpack.c.l.b16 %v2970
        %v3147 = vunpack.c.h.b16 %v2970
        %v3148 = vunpack.c.l.b16 %v2971
        %v3149 = vunpack.c.h.b16 %v2971
        %v3150 = vunpack.c.l.b16 %v2972
        %v3151 = vunpack.c.h.b16 %v2972
        %v3152 = vunpack.c.l.b16 %v2973
        %v3153 = vunpack.c.h.b16 %v2973
        %v3154 = vunpack.c.l.b16 %v2974
        %v3155 = vunpack.c.h.b16 %v2974
        %v3156 = vunpack.c.l.b16 %v2975
        %v3157 = vunpack.c.h.b16 %v2975
        %v3158 = vunpack.c.l.b16 %v2976
        %v3159 = vunpack.c.h.b16 %v2976
        %v3160 = vunpack.c.l.b16 %v2977
        %v3161 = vunpack.c.h.b16 %v2977
        %v3162 = vunpack.c.l.b16 %v2978
        %v3163 = vunpack.c.h.b16 %v2978
        %v3164 = vunpack.c.l.b16 %v2979
        %v3165 = vunpack.c.h.b16 %v2979
        %v3166 = vunpack.c.l.b16 %v2980
        %v3167 = vunpack.c.h.b16 %v2980
        %v3168 = vunpack.c.l.b16 %v2981
        %v3169 = vunpack.c.h.b16 %v2981
        %v3170 = vunpack.c.l.b16 %v2982
        %v3171 = vunpack.c.h.b16 %v2982
        %v3172 = vunpack.c.l.b16 %v2983
        %v3173 = vunpack.c.h.b16 %v2983
        %v3174 = vunpack.c.l.b16 %v2984
        %v3175 = vunpack.c.h.b16 %v2984
        %v3176 = vunpack.c.l.b16 %v2985
        %v3177 = vunpack.c.h.b16 %v2985
        %v3178 = vunpack.c.l.b16 %v2986
        %v3179 = vunpack.c.h.b16 %v2986
        %v3180 = vunpack.c.l.b16 %v2987
        %v3181 = vunpack.c.h.b16 %v2987
        %v3182 = vunpack.c.l.b16 %v2988
        %v3183 = vunpack.c.h.b16 %v2988
        %v3184 = vunpack.c.l.b16 %v2989
        %v3185 = vunpack.c.h.b16 %v2989
        %v3186 = vunpack.c.l.b16 %v2990
        %v3187 = vunpack.c.h.b16 %v2990
        %v3188 = vunpack.c.l.b16 %v2991
        %v3189 = vunpack.c.h.b16 %v2991
        %v3190 = vunpack.c.l.b16 %v2992
        %v3191 = vunpack.c.h.b16 %v2992
        %v3192 = vunpack.c.l.b16 %v2993
        %v3193 = vunpack.c.h.b16 %v2993
        %v3194 = vunpack.c.l.b16 %v2994
        %v3195 = vunpack.c.h.b16 %v2994
        %v3196 = vunpack.c.l.b16 %v2995
        %v3197 = vunpack.c.h.b16 %v2995
        %v3198 = vunpack.c.l.b16 %v2996
        %v3199 = vunpack.c.h.b16 %v2996
        %v3200 = vpack.c.b16 %v3074, %v3072
        %v3201 = vpack.c.b16 %v3075, %v3073
        %v3202 = vpack.c.b16 %v3078, %v3076
        %v3203 = vpack.c.b16 %v3079, %v3077
        %v3204 = vpack.c.b16 %v3082, %v3080
        %v3205 = vpack.c.b16 %v3083, %v3081
        %v3206 = vpack.c.b16 %v3086, %v3084
        %v3207 = vpack.c.b16 %v3087, %v3085
        %v3208 = vpack.c.b16 %v3090, %v3088
        %v3209 = vpack.c.b16 %v3091, %v3089
        %v3210 = vpack.c.b16 %v3094, %v3092
        %v3211 = vpack.c.b16 %v3095, %v3093
        %v3212 = vpack.c.b16 %v3098, %v3096
        %v3213 = vpack.c.b16 %v3099, %v3097
        %v3214 = vpack.c.b16 %v3102, %v3100
        %v3215 = vpack.c.b16 %v3103, %v3101
        %v3216 = vpack.c.b16 %v3106, %v3104
        %v3217 = vpack.c.b16 %v3107, %v3105
        %v3218 = vpack.c.b16 %v3110, %v3108
        %v3219 = vpack.c.b16 %v3111, %v3109
        %v3220 = vpack.c.b16 %v3114, %v3112
        %v3221 = vpack.c.b16 %v3115, %v3113
        %v3222 = vpack.c.b16 %v3118, %v3116
        %v3223 = vpack.c.b16 %v3119, %v3117
        %v3224 = vpack.c.b16 %v3122, %v3120
        %v3225 = vpack.c.b16 %v3123, %v3121
        %v3226 = vpack.c.b16 %v3126, %v3124
        %v3227 = vpack.c.b16 %v3127, %v3125
        %v3228 = vpack.c.b16 %v3130, %v3128
        %v3229 = vpack.c.b16 %v3131, %v3129
        %v3230 = vpack.c.b16 %v3134, %v3132
        %v3231 = vpack.c.b16 %v3135, %v3133
        %v3232 = vpack.c.b16 %v3138, %v3136
        %v3233 = vpack.c.b16 %v3139, %v3137
        %v3234 = vpack.c.b16 %v3142, %v3140
        %v3235 = vpack.c.b16 %v3143, %v3141
        %v3236 = vpack.c.b16 %v3146, %v3144
        %v3237 = vpack.c.b16 %v3147, %v3145
        %v3238 = vpack.c.b16 %v3150, %v3148
        %v3239 = vpack.c.b16 %v3151, %v3149
        %v3240 = vpack.c.b16 %v3154, %v3152
        %v3241 = vpack.c.b16 %v3155, %v3153
        %v3242 = vpack.c.b16 %v3158, %v3156
        %v3243 = vpack.c.b16 %v3159, %v3157
        %v3244 = vpack.c.b16 %v3162, %v3160
        %v3245 = vpack.c.b16 %v3163, %v3161
        %v3246 = vpack.c.b16 %v3166, %v3164
        %v3247 = vpack.c.b16 %v3167, %v3165
        %v3248 = vpack.c.b16 %v3170, %v3168
        %v3249 = vpack.c.b16 %v3171, %v3169
        %v3250 = vpack.c.b16 %v3174, %v3172
        %v3251 = vpack.c.b16 %v3175, %v3173
        %v3252 = vpack.c.b16 %v3178, %v3176
        %v3253 = vpack.c.b16 %v3179, %v3177
        %v3254 = vpack.c.b16 %v3182, %v3180
        %v3255 = vpack.c.b16 %v3183, %v3181
        %v3256 = vpack.c.b16 %v3186, %v3184
        %v3257 = vpack.c.b16 %v3187, %v3185
        %v3258 = vpack.c.b16 %v3190, %v3188
        %v3259 = vpack.c.b16 %v3191, %v3189
        %v3260 = vpack.c.b16 %v3194, %v3192
        %v3261 = vpack.c.b16 %v3195, %v3193
        %v3262 = vpack.c.b16 %v3198, %v3196
        %v3263 = vpack.c.b16 %v3199, %v3197
        %3328 = vmatprep.subr.bf16.mxu0 %v3201
        %3329 = vmatpush1.bf16.msra.mxu0 %v3200
        %3330 = vmatprep.subr.bf16.mxu0 %v3203
        %3331 = vmatpush1.bf16.msra.mxu0 %v3202
        %3332 = vmatprep.subr.bf16.mxu0 %v3205
        %3333 = vmatpush1.bf16.msra.mxu0 %v3204
        %3334 = vmatprep.subr.bf16.mxu0 %v3207
        %3335 = vmatpush1.bf16.msra.mxu0 %v3206
        %3336 = vmatprep.subr.bf16.mxu0 %v3209
        %3337 = vmatpush1.bf16.msra.mxu0 %v3208
        %3338 = vmatprep.subr.bf16.mxu0 %v3211
        %3339 = vmatpush1.bf16.msra.mxu0 %v3210
        %3340 = vmatprep.subr.bf16.mxu0 %v3213
        %3341 = vmatpush1.bf16.msra.mxu0 %v3212
        %3342 = vmatprep.subr.bf16.mxu0 %v3215
        %3343 = vmatpush1.bf16.msra.mxu0 %v3214
        %3344 = vmatprep.subr.bf16.mxu0 %v3217
        %3345 = vmatpush1.bf16.msra.mxu0 %v3216
        %3346 = vmatprep.subr.bf16.mxu0 %v3219
        %3347 = vmatpush1.bf16.msra.mxu0 %v3218
        %3348 = vmatprep.subr.bf16.mxu0 %v3221
        %3349 = vmatpush1.bf16.msra.mxu0 %v3220
        %3350 = vmatprep.subr.bf16.mxu0 %v3223
        %3351 = vmatpush1.bf16.msra.mxu0 %v3222
        %3352 = vmatprep.subr.bf16.mxu0 %v3225
        %3353 = vmatpush1.bf16.msra.mxu0 %v3224
        %3354 = vmatprep.subr.bf16.mxu0 %v3227
        %3355 = vmatpush1.bf16.msra.mxu0 %v3226
        %3356 = vmatprep.subr.bf16.mxu0 %v3229
        %3357 = vmatpush1.bf16.msra.mxu0 %v3228
        %3358 = vmatprep.subr.bf16.mxu0 %v3231
        %3359 = vmatpush1.bf16.msra.mxu0 %v3230
        %3360 = vmatprep.mubr.bf16.mxu0 %v1601
        %3361 = vmatmul.mubr.bf16.gmra.mrb[0].mxu0 %v938
        %v3362 = vpop.f32.mrb[0].mxu0
        %v3363 = vadd.f32 %v3001, %v3362
        %v3364 = vpop.f32.mrb[0].mxu0
        %v3365 = vadd.f32 %v3005, %v3364
        %v3366 = vpop.f32.mrb[0].mxu0
        %v3367 = vadd.f32 %v3001, %v3366
        %v3368 = vpop.f32.mrb[0].mxu0
        %v3369 = vadd.f32 %v3005, %v3368
        %3370 = vmatprep.mubr.bf16.mxu0 %v1602
        %3371 = vmatmul.mubr.bf16.gmra.mrb[0].mxu0 %v939
        %v3372 = vpop.f32.mrb[0].mxu0
        %v3373 = vadd.f32 %v3001, %v3372
        %v3374 = vpop.f32.mrb[0].mxu0
        %v3375 = vadd.f32 %v3005, %v3374
        %v3376 = vpop.f32.mrb[0].mxu0
        %v3377 = vadd.f32 %v3001, %v3376
        %v3378 = vpop.f32.mrb[0].mxu0
        %v3379 = vadd.f32 %v3005, %v3378
        %3380 = vmatprep.mubr.bf16.mxu0 %v1603
        %3381 = vmatmul.mubr.bf16.gmra.mrb[0].mxu0 %v940
        %v3382 = vpop.f32.mrb[0].mxu0
        %v3383 = vadd.f32 %v3001, %v3382
        %v3384 = vpop.f32.mrb[0].mxu0
        %v3385 = vadd.f32 %v3005, %v3384
        %v3386 = vpop.f32.mrb[0].mxu0
        %v3387 = vadd.f32 %v3001, %v3386
        %v3388 = vpop.f32.mrb[0].mxu0
        %v3389 = vadd.f32 %v3005, %v3388
        %3390 = vdwg.mxu0
        %3391 = vmatprep.subr.bf16.mxu0 %v3233
        %3392 = vmatpush1.bf16.msra.mxu0 %v3232
        %3393 = vmatprep.subr.bf16.mxu0 %v3235
        %3394 = vmatpush1.bf16.msra.mxu0 %v3234
        %3395 = vmatprep.subr.bf16.mxu0 %v3237
        %3396 = vmatpush1.bf16.msra.mxu0 %v3236
        %3397 = vmatprep.subr.bf16.mxu0 %v3239
        %3398 = vmatpush1.bf16.msra.mxu0 %v3238
        %3399 = vmatprep.subr.bf16.mxu0 %v3241
        %3400 = vmatpush1.bf16.msra.mxu0 %v3240
        %3401 = vmatprep.subr.bf16.mxu0 %v3243
        %3402 = vmatpush1.bf16.msra.mxu0 %v3242
        %3403 = vmatprep.subr.bf16.mxu0 %v3245
        %3404 = vmatpush1.bf16.msra.mxu0 %v3244
        %3405 = vmatprep.subr.bf16.mxu0 %v3247
        %3406 = vmatpush1.bf16.msra.mxu0 %v3246
        %3407 = vmatprep.subr.bf16.mxu0 %v3249
        %3408 = vmatpush1.bf16.msra.mxu0 %v3248
        %3409 = vmatprep.subr.bf16.mxu0 %v3251
        %3410 = vmatpush1.bf16.msra.mxu0 %v3250
        %3411 = vmatprep.subr.bf16.mxu0 %v3253
        %3412 = vmatpush1.bf16.msra.mxu0 %v3252
        %3413 = vmatprep.subr.bf16.mxu0 %v3255
        %3414 = vmatpush1.bf16.msra.mxu0 %v3254
        %3415 = vmatprep.subr.bf16.mxu0 %v3257
        %3416 = vmatpush1.bf16.msra.mxu0 %v3256
        %3417 = vmatprep.subr.bf16.mxu0 %v3259
        %3418 = vmatpush1.bf16.msra.mxu0 %v3258
        %3419 = vmatprep.subr.bf16.mxu0 %v3261
        %3420 = vmatpush1.bf16.msra.mxu0 %v3260
        %3421 = vmatprep.subr.bf16.mxu0 %v3263
        %3422 = vmatpush1.bf16.msra.mxu0 %v3262
        %3423 = vmatprep.mubr.bf16.mxu0 %v2927
        %3424 = vmatmul.mubr.bf16.gmra.mrb[0].mxu0 %v2264
        %v3425 = vpop.f32.mrb[0].mxu0
        %v3426 = vadd.f32 %v3363, %v3425
        %v3427 = vpop.f32.mrb[0].mxu0
        %v3428 = vadd.f32 %v3365, %v3427
        %v3429 = vpop.f32.mrb[0].mxu0
        %v3430 = vadd.f32 %v3367, %v3429
        %v3431 = vpop.f32.mrb[0].mxu0
        %v3432 = vadd.f32 %v3369, %v3431
        %3433 = vmatprep.mubr.bf16.mxu0 %v2928
        %3434 = vmatmul.mubr.bf16.gmra.mrb[0].mxu0 %v2265
        %v3435 = vpop.f32.mrb[0].mxu0
        %v3436 = vadd.f32 %v3373, %v3435
        %v3437 = vpop.f32.mrb[0].mxu0
        %v3438 = vadd.f32 %v3375, %v3437
        %v3439 = vpop.f32.mrb[0].mxu0
        %v3440 = vadd.f32 %v3377, %v3439
        %v3441 = vpop.f32.mrb[0].mxu0
        %v3442 = vadd.f32 %v3379, %v3441
        %3443 = vmatprep.mubr.bf16.mxu0 %v2929
        %3444 = vmatmul.mubr.bf16.gmra.mrb[0].mxu0 %v2266
        %v3445 = vpop.f32.mrb[0].mxu0
        %v3446 = vadd.f32 %v3383, %v3445
        %v3447 = vpop.f32.mrb[0].mxu0
        %v3448 = vadd.f32 %v3385, %v3447
        %v3449 = vpop.f32.mrb[0].mxu0
        %v3450 = vadd.f32 %v3387, %v3449
        %v3451 = vpop.f32.mrb[0].mxu0
        %v3452 = vadd.f32 %v3389, %v3451
        %3453 = vdwg.mxu0
        %v3454 = vmax.f32 %v3426, 0.0
        %v3455 = vmax.f32 %v3428, 0.0
        %v3456 = vmax.f32 %v3430, 0.0
        %v3457 = vmax.f32 %v3432, 0.0
        %v3458 = vmax.f32 %v3436, 0.0
        %v3459 = vmax.f32 %v3438, 0.0
        %v3460 = vmax.f32 %v3440, 0.0
        %v3461 = vmax.f32 %v3442, 0.0
        %v3462 = vmax.f32 %v3446, 0.0
        %v3463 = vmax.f32 %v3448, 0.0
        %v3464 = vmax.f32 %v3450, 0.0
        %v3465 = vmax.f32 %v3452, 0.0
        %v3466 = vpack.c.bf16 %v3456, %v3454
        %v3467 = vpack.c.bf16 %v3457, %v3455
        %v3468 = vpack.c.bf16 %v3460, %v3458
        %v3469 = vpack.c.bf16 %v3461, %v3459
        %v3470 = vpack.c.bf16 %v3464, %v3462
        %v3471 = vpack.c.bf16 %v3465, %v3463
        %v3472 = vld [vmem:[#allocation5] sm:$0xff]
        %v3473 = vld [vmem:[#allocation5 + $0x8] sm:$0xff]
        %v3474 = vld [vmem:[#allocation5 + $0x10] sm:$0xff]
        %v3475 = vld [vmem:[#allocation5 + $0x18] sm:$0xff]
        %v3476 = vld [vmem:[#allocation5 + $0x20] sm:$0xff]
        %v3477 = vld [vmem:[#allocation5 + $0x28] sm:$0xff]
        %v3478 = vld [vmem:[#allocation5 + $0x30] sm:$0xff]
        %v3479 = vld [vmem:[#allocation5 + $0x38] sm:$0xff]
        %v3480 = vld [vmem:[#allocation5 + $0x40] sm:$0xff]
        %v3481 = vld [vmem:[#allocation5 + $0x48] sm:$0xff]
        %v3482 = vld [vmem:[#allocation5 + $0x50] sm:$0xff]
        %v3483 = vld [vmem:[#allocation5 + $0x58] sm:$0xff]
        %v3484 = vld [vmem:[#allocation5 + $0x60] sm:$0xff]
        %v3485 = vld [vmem:[#allocation5 + $0x68] sm:$0xff]
        %v3486 = vld [vmem:[#allocation5 + $0x70] sm:$0xff]
        %v3487 = vld [vmem:[#allocation5 + $0x78] sm:$0xff]
        %v3488 = vld [vmem:[#allocation5 + $0x80] sm:$0xff]
        %v3489 = vld [vmem:[#allocation5 + $0x88] sm:$0xff]
        %v3490 = vld [vmem:[#allocation5 + $0x90] sm:$0xff]
        %v3491 = vld [vmem:[#allocation5 + $0x98] sm:$0xff]
        %v3492 = vld [vmem:[#allocation5 + $0xa0] sm:$0xff]
        %v3493 = vld [vmem:[#allocation5 + $0xa8] sm:$0xff]
        %v3494 = vld [vmem:[#allocation5 + $0xb0] sm:$0xff]
        %v3495 = vld [vmem:[#allocation5 + $0xb8] sm:$0xff]
        %v3496 = vld [vmem:[#allocation5 + $0xc0] sm:$0xff]
        %v3497 = vld [vmem:[#allocation5 + $0xc8] sm:$0xff]
        %v3498 = vld [vmem:[#allocation5 + $0xd0] sm:$0xff]
        %v3499 = vld [vmem:[#allocation5 + $0xd8] sm:$0xff]
        %v3500 = vld [vmem:[#allocation5 + $0xe0] sm:$0xff]
        %v3501 = vld [vmem:[#allocation5 + $0xe8] sm:$0xff]
        %v3502 = vld [vmem:[#allocation5 + $0xf0] sm:$0xff]
        %v3503 = vld [vmem:[#allocation5 + $0xf8] sm:$0xff]
        %v3505 = vlaneseq
        %v3506 = vshrl.u32 %v3505, 7
        %v3507 = vsub.s32 0, %v3506
        %v3508 = vrot.slane %v2932, %v3507
        %v3509 = vlaneseq
        %v3510 = vshrl.u32 %v3509, 7
        %v3511 = vsub.s32 1, %v3510
        %v3512 = vrot.slane %v2932, %v3511
        %v3547 = vunpack.c.l.b16 %v3472
        %v3548 = vunpack.c.h.b16 %v3472
        %v3549 = vunpack.c.l.b16 %v3473
        %v3550 = vunpack.c.h.b16 %v3473
        %v3551 = vunpack.c.l.b16 %v3474
        %v3552 = vunpack.c.h.b16 %v3474
        %v3553 = vunpack.c.l.b16 %v3475
        %v3554 = vunpack.c.h.b16 %v3475
        %v3555 = vunpack.c.l.b16 %v3476
        %v3556 = vunpack.c.h.b16 %v3476
        %v3557 = vunpack.c.l.b16 %v3477
        %v3558 = vunpack.c.h.b16 %v3477
        %v3559 = vunpack.c.l.b16 %v3478
        %v3560 = vunpack.c.h.b16 %v3478
        %v3561 = vunpack.c.l.b16 %v3479
        %v3562 = vunpack.c.h.b16 %v3479
        %v3563 = vunpack.c.l.b16 %v3480
        %v3564 = vunpack.c.h.b16 %v3480
        %v3565 = vunpack.c.l.b16 %v3481
        %v3566 = vunpack.c.h.b16 %v3481
        %v3567 = vunpack.c.l.b16 %v3482
        %v3568 = vunpack.c.h.b16 %v3482
        %v3569 = vunpack.c.l.b16 %v3483
        %v3570 = vunpack.c.h.b16 %v3483
        %v3571 = vunpack.c.l.b16 %v3484
        %v3572 = vunpack.c.h.b16 %v3484
        %v3573 = vunpack.c.l.b16 %v3485
        %v3574 = vunpack.c.h.b16 %v3485
        %v3575 = vunpack.c.l.b16 %v3486
        %v3576 = vunpack.c.h.b16 %v3486
        %v3577 = vunpack.c.l.b16 %v3487
        %v3578 = vunpack.c.h.b16 %v3487
        %v3579 = vunpack.c.l.b16 %v3488
        %v3580 = vunpack.c.h.b16 %v3488
        %v3581 = vunpack.c.l.b16 %v3489
        %v3582 = vunpack.c.h.b16 %v3489
        %v3583 = vunpack.c.l.b16 %v3490
        %v3584 = vunpack.c.h.b16 %v3490
        %v3585 = vunpack.c.l.b16 %v3491
        %v3586 = vunpack.c.h.b16 %v3491
        %v3587 = vunpack.c.l.b16 %v3492
        %v3588 = vunpack.c.h.b16 %v3492
        %v3589 = vunpack.c.l.b16 %v3493
        %v3590 = vunpack.c.h.b16 %v3493
        %v3591 = vunpack.c.l.b16 %v3494
        %v3592 = vunpack.c.h.b16 %v3494
        %v3593 = vunpack.c.l.b16 %v3495
        %v3594 = vunpack.c.h.b16 %v3495
        %v3595 = vunpack.c.l.b16 %v3496
        %v3596 = vunpack.c.h.b16 %v3496
        %v3597 = vunpack.c.l.b16 %v3497
        %v3598 = vunpack.c.h.b16 %v3497
        %v3599 = vunpack.c.l.b16 %v3498
        %v3600 = vunpack.c.h.b16 %v3498
        %v3601 = vunpack.c.l.b16 %v3499
        %v3602 = vunpack.c.h.b16 %v3499
        %v3603 = vunpack.c.l.b16 %v3500
        %v3604 = vunpack.c.h.b16 %v3500
        %v3605 = vunpack.c.l.b16 %v3501
        %v3606 = vunpack.c.h.b16 %v3501
        %v3607 = vunpack.c.l.b16 %v3502
        %v3608 = vunpack.c.h.b16 %v3502
        %v3609 = vunpack.c.l.b16 %v3503
        %v3610 = vunpack.c.h.b16 %v3503
        %v3611 = vpack.c.b16 %v3549, %v3547
        %v3612 = vpack.c.b16 %v3550, %v3548
        %v3613 = vpack.c.b16 %v3553, %v3551
        %v3614 = vpack.c.b16 %v3554, %v3552
        %v3615 = vpack.c.b16 %v3557, %v3555
        %v3616 = vpack.c.b16 %v3558, %v3556
        %v3617 = vpack.c.b16 %v3561, %v3559
        %v3618 = vpack.c.b16 %v3562, %v3560
        %v3619 = vpack.c.b16 %v3565, %v3563
        %v3620 = vpack.c.b16 %v3566, %v3564
        %v3621 = vpack.c.b16 %v3569, %v3567
        %v3622 = vpack.c.b16 %v3570, %v3568
        %v3623 = vpack.c.b16 %v3573, %v3571
        %v3624 = vpack.c.b16 %v3574, %v3572
        %v3625 = vpack.c.b16 %v3577, %v3575
        %v3626 = vpack.c.b16 %v3578, %v3576
        %v3627 = vpack.c.b16 %v3581, %v3579
        %v3628 = vpack.c.b16 %v3582, %v3580
        %v3629 = vpack.c.b16 %v3585, %v3583
        %v3630 = vpack.c.b16 %v3586, %v3584
        %v3631 = vpack.c.b16 %v3589, %v3587
        %v3632 = vpack.c.b16 %v3590, %v3588
        %v3633 = vpack.c.b16 %v3593, %v3591
        %v3634 = vpack.c.b16 %v3594, %v3592
        %v3635 = vpack.c.b16 %v3597, %v3595
        %v3636 = vpack.c.b16 %v3598, %v3596
        %v3637 = vpack.c.b16 %v3601, %v3599
        %v3638 = vpack.c.b16 %v3602, %v3600
        %v3639 = vpack.c.b16 %v3605, %v3603
        %v3640 = vpack.c.b16 %v3606, %v3604
        %v3641 = vpack.c.b16 %v3609, %v3607
        %v3642 = vpack.c.b16 %v3610, %v3608
        %3675 = vmatprep.subr.bf16.mxu0 %v3612
        %3676 = vmatpush1.bf16.msra.mxu0 %v3611
        %3677 = vmatprep.subr.bf16.mxu0 %v3614
        %3678 = vmatpush1.bf16.msra.mxu0 %v3613
        %3679 = vmatprep.subr.bf16.mxu0 %v3616
        %3680 = vmatpush1.bf16.msra.mxu0 %v3615
        %3681 = vmatprep.subr.bf16.mxu0 %v3618
        %3682 = vmatpush1.bf16.msra.mxu0 %v3617
        %3683 = vmatprep.subr.bf16.mxu0 %v3620
        %3684 = vmatpush1.bf16.msra.mxu0 %v3619
        %3685 = vmatprep.subr.bf16.mxu0 %v3622
        %3686 = vmatpush1.bf16.msra.mxu0 %v3621
        %3687 = vmatprep.subr.bf16.mxu0 %v3624
        %3688 = vmatpush1.bf16.msra.mxu0 %v3623
        %3689 = vmatprep.subr.bf16.mxu0 %v3626
        %3690 = vmatpush1.bf16.msra.mxu0 %v3625
        %3691 = vmatprep.subr.bf16.mxu0 %v3628
        %3692 = vmatpush1.bf16.msra.mxu0 %v3627
        %3693 = vmatprep.subr.bf16.mxu0 %v3630
        %3694 = vmatpush1.bf16.msra.mxu0 %v3629
        %3695 = vmatprep.subr.bf16.mxu0 %v3632
        %3696 = vmatpush1.bf16.msra.mxu0 %v3631
        %3697 = vmatprep.subr.bf16.mxu0 %v3634
        %3698 = vmatpush1.bf16.msra.mxu0 %v3633
        %3699 = vmatprep.subr.bf16.mxu0 %v3636
        %3700 = vmatpush1.bf16.msra.mxu0 %v3635
        %3701 = vmatprep.subr.bf16.mxu0 %v3638
        %3702 = vmatpush1.bf16.msra.mxu0 %v3637
        %3703 = vmatprep.subr.bf16.mxu0 %v3640
        %3704 = vmatpush1.bf16.msra.mxu0 %v3639
        %3705 = vmatprep.subr.bf16.mxu0 %v3642
        %3706 = vmatpush1.bf16.msra.mxu0 %v3641
        %3707 = vmatprep.mubr.bf16.mxu0 %v3467
        %3708 = vmatmul.mubr.bf16.gmra.mrb[0].mxu0 %v3466
        %v3709 = vpop.f32.mrb[0].mxu0
        %v3710 = vadd.f32 %v3508, %v3709
        %v3711 = vpop.f32.mrb[0].mxu0
        %v3712 = vadd.f32 %v3512, %v3711
        %v3713 = vpop.f32.mrb[0].mxu0
        %v3714 = vadd.f32 %v3508, %v3713
        %v3715 = vpop.f32.mrb[0].mxu0
        %v3716 = vadd.f32 %v3512, %v3715
        %3717 = vmatprep.mubr.bf16.mxu0 %v3469
        %3718 = vmatmul.mubr.bf16.gmra.mrb[0].mxu0 %v3468
        %v3719 = vpop.f32.mrb[0].mxu0
        %v3720 = vadd.f32 %v3508, %v3719
        %v3721 = vpop.f32.mrb[0].mxu0
        %v3722 = vadd.f32 %v3512, %v3721
        %v3723 = vpop.f32.mrb[0].mxu0
        %v3724 = vadd.f32 %v3508, %v3723
        %v3725 = vpop.f32.mrb[0].mxu0
        %v3726 = vadd.f32 %v3512, %v3725
        %3727 = vmatprep.mubr.bf16.mxu0 %v3471
        %3728 = vmatmul.mubr.bf16.gmra.mrb[0].mxu0 %v3470
        %v3729 = vpop.f32.mrb[0].mxu0
        %v3730 = vadd.f32 %v3508, %v3729
        %v3731 = vpop.f32.mrb[0].mxu0
        %v3732 = vadd.f32 %v3512, %v3731
        %v3733 = vpop.f32.mrb[0].mxu0
        %v3734 = vadd.f32 %v3508, %v3733
        %v3735 = vpop.f32.mrb[0].mxu0
        %v3736 = vadd.f32 %v3512, %v3735
        %3737 = vdwg.mxu0
        %v3738 = vpack.c.bf16 %v3714, %v3710
        %v3739 = vpack.c.bf16 %v3716, %v3712
        %v3740 = vpack.c.bf16 %v3724, %v3720
        %v3741 = vpack.c.bf16 %v3726, %v3722
        %v3742 = vpack.c.bf16 %v3734, %v3730
        %v3743 = vpack.c.bf16 %v3736, %v3732
        %v3750 = vunpack.c.l.b16 %v3738
        %v3751 = vunpack.c.l.b16 %v3739
        %v3752 = vunpack.c.h.b16 %v3738
        %v3753 = vunpack.c.h.b16 %v3739
        %v3754 = vunpack.c.l.b16 %v3740
        %v3755 = vunpack.c.l.b16 %v3741
        %v3756 = vunpack.c.h.b16 %v3740
        %v3757 = vunpack.c.h.b16 %v3741
        %v3758 = vunpack.c.l.b16 %v3742
        %v3759 = vunpack.c.l.b16 %v3743
        %v3760 = vunpack.c.h.b16 %v3742
        %v3761 = vunpack.c.h.b16 %v3743
        %v3762 = vpack.c.b16 %v3751, %v3750
        %v3763 = vpack.c.b16 %v3753, %v3752
        %v3764 = vpack.c.b16 %v3755, %v3754
        %v3765 = vpack.c.b16 %v3757, %v3756
        %v3766 = vpack.c.b16 %v3759, %v3758
        %v3767 = vpack.c.b16 %v3761, %v3760
        %3774 = vst [vmem:[%s248] sm:$0xff] %v3762
        %3775 = vst [vmem:[%s248 + $0x8] sm:$0xff] %v3763
        %3776 = vst [vmem:[%s248 + $0x10] sm:$0xff] %v3764
        %3777 = vst [vmem:[%s248 + $0x18] sm:$0xff] %v3765
        %3778 = vst [vmem:[%s248 + $0x20] sm:$0xff] %v3766
        %3779 = vst [vmem:[%s248 + $0x28] sm:$0xff] %v3767
        %s3780 = sand.u32 %s139, 1
        %s3781 = scalar_lea.sflag [#allocation4], %s3780
        %s3782 = sand.u32 %s139, 1
        %s3783 = smul.addr %s3782, 48
        %s3784 = scalar_lea.vmem [#allocation7], %s3783
        // Predicated region
        $region49: #{tpu_custom_call.1} parent=39 // pred_check
          %p3785 = pneg %p149
        $region50: #{tpu_custom_call.1} parent=39 // pred_check_branch
          %3787 = sbr.rel (%p3785) target = $region52
        $region51: #{tpu_custom_call.1} parent=39 // pred_region
          %s3788 = smul.u32 6, %s21
          %s3790 = ssub.s32 768, 768
          %3791 = vsyncadd %s3781, %s3790
          %s3792 = smul.addr %s3788, 2
          %s3793 = smul.addr %s3792, 64
          %s3794 = scalar_lea.hbm %s5, %s3793
          %s3795 = sshll.u32 %s3784, 4
          %s3796 = int_to_ptr.vmem [resolvable:$true] %s3795
          %3801 = dma.vmem_to_hbm [thread:$0]  %s3796, 768, %s3794, %s3781, 128, 128, 8
        $region52: #{tpu_custom_call.1} parent=39 // pred_fallthru
          _
      $region40: #{tpu_custom_call.1} parent=5 // pred_fallthru
        _
      %p3802 = scmp.le.s32.totalorder 2, %s16
      // Predicated region
      $region53: #{tpu_custom_call.1} parent=5 // pred_check
        %p3803 = pneg %p3802
      $region54: #{tpu_custom_call.1} parent=5 // pred_check_branch
        %3805 = sbr.rel (%p3803) target = $region56
      $region55: #{tpu_custom_call.1} parent=5 // pred_region
        %s3806 = ssub.s32 %s16, 2
        // Predicated region
        $region57: #{tpu_custom_call.1} parent=55 // pred_check
          %p3807 = pneg %p155
        $region58: #{tpu_custom_call.1} parent=55 // pred_check_branch
          %3809 = sbr.rel (%p3807) target = $region60
        $region59: #{tpu_custom_call.1} parent=55 // pred_region
          %s3810 = sand.u32 %s140, 1
          %s3811 = scalar_lea.sflag [#allocation4], %s3810
          %s3812 = sand.u32 %s140, 1
          %s3813 = smul.addr %s3812, 48
          %s3814 = scalar_lea.vmem [#allocation7], %s3813
          %3815 = dma.done %s3811, 768
        $region60: #{tpu_custom_call.1} parent=55 // pred_fallthru
          _
      $region56: #{tpu_custom_call.1} parent=5 // pred_fallthru
        _
    $region6: #{tpu_custom_call.1} parent=1 // loop_footer
      %s20 = sadd.s32 1, %s16
    $region7: #{tpu_custom_call.1} parent=1 // loop_footer_branch
      %15 = sbr.rel target = $region3
    $region8: #{tpu_custom_call.1} parent=1 // loop_exit
      _
    %3816 = vsyncpa [#allocation3], 1
    %s3817 = scalar_lea.sflag [#allocation3], 1
    %3818 = vsyncpa %s3817, 1
    %3819 = vsyncpa [#allocation6], 1
    %3820 = vsyncpa [#allocation4], 1
    %s3821 = scalar_lea.sflag [#allocation4], 1
    %3822 = vsyncpa %s3821, 1

</llo_original>
